<compile_context>
chip_gen: v6e
topology: v6e:2x2x1
jax: 0.10.0
libtpu: 0.0.40
codegen_flags: <defaults>
</compile_context>

<pallas_src>
import functools

import jax
import jax.numpy as jnp
from jax import lax
from jax.experimental import pallas as pl
from jax.experimental.pallas import tpu as pltpu


def _encoder_kernel(x_ref, wqkv_ref, wo_ref, bqkv_ref, bo_ref, o_ref,
                    *, num_layers, num_heads):
    Bt, S, D = x_ref.shape                      # block: (Bt, S, D)
    H = num_heads
    Dh = D // H

    Wqkv = wqkv_ref[...]                        # [D, 3D] bf16 (Q part pre-scaled)
    Wo = wo_ref[...]                            # [D, D]  bf16
    bqkv = bqkv_ref[...].astype(jnp.float32)    # [1, 3D] f32
    bo = bo_ref[...].astype(jnp.float32)        # [1, D]  f32

    x0 = x_ref[...].astype(jnp.float32)         # [Bt, S, D] f32

    def one_layer(x3):                          # x3: [Bt, S, D] f32
        # --- fused Q/K/V projection: one [Bt*S, D] @ [D, 3D] MXU matmul ---
        xb = x3.reshape(Bt * S, D).astype(jnp.bfloat16)
        qkv = jnp.dot(xb, Wqkv, preferred_element_type=jnp.float32) + bqkv
        qkv = qkv.reshape(Bt, S, 3 * D)         # [Bt, S, 3D] f32

        # --- multi-head attention, batched over the Bt block ---
        # Each head's context goes straight through its sublane rows of Wo and
        # is accumulated in f32 (no lane concat, no o3 intermediate).
        attn = jnp.zeros((Bt * S, D), jnp.float32)
        for h in range(H):
            lo = h * Dh
            qh = qkv[:, :, lo:lo + Dh].astype(jnp.bfloat16)              # [Bt,S,Dh]
            kh = qkv[:, :, D + lo:D + lo + Dh].astype(jnp.bfloat16)
            vh = qkv[:, :, 2 * D + lo:2 * D + lo + Dh].astype(jnp.bfloat16)
            s = jnp.einsum('bqd,bkd->bqk', qh, kh,
                           preferred_element_type=jnp.float32)           # [Bt,S,S]
            s = s - jnp.max(s, axis=-1, keepdims=True)                   # f32 softmax
            p = jnp.exp(s)
            inv = pl.reciprocal(jnp.sum(p, axis=-1, keepdims=True), approx=True)
            p = p * inv
            ctx = jnp.einsum('bqk,bkd->bqd', p.astype(jnp.bfloat16), vh,
                             preferred_element_type=jnp.float32)         # [Bt,S,Dh]
            attn = attn + jnp.dot(ctx.reshape(Bt * S, Dh).astype(jnp.bfloat16),
                                  Wo[lo:lo + Dh, :],
                                  preferred_element_type=jnp.float32)

        # --- residual ---
        xr = x3 + (attn + bo).reshape(Bt, S, D)

        # --- InstanceNorm1d over the sequence axis (affine=False, eps=1e-5,
        #     biased variance), then relu.  All f32 VPU math (v5e-safe). ---
        mu = jnp.mean(xr, axis=1, keepdims=True)                          # [Bt, 1, D]
        var = jnp.mean((xr - mu) ** 2, axis=1, keepdims=True)
        xn = (xr - mu) * lax.rsqrt(var + 1e-5)
        return jnp.maximum(xn, 0.0)

    # All encoder layers share weights (_get_clones reuses the same instance).
    xN = lax.fori_loop(0, num_layers, lambda _, x: one_layer(x), x0, unroll=True)
    o_ref[...] = xN.astype(o_ref.dtype)


def _tpu_generation_hints():
    """Returns (num_tensorcores_per_device, target_mxu_rows_per_grid_step)."""
    kind = ""
    devs = jax.devices()
    if devs:
        kind = devs[0].device_kind.lower()
    num_tc = 2 if "v7" in kind else 1            # v7x: 2 TCs behind one device
    target_rows = 128 if "v5" in kind else 256   # v5e MXU 128-wide; v6e/v7x 256
    return num_tc, target_rows


def _pick_block_batch(B, S, num_tc, target_rows):
    """Largest divisor of B giving ~target MXU rows per grid step; only force
    >= num_tc grid steps when there is a second TensorCore to feed (v7x)."""
    bt = max(1, min(B, max(1, target_rows // max(S, 1))))
    while B % bt:
        bt -= 1
    while num_tc > 1 and bt > 1 and B // bt < num_tc:
        bt -= 1
        while B % bt:
            bt -= 1
    return bt


def _grid_invariant_spec_kwargs():
    """pipeline_mode=pl.Buffered(1) for grid-invariant operands when supported.

    Narrow build-time feature check (constructs a throwaway BlockSpec only);
    never wraps an executed kernel call, so real lowering/runtime errors are
    not masked and the kernel is never silently re-run."""
    if not hasattr(pl, "Buffered"):
        return {}
    try:
        mode = pl.Buffered(1)
        pl.BlockSpec((8, 128), lambda i: (0, 0), pipeline_mode=mode)
    except (TypeError, ValueError):
        return {}
    return {"pipeline_mode": mode}


def prepare_params(params, num_heads):
    """One-time weight prep: fold the attention scale into Q, fuse Q|K|V, and
    cast the MXU weights to bf16 (biases stay f32)."""
    WqT, WkT, WvT, WoT, bq, bk, bv, bo = params
    D = WqT.shape[0]
    Dh = D // num_heads
    scale = 1.0 / (Dh ** 0.5)
    wqkv = jnp.concatenate([WqT * scale, WkT, WvT], axis=1).astype(jnp.bfloat16)
    bqkv = jnp.concatenate([bq * scale, bk, bv], axis=1).astype(jnp.float32)
    return wqkv, WoT.astype(jnp.bfloat16), bqkv, bo.astype(jnp.float32)


@functools.partial(jax.jit, static_argnames=("num_layers", "num_heads", "block_batch"))
def transformer_encoder(src_sbd, prepared_params, *, num_layers, num_heads,
                        block_batch=None):
    """src_sbd: [S, B, D] f32 (PyTorch [num_imgs, batch, dim] layout).
    prepared_params: output of prepare_params().  Returns [S, B, D] f32."""
    S, B, D = src_sbd.shape
    assert D % num_heads == 0, "d_model must be divisible by num_heads"
    wqkv, wo, bqkv, bo = prepared_params

    # Kernel works on [B, S, D]; the transposes run under this jit.
    # TODO(synk): consume [S, B, D] blocks directly to drop these HBM passes.
    x = jnp.transpose(src_sbd, (1, 0, 2))

    num_tc, target_rows = _tpu_generation_hints()
    Bt = block_batch if block_batch is not None else _pick_block_batch(
        B, S, num_tc, target_rows)
    grid = (B // Bt,)

    kernel = functools.partial(_encoder_kernel,
                               num_layers=num_layers, num_heads=num_heads)
    wkw = _grid_invariant_spec_kwargs()

    out = pl.pallas_call(
        kernel,
        out_shape=jax.ShapeDtypeStruct((B, S, D), jnp.float32),
        grid_spec=pltpu.PrefetchScalarGridSpec(
            num_scalar_prefetch=0,
            grid=grid,
            in_specs=[
                pl.BlockSpec((Bt, S, D), lambda b: (b, 0, 0)),        # x block
                pl.BlockSpec((D, 3 * D), lambda b: (0, 0), **wkw),    # Wqkv (bf16)
                pl.BlockSpec((D, D), lambda b: (0, 0), **wkw),        # Wo   (bf16)
                pl.BlockSpec((1, 3 * D), lambda b: (0, 0), **wkw),    # bqkv (f32)
                pl.BlockSpec((1, D), lambda b: (0, 0), **wkw),        # bo   (f32)
            ],
            out_specs=pl.BlockSpec((Bt, S, D), lambda b: (b, 0, 0)),
        ),
        compiler_params=pltpu.CompilerParams(
            dimension_semantics=("parallel",),
            vmem_limit_bytes=32 * 1024 * 1024),
    )(x, wqkv, wo, bqkv, bo)

    return jnp.transpose(out, (1, 0, 2))


def reference_encoder(src_sbd, prepared_params, *, num_layers, num_heads):
    """Pure-JAX reference mirroring the kernel's bf16-MXU / f32-accumulate math."""
    wqkv, wo, bqkv, bo = prepared_params
    S, B, D = src_sbd.shape
    H = num_heads
    Dh = D // H
    f32, bf16 = jnp.float32, jnp.bfloat16

    x = jnp.transpose(src_sbd, (1, 0, 2)).astype(f32)   # [B, S, D]
    for _ in range(num_layers):
        qkv = jnp.einsum('bsd,de->bse', x.astype(bf16), wqkv,
                         preferred_element_type=f32) + bqkv
        q, k, v = qkv[..., :D], qkv[..., D:2 * D], qkv[..., 2 * D:]
        qh = q.reshape(B, S, H, Dh).astype(bf16)          # scale already folded
        kh = k.reshape(B, S, H, Dh).astype(bf16)
        vh = v.reshape(B, S, H, Dh).astype(bf16)
        s = jnp.einsum('bqhd,bkhd->bhqk', qh, kh, preferred_element_type=f32)
        p = jax.nn.softmax(s, axis=-1)
        ctx = jnp.einsum('bhqk,bkhd->bqhd', p.astype(bf16), vh,
                         preferred_element_type=f32)
        attn = jnp.einsum('bsd,de->bse', ctx.reshape(B, S, D).astype(bf16), wo,
                          preferred_element_type=f32) + bo
        xr = x + attn
        mu = jnp.mean(xr, axis=1, keepdims=True)
        var = jnp.mean((xr - mu) ** 2, axis=1, keepdims=True)
        x = jnp.maximum((xr - mu) * lax.rsqrt(var + 1e-5), 0.0)
    return jnp.transpose(x, (1, 0, 2))


def init_params(key, d_model):
    ks = jax.random.split(key, 8)
    sc = 1.0 / jnp.sqrt(d_model).astype(jnp.float32)
    WqT = jax.random.normal(ks[0], (d_model, d_model), jnp.float32) * sc
    WkT = jax.random.normal(ks[1], (d_model, d_model), jnp.float32) * sc
    WvT = jax.random.normal(ks[2], (d_model, d_model), jnp.float32) * sc
    WoT = jax.random.normal(ks[3], (d_model, d_model), jnp.float32) * sc
    bq = jax.random.normal(ks[4], (1, d_model), jnp.float32) * 0.01
    bk = jax.random.normal(ks[5], (1, d_model), jnp.float32) * 0.01
    bv = jax.random.normal(ks[6], (1, d_model), jnp.float32) * 0.01
    bo = jax.random.normal(ks[7], (1, d_model), jnp.float32) * 0.01
    return (WqT, WkT, WvT, WoT, bq, bk, bv, bo)


if __name__ == "__main__":
    # src is [num_imgs(seq), batch, d_model]. D=128 keeps output stores lane-
    # dense; S multiple of 8 keeps the in-kernel (Bt,S,*) reshapes free.
    S, B, D = 16, 4, 128
    NUM_HEADS = 4
    NUM_LAYERS = 2   # module default is 6; kept small for the demo (weights shared anyway)

    key = jax.random.PRNGKey(0)
    k_src, k_par = jax.random.split(key)
    src = jax.random.normal(k_src, (S, B, D), jnp.float32)
    params = prepare_params(init_params(k_par, D), NUM_HEADS)

    out = transformer_encoder(src, params, num_layers=NUM_LAYERS, num_heads=NUM_HEADS)
    out = jax.block_until_ready(out)   # demo-only; library path does not block

    ref = reference_encoder(src, params, num_layers=NUM_LAYERS, num_heads=NUM_HEADS)
    assert out.shape == (S, B, D)
    # bf16 MXU operands + approx softmax reciprocal -> modest tolerance.
    assert jnp.allclose(out, ref, atol=1e-2, rtol=1e-2), "mismatch vs pure-JAX reference"

    # TODO(synk): self_posembed / query_pos path (pos-embed MLP) not exercised; module default is None.
    print("KERNEL_OK")
</pallas_src>

<mosaic_0001>
module attributes {stable_mosaic.version = 11 : i64} {
  func.func @_encoder_kernel(%arg0: i32, %arg1: memref<4x16x128xf32, #tpu.memory_space<vmem>>, %arg2: memref<128x384xbf16, #tpu.memory_space<vmem>>, %arg3: memref<128x128xbf16, #tpu.memory_space<vmem>>, %arg4: memref<1x384xf32, #tpu.memory_space<vmem>>, %arg5: memref<1x128xf32, #tpu.memory_space<vmem>>, %arg6: memref<4x16x128xf32, #tpu.memory_space<vmem>>) attributes {dimension_semantics = [#tpu.dimension_semantics<parallel>], iteration_bounds = array<i64: 1>, scalar_prefetch = 0 : i64, scratch_operands = 0 : i64, tpu.core_type = #tpu.core_type<tc>, window_params = [{transform_indices = @transform_0, window_bounds = array<i64: 4, 16, 128>}, {pipeline_mode = #tpu.pipeline_mode<synchronous>, transform_indices = @transform_1, window_bounds = array<i64: 128, 384>}, {pipeline_mode = #tpu.pipeline_mode<synchronous>, transform_indices = @transform_2, window_bounds = array<i64: 128, 128>}, {pipeline_mode = #tpu.pipeline_mode<synchronous>, transform_indices = @transform_3, window_bounds = array<i64: 1, 384>}, {pipeline_mode = #tpu.pipeline_mode<synchronous>, transform_indices = @transform_4, window_bounds = array<i64: 1, 128>}, {transform_indices = @transform_5, window_bounds = array<i64: 4, 16, 128>}]} {
    %c0 = arith.constant 0 : index
    %c0_0 = arith.constant 0 : index
    %0 = vector.load %arg2[%c0, %c0_0] : memref<128x384xbf16, #tpu.memory_space<vmem>>, vector<128x384xbf16>
    %c0_1 = arith.constant 0 : index
    %c0_2 = arith.constant 0 : index
    %1 = vector.load %arg3[%c0_1, %c0_2] : memref<128x128xbf16, #tpu.memory_space<vmem>>, vector<128x128xbf16>
    %c0_3 = arith.constant 0 : index
    %c0_4 = arith.constant 0 : index
    %2 = vector.load %arg4[%c0_3, %c0_4] : memref<1x384xf32, #tpu.memory_space<vmem>>, vector<1x384xf32>
    %c0_5 = arith.constant 0 : index
    %c0_6 = arith.constant 0 : index
    %3 = vector.load %arg5[%c0_5, %c0_6] : memref<1x128xf32, #tpu.memory_space<vmem>>, vector<1x128xf32>
    %c0_7 = arith.constant 0 : index
    %c0_8 = arith.constant 0 : index
    %c0_9 = arith.constant 0 : index
    %4 = vector.load %arg1[%c0_7, %c0_8, %c0_9] : memref<4x16x128xf32, #tpu.memory_space<vmem>>, vector<4x16x128xf32>
    %c0_i32 = arith.constant 0 : i32
    %5 = vector.shape_cast %4 : vector<4x16x128xf32> to vector<64x128xf32>
    %6 = arith.truncf %5 : vector<64x128xf32> to vector<64x128xbf16>
    %cst = arith.constant dense<0.000000e+00> : vector<64x384xf32>
    %7 = tpu.matmul %6, %0, %cst {dimension_numbers = #tpu.dot_dimension_numbers<[1], [0], [0], [1], [0, 0, 1, 1], [], []>} : vector<64x128xbf16>, vector<128x384xbf16>, vector<64x384xf32> -> vector<64x384xf32>
    %8 = vector.broadcast %2 : vector<1x384xf32> to vector<64x384xf32>
    %9 = arith.addf %7, %8 : vector<64x384xf32>
    %10 = vector.shape_cast %9 : vector<64x384xf32> to vector<4x16x384xf32>
    %cst_10 = arith.constant 0.000000e+00 : f32
    %11 = vector.broadcast %cst_10 : f32 to vector<64x128xf32>
    %12 = vector.extract_strided_slice %10 {offsets = [0, 0, 0], sizes = [4, 16, 32], strides = [1, 1, 1]} : vector<4x16x384xf32> to vector<4x16x32xf32>
    %13 = arith.truncf %12 : vector<4x16x32xf32> to vector<4x16x32xbf16>
    %14 = vector.extract_strided_slice %10 {offsets = [0, 0, 128], sizes = [4, 16, 32], strides = [1, 1, 1]} : vector<4x16x384xf32> to vector<4x16x32xf32>
    %15 = arith.truncf %14 : vector<4x16x32xf32> to vector<4x16x32xbf16>
    %16 = vector.extract_strided_slice %10 {offsets = [0, 0, 256], sizes = [4, 16, 32], strides = [1, 1, 1]} : vector<4x16x384xf32> to vector<4x16x32xf32>
    %17 = arith.truncf %16 : vector<4x16x32xf32> to vector<4x16x32xbf16>
    "tpu.trace_start"() <{level = 10 : i32, message = "bqd,bkd->bqk"}> : () -> ()
    %cst_11 = arith.constant dense<0.000000e+00> : vector<4x16x16xf32>
    %18 = tpu.matmul %13, %15, %cst_11 {dimension_numbers = #tpu.dot_dimension_numbers<[2], [2], [1], [1], [0, 0, 0, 1, 1, 1], [0], [0]>} : vector<4x16x32xbf16>, vector<4x16x32xbf16>, vector<4x16x16xf32> -> vector<4x16x16xf32>
    "tpu.trace_stop"() : () -> ()
    %cst_12 = arith.constant dense<0xFF800000> : vector<4x16xf32>
    %19 = vector.multi_reduction <maximumf>, %18, %cst_12 [2] : vector<4x16x16xf32> to vector<4x16xf32>
    %20 = vector.shape_cast %19 : vector<4x16xf32> to vector<4x16x1xf32>
    %21 = vector.broadcast %20 : vector<4x16x1xf32> to vector<4x16x16xf32>
    %22 = arith.subf %18, %21 : vector<4x16x16xf32>
    %23 = math.exp %22 : vector<4x16x16xf32>
    %cst_13 = arith.constant dense<0.000000e+00> : vector<4x16xf32>
    %24 = vector.multi_reduction <add>, %23, %cst_13 [2] : vector<4x16x16xf32> to vector<4x16xf32>
    %25 = vector.shape_cast %24 : vector<4x16xf32> to vector<4x16x1xf32>
    %26 = tpu.reciprocal %25 {approx = true} : vector<4x16x1xf32> -> vector<4x16x1xf32>
    %27 = vector.broadcast %26 : vector<4x16x1xf32> to vector<4x16x16xf32>
    %28 = arith.mulf %23, %27 : vector<4x16x16xf32>
    %29 = arith.truncf %28 : vector<4x16x16xf32> to vector<4x16x16xbf16>
    "tpu.trace_start"() <{level = 10 : i32, message = "bqk,bkd->bqd"}> : () -> ()
    %cst_14 = arith.constant dense<0.000000e+00> : vector<4x16x32xf32>
    %30 = tpu.matmul %29, %17, %cst_14 {dimension_numbers = #tpu.dot_dimension_numbers<[2], [1], [1], [2], [0, 0, 0, 1, 1, 2], [0], [0]>} : vector<4x16x16xbf16>, vector<4x16x32xbf16>, vector<4x16x32xf32> -> vector<4x16x32xf32>
    "tpu.trace_stop"() : () -> ()
    %31 = vector.shape_cast %30 : vector<4x16x32xf32> to vector<64x32xf32>
    %32 = arith.truncf %31 : vector<64x32xf32> to vector<64x32xbf16>
    %33 = vector.extract_strided_slice %1 {offsets = [0, 0], sizes = [32, 128], strides = [1, 1]} : vector<128x128xbf16> to vector<32x128xbf16>
    %cst_15 = arith.constant dense<0.000000e+00> : vector<64x128xf32>
    %34 = tpu.matmul %32, %33, %cst_15 {dimension_numbers = #tpu.dot_dimension_numbers<[1], [0], [0], [1], [0, 0, 1, 1], [], []>} : vector<64x32xbf16>, vector<32x128xbf16>, vector<64x128xf32> -> vector<64x128xf32>
    %35 = arith.addf %11, %34 : vector<64x128xf32>
    %36 = vector.extract_strided_slice %10 {offsets = [0, 0, 32], sizes = [4, 16, 32], strides = [1, 1, 1]} : vector<4x16x384xf32> to vector<4x16x32xf32>
    %37 = arith.truncf %36 : vector<4x16x32xf32> to vector<4x16x32xbf16>
    %38 = vector.extract_strided_slice %10 {offsets = [0, 0, 160], sizes = [4, 16, 32], strides = [1, 1, 1]} : vector<4x16x384xf32> to vector<4x16x32xf32>
    %39 = arith.truncf %38 : vector<4x16x32xf32> to vector<4x16x32xbf16>
    %40 = vector.extract_strided_slice %10 {offsets = [0, 0, 288], sizes = [4, 16, 32], strides = [1, 1, 1]} : vector<4x16x384xf32> to vector<4x16x32xf32>
    %41 = arith.truncf %40 : vector<4x16x32xf32> to vector<4x16x32xbf16>
    "tpu.trace_start"() <{level = 10 : i32, message = "bqd,bkd->bqk"}> : () -> ()
    %cst_16 = arith.constant dense<0.000000e+00> : vector<4x16x16xf32>
    %42 = tpu.matmul %37, %39, %cst_16 {dimension_numbers = #tpu.dot_dimension_numbers<[2], [2], [1], [1], [0, 0, 0, 1, 1, 1], [0], [0]>} : vector<4x16x32xbf16>, vector<4x16x32xbf16>, vector<4x16x16xf32> -> vector<4x16x16xf32>
    "tpu.trace_stop"() : () -> ()
    %cst_17 = arith.constant dense<0xFF800000> : vector<4x16xf32>
    %43 = vector.multi_reduction <maximumf>, %42, %cst_17 [2] : vector<4x16x16xf32> to vector<4x16xf32>
    %44 = vector.shape_cast %43 : vector<4x16xf32> to vector<4x16x1xf32>
    %45 = vector.broadcast %44 : vector<4x16x1xf32> to vector<4x16x16xf32>
    %46 = arith.subf %42, %45 : vector<4x16x16xf32>
    %47 = math.exp %46 : vector<4x16x16xf32>
    %cst_18 = arith.constant dense<0.000000e+00> : vector<4x16xf32>
    %48 = vector.multi_reduction <add>, %47, %cst_18 [2] : vector<4x16x16xf32> to vector<4x16xf32>
    %49 = vector.shape_cast %48 : vector<4x16xf32> to vector<4x16x1xf32>
    %50 = tpu.reciprocal %49 {approx = true} : vector<4x16x1xf32> -> vector<4x16x1xf32>
    %51 = vector.broadcast %50 : vector<4x16x1xf32> to vector<4x16x16xf32>
    %52 = arith.mulf %47, %51 : vector<4x16x16xf32>
    %53 = arith.truncf %52 : vector<4x16x16xf32> to vector<4x16x16xbf16>
    "tpu.trace_start"() <{level = 10 : i32, message = "bqk,bkd->bqd"}> : () -> ()
    %cst_19 = arith.constant dense<0.000000e+00> : vector<4x16x32xf32>
    %54 = tpu.matmul %53, %41, %cst_19 {dimension_numbers = #tpu.dot_dimension_numbers<[2], [1], [1], [2], [0, 0, 0, 1, 1, 2], [0], [0]>} : vector<4x16x16xbf16>, vector<4x16x32xbf16>, vector<4x16x32xf32> -> vector<4x16x32xf32>
    "tpu.trace_stop"() : () -> ()
    %55 = vector.shape_cast %54 : vector<4x16x32xf32> to vector<64x32xf32>
    %56 = arith.truncf %55 : vector<64x32xf32> to vector<64x32xbf16>
    %57 = vector.extract_strided_slice %1 {offsets = [32, 0], sizes = [32, 128], strides = [1, 1]} : vector<128x128xbf16> to vector<32x128xbf16>
    %cst_20 = arith.constant dense<0.000000e+00> : vector<64x128xf32>
    %58 = tpu.matmul %56, %57, %cst_20 {dimension_numbers = #tpu.dot_dimension_numbers<[1], [0], [0], [1], [0, 0, 1, 1], [], []>} : vector<64x32xbf16>, vector<32x128xbf16>, vector<64x128xf32> -> vector<64x128xf32>
    %59 = arith.addf %35, %58 : vector<64x128xf32>
    %60 = vector.extract_strided_slice %10 {offsets = [0, 0, 64], sizes = [4, 16, 32], strides = [1, 1, 1]} : vector<4x16x384xf32> to vector<4x16x32xf32>
    %61 = arith.truncf %60 : vector<4x16x32xf32> to vector<4x16x32xbf16>
    %62 = vector.extract_strided_slice %10 {offsets = [0, 0, 192], sizes = [4, 16, 32], strides = [1, 1, 1]} : vector<4x16x384xf32> to vector<4x16x32xf32>
    %63 = arith.truncf %62 : vector<4x16x32xf32> to vector<4x16x32xbf16>
    %64 = vector.extract_strided_slice %10 {offsets = [0, 0, 320], sizes = [4, 16, 32], strides = [1, 1, 1]} : vector<4x16x384xf32> to vector<4x16x32xf32>
    %65 = arith.truncf %64 : vector<4x16x32xf32> to vector<4x16x32xbf16>
    "tpu.trace_start"() <{level = 10 : i32, message = "bqd,bkd->bqk"}> : () -> ()
    %cst_21 = arith.constant dense<0.000000e+00> : vector<4x16x16xf32>
    %66 = tpu.matmul %61, %63, %cst_21 {dimension_numbers = #tpu.dot_dimension_numbers<[2], [2], [1], [1], [0, 0, 0, 1, 1, 1], [0], [0]>} : vector<4x16x32xbf16>, vector<4x16x32xbf16>, vector<4x16x16xf32> -> vector<4x16x16xf32>
    "tpu.trace_stop"() : () -> ()
    %cst_22 = arith.constant dense<0xFF800000> : vector<4x16xf32>
    %67 = vector.multi_reduction <maximumf>, %66, %cst_22 [2] : vector<4x16x16xf32> to vector<4x16xf32>
    %68 = vector.shape_cast %67 : vector<4x16xf32> to vector<4x16x1xf32>
    %69 = vector.broadcast %68 : vector<4x16x1xf32> to vector<4x16x16xf32>
    %70 = arith.subf %66, %69 : vector<4x16x16xf32>
    %71 = math.exp %70 : vector<4x16x16xf32>
    %cst_23 = arith.constant dense<0.000000e+00> : vector<4x16xf32>
    %72 = vector.multi_reduction <add>, %71, %cst_23 [2] : vector<4x16x16xf32> to vector<4x16xf32>
    %73 = vector.shape_cast %72 : vector<4x16xf32> to vector<4x16x1xf32>
    %74 = tpu.reciprocal %73 {approx = true} : vector<4x16x1xf32> -> vector<4x16x1xf32>
    %75 = vector.broadcast %74 : vector<4x16x1xf32> to vector<4x16x16xf32>
    %76 = arith.mulf %71, %75 : vector<4x16x16xf32>
    %77 = arith.truncf %76 : vector<4x16x16xf32> to vector<4x16x16xbf16>
    "tpu.trace_start"() <{level = 10 : i32, message = "bqk,bkd->bqd"}> : () -> ()
    %cst_24 = arith.constant dense<0.000000e+00> : vector<4x16x32xf32>
    %78 = tpu.matmul %77, %65, %cst_24 {dimension_numbers = #tpu.dot_dimension_numbers<[2], [1], [1], [2], [0, 0, 0, 1, 1, 2], [0], [0]>} : vector<4x16x16xbf16>, vector<4x16x32xbf16>, vector<4x16x32xf32> -> vector<4x16x32xf32>
    "tpu.trace_stop"() : () -> ()
    %79 = vector.shape_cast %78 : vector<4x16x32xf32> to vector<64x32xf32>
    %80 = arith.truncf %79 : vector<64x32xf32> to vector<64x32xbf16>
    %81 = vector.extract_strided_slice %1 {offsets = [64, 0], sizes = [32, 128], strides = [1, 1]} : vector<128x128xbf16> to vector<32x128xbf16>
    %cst_25 = arith.constant dense<0.000000e+00> : vector<64x128xf32>
    %82 = tpu.matmul %80, %81, %cst_25 {dimension_numbers = #tpu.dot_dimension_numbers<[1], [0], [0], [1], [0, 0, 1, 1], [], []>} : vector<64x32xbf16>, vector<32x128xbf16>, vector<64x128xf32> -> vector<64x128xf32>
    %83 = arith.addf %59, %82 : vector<64x128xf32>
    %84 = vector.extract_strided_slice %10 {offsets = [0, 0, 96], sizes = [4, 16, 32], strides = [1, 1, 1]} : vector<4x16x384xf32> to vector<4x16x32xf32>
    %85 = arith.truncf %84 : vector<4x16x32xf32> to vector<4x16x32xbf16>
    %86 = vector.extract_strided_slice %10 {offsets = [0, 0, 224], sizes = [4, 16, 32], strides = [1, 1, 1]} : vector<4x16x384xf32> to vector<4x16x32xf32>
    %87 = arith.truncf %86 : vector<4x16x32xf32> to vector<4x16x32xbf16>
    %88 = vector.extract_strided_slice %10 {offsets = [0, 0, 352], sizes = [4, 16, 32], strides = [1, 1, 1]} : vector<4x16x384xf32> to vector<4x16x32xf32>
    %89 = arith.truncf %88 : vector<4x16x32xf32> to vector<4x16x32xbf16>
    "tpu.trace_start"() <{level = 10 : i32, message = "bqd,bkd->bqk"}> : () -> ()
    %cst_26 = arith.constant dense<0.000000e+00> : vector<4x16x16xf32>
    %90 = tpu.matmul %85, %87, %cst_26 {dimension_numbers = #tpu.dot_dimension_numbers<[2], [2], [1], [1], [0, 0, 0, 1, 1, 1], [0], [0]>} : vector<4x16x32xbf16>, vector<4x16x32xbf16>, vector<4x16x16xf32> -> vector<4x16x16xf32>
    "tpu.trace_stop"() : () -> ()
    %cst_27 = arith.constant dense<0xFF800000> : vector<4x16xf32>
    %91 = vector.multi_reduction <maximumf>, %90, %cst_27 [2] : vector<4x16x16xf32> to vector<4x16xf32>
    %92 = vector.shape_cast %91 : vector<4x16xf32> to vector<4x16x1xf32>
    %93 = vector.broadcast %92 : vector<4x16x1xf32> to vector<4x16x16xf32>
    %94 = arith.subf %90, %93 : vector<4x16x16xf32>
    %95 = math.exp %94 : vector<4x16x16xf32>
    %cst_28 = arith.constant dense<0.000000e+00> : vector<4x16xf32>
    %96 = vector.multi_reduction <add>, %95, %cst_28 [2] : vector<4x16x16xf32> to vector<4x16xf32>
    %97 = vector.shape_cast %96 : vector<4x16xf32> to vector<4x16x1xf32>
    %98 = tpu.reciprocal %97 {approx = true} : vector<4x16x1xf32> -> vector<4x16x1xf32>
    %99 = vector.broadcast %98 : vector<4x16x1xf32> to vector<4x16x16xf32>
    %100 = arith.mulf %95, %99 : vector<4x16x16xf32>
    %101 = arith.truncf %100 : vector<4x16x16xf32> to vector<4x16x16xbf16>
    "tpu.trace_start"() <{level = 10 : i32, message = "bqk,bkd->bqd"}> : () -> ()
    %cst_29 = arith.constant dense<0.000000e+00> : vector<4x16x32xf32>
    %102 = tpu.matmul %101, %89, %cst_29 {dimension_numbers = #tpu.dot_dimension_numbers<[2], [1], [1], [2], [0, 0, 0, 1, 1, 2], [0], [0]>} : vector<4x16x16xbf16>, vector<4x16x32xbf16>, vector<4x16x32xf32> -> vector<4x16x32xf32>
    "tpu.trace_stop"() : () -> ()
    %103 = vector.shape_cast %102 : vector<4x16x32xf32> to vector<64x32xf32>
    %104 = arith.truncf %103 : vector<64x32xf32> to vector<64x32xbf16>
    %105 = vector.extract_strided_slice %1 {offsets = [96, 0], sizes = [32, 128], strides = [1, 1]} : vector<128x128xbf16> to vector<32x128xbf16>
    %cst_30 = arith.constant dense<0.000000e+00> : vector<64x128xf32>
    %106 = tpu.matmul %104, %105, %cst_30 {dimension_numbers = #tpu.dot_dimension_numbers<[1], [0], [0], [1], [0, 0, 1, 1], [], []>} : vector<64x32xbf16>, vector<32x128xbf16>, vector<64x128xf32> -> vector<64x128xf32>
    %107 = arith.addf %83, %106 : vector<64x128xf32>
    %108 = vector.broadcast %3 : vector<1x128xf32> to vector<64x128xf32>
    %109 = arith.addf %107, %108 : vector<64x128xf32>
    %110 = vector.shape_cast %109 : vector<64x128xf32> to vector<4x16x128xf32>
    %111 = arith.addf %4, %110 : vector<4x16x128xf32>
    %cst_31 = arith.constant dense<0.000000e+00> : vector<4x128xf32>
    %112 = vector.multi_reduction <add>, %111, %cst_31 [1] : vector<4x16x128xf32> to vector<4x128xf32>
    %113 = vector.shape_cast %112 : vector<4x128xf32> to vector<4x1x128xf32>
    %cst_32 = arith.constant 1.600000e+01 : f32
    %114 = vector.broadcast %cst_32 : f32 to vector<4x1x128xf32>
    %115 = arith.divf %113, %114 : vector<4x1x128xf32>
    %116 = vector.broadcast %115 : vector<4x1x128xf32> to vector<4x16x128xf32>
    %117 = arith.subf %111, %116 : vector<4x16x128xf32>
    %118 = arith.mulf %117, %117 : vector<4x16x128xf32>
    %cst_33 = arith.constant dense<0.000000e+00> : vector<4x128xf32>
    %119 = vector.multi_reduction <add>, %118, %cst_33 [1] : vector<4x16x128xf32> to vector<4x128xf32>
    %120 = vector.shape_cast %119 : vector<4x128xf32> to vector<4x1x128xf32>
    %cst_34 = arith.constant 1.600000e+01 : f32
    %121 = vector.broadcast %cst_34 : f32 to vector<4x1x128xf32>
    %122 = arith.divf %120, %121 : vector<4x1x128xf32>
    %123 = vector.broadcast %115 : vector<4x1x128xf32> to vector<4x16x128xf32>
    %124 = arith.subf %111, %123 : vector<4x16x128xf32>
    %cst_35 = arith.constant 9.99999974E-6 : f32
    %125 = vector.broadcast %cst_35 : f32 to vector<4x1x128xf32>
    %126 = arith.addf %122, %125 : vector<4x1x128xf32>
    %127 = math.rsqrt %126 : vector<4x1x128xf32>
    %128 = vector.broadcast %127 : vector<4x1x128xf32> to vector<4x16x128xf32>
    %129 = arith.mulf %124, %128 : vector<4x16x128xf32>
    %cst_36 = arith.constant 0.000000e+00 : f32
    %130 = vector.broadcast %cst_36 : f32 to vector<4x16x128xf32>
    %131 = arith.maximumf %129, %130 : vector<4x16x128xf32>
    %c1_i32 = arith.constant 1 : i32
    %132 = vector.shape_cast %131 : vector<4x16x128xf32> to vector<64x128xf32>
    %133 = arith.truncf %132 : vector<64x128xf32> to vector<64x128xbf16>
    %cst_37 = arith.constant dense<0.000000e+00> : vector<64x384xf32>
    %134 = tpu.matmul %133, %0, %cst_37 {dimension_numbers = #tpu.dot_dimension_numbers<[1], [0], [0], [1], [0, 0, 1, 1], [], []>} : vector<64x128xbf16>, vector<128x384xbf16>, vector<64x384xf32> -> vector<64x384xf32>
    %135 = vector.broadcast %2 : vector<1x384xf32> to vector<64x384xf32>
    %136 = arith.addf %134, %135 : vector<64x384xf32>
    %137 = vector.shape_cast %136 : vector<64x384xf32> to vector<4x16x384xf32>
    %cst_38 = arith.constant 0.000000e+00 : f32
    %138 = vector.broadcast %cst_38 : f32 to vector<64x128xf32>
    %139 = vector.extract_strided_slice %137 {offsets = [0, 0, 0], sizes = [4, 16, 32], strides = [1, 1, 1]} : vector<4x16x384xf32> to vector<4x16x32xf32>
    %140 = arith.truncf %139 : vector<4x16x32xf32> to vector<4x16x32xbf16>
    %141 = vector.extract_strided_slice %137 {offsets = [0, 0, 128], sizes = [4, 16, 32], strides = [1, 1, 1]} : vector<4x16x384xf32> to vector<4x16x32xf32>
    %142 = arith.truncf %141 : vector<4x16x32xf32> to vector<4x16x32xbf16>
    %143 = vector.extract_strided_slice %137 {offsets = [0, 0, 256], sizes = [4, 16, 32], strides = [1, 1, 1]} : vector<4x16x384xf32> to vector<4x16x32xf32>
    %144 = arith.truncf %143 : vector<4x16x32xf32> to vector<4x16x32xbf16>
    "tpu.trace_start"() <{level = 10 : i32, message = "bqd,bkd->bqk"}> : () -> ()
    %cst_39 = arith.constant dense<0.000000e+00> : vector<4x16x16xf32>
    %145 = tpu.matmul %140, %142, %cst_39 {dimension_numbers = #tpu.dot_dimension_numbers<[2], [2], [1], [1], [0, 0, 0, 1, 1, 1], [0], [0]>} : vector<4x16x32xbf16>, vector<4x16x32xbf16>, vector<4x16x16xf32> -> vector<4x16x16xf32>
    "tpu.trace_stop"() : () -> ()
    %cst_40 = arith.constant dense<0xFF800000> : vector<4x16xf32>
    %146 = vector.multi_reduction <maximumf>, %145, %cst_40 [2] : vector<4x16x16xf32> to vector<4x16xf32>
    %147 = vector.shape_cast %146 : vector<4x16xf32> to vector<4x16x1xf32>
    %148 = vector.broadcast %147 : vector<4x16x1xf32> to vector<4x16x16xf32>
    %149 = arith.subf %145, %148 : vector<4x16x16xf32>
    %150 = math.exp %149 : vector<4x16x16xf32>
    %cst_41 = arith.constant dense<0.000000e+00> : vector<4x16xf32>
    %151 = vector.multi_reduction <add>, %150, %cst_41 [2] : vector<4x16x16xf32> to vector<4x16xf32>
    %152 = vector.shape_cast %151 : vector<4x16xf32> to vector<4x16x1xf32>
    %153 = tpu.reciprocal %152 {approx = true} : vector<4x16x1xf32> -> vector<4x16x1xf32>
    %154 = vector.broadcast %153 : vector<4x16x1xf32> to vector<4x16x16xf32>
    %155 = arith.mulf %150, %154 : vector<4x16x16xf32>
    %156 = arith.truncf %155 : vector<4x16x16xf32> to vector<4x16x16xbf16>
    "tpu.trace_start"() <{level = 10 : i32, message = "bqk,bkd->bqd"}> : () -> ()
    %cst_42 = arith.constant dense<0.000000e+00> : vector<4x16x32xf32>
    %157 = tpu.matmul %156, %144, %cst_42 {dimension_numbers = #tpu.dot_dimension_numbers<[2], [1], [1], [2], [0, 0, 0, 1, 1, 2], [0], [0]>} : vector<4x16x16xbf16>, vector<4x16x32xbf16>, vector<4x16x32xf32> -> vector<4x16x32xf32>
    "tpu.trace_stop"() : () -> ()
    %158 = vector.shape_cast %157 : vector<4x16x32xf32> to vector<64x32xf32>
    %159 = arith.truncf %158 : vector<64x32xf32> to vector<64x32xbf16>
    %160 = vector.extract_strided_slice %1 {offsets = [0, 0], sizes = [32, 128], strides = [1, 1]} : vector<128x128xbf16> to vector<32x128xbf16>
    %cst_43 = arith.constant dense<0.000000e+00> : vector<64x128xf32>
    %161 = tpu.matmul %159, %160, %cst_43 {dimension_numbers = #tpu.dot_dimension_numbers<[1], [0], [0], [1], [0, 0, 1, 1], [], []>} : vector<64x32xbf16>, vector<32x128xbf16>, vector<64x128xf32> -> vector<64x128xf32>
    %162 = arith.addf %138, %161 : vector<64x128xf32>
    %163 = vector.extract_strided_slice %137 {offsets = [0, 0, 32], sizes = [4, 16, 32], strides = [1, 1, 1]} : vector<4x16x384xf32> to vector<4x16x32xf32>
    %164 = arith.truncf %163 : vector<4x16x32xf32> to vector<4x16x32xbf16>
    %165 = vector.extract_strided_slice %137 {offsets = [0, 0, 160], sizes = [4, 16, 32], strides = [1, 1, 1]} : vector<4x16x384xf32> to vector<4x16x32xf32>
    %166 = arith.truncf %165 : vector<4x16x32xf32> to vector<4x16x32xbf16>
    %167 = vector.extract_strided_slice %137 {offsets = [0, 0, 288], sizes = [4, 16, 32], strides = [1, 1, 1]} : vector<4x16x384xf32> to vector<4x16x32xf32>
    %168 = arith.truncf %167 : vector<4x16x32xf32> to vector<4x16x32xbf16>
    "tpu.trace_start"() <{level = 10 : i32, message = "bqd,bkd->bqk"}> : () -> ()
    %cst_44 = arith.constant dense<0.000000e+00> : vector<4x16x16xf32>
    %169 = tpu.matmul %164, %166, %cst_44 {dimension_numbers = #tpu.dot_dimension_numbers<[2], [2], [1], [1], [0, 0, 0, 1, 1, 1], [0], [0]>} : vector<4x16x32xbf16>, vector<4x16x32xbf16>, vector<4x16x16xf32> -> vector<4x16x16xf32>
    "tpu.trace_stop"() : () -> ()
    %cst_45 = arith.constant dense<0xFF800000> : vector<4x16xf32>
    %170 = vector.multi_reduction <maximumf>, %169, %cst_45 [2] : vector<4x16x16xf32> to vector<4x16xf32>
    %171 = vector.shape_cast %170 : vector<4x16xf32> to vector<4x16x1xf32>
    %172 = vector.broadcast %171 : vector<4x16x1xf32> to vector<4x16x16xf32>
    %173 = arith.subf %169, %172 : vector<4x16x16xf32>
    %174 = math.exp %173 : vector<4x16x16xf32>
    %cst_46 = arith.constant dense<0.000000e+00> : vector<4x16xf32>
    %175 = vector.multi_reduction <add>, %174, %cst_46 [2] : vector<4x16x16xf32> to vector<4x16xf32>
    %176 = vector.shape_cast %175 : vector<4x16xf32> to vector<4x16x1xf32>
    %177 = tpu.reciprocal %176 {approx = true} : vector<4x16x1xf32> -> vector<4x16x1xf32>
    %178 = vector.broadcast %177 : vector<4x16x1xf32> to vector<4x16x16xf32>
    %179 = arith.mulf %174, %178 : vector<4x16x16xf32>
    %180 = arith.truncf %179 : vector<4x16x16xf32> to vector<4x16x16xbf16>
    "tpu.trace_start"() <{level = 10 : i32, message = "bqk,bkd->bqd"}> : () -> ()
    %cst_47 = arith.constant dense<0.000000e+00> : vector<4x16x32xf32>
    %181 = tpu.matmul %180, %168, %cst_47 {dimension_numbers = #tpu.dot_dimension_numbers<[2], [1], [1], [2], [0, 0, 0, 1, 1, 2], [0], [0]>} : vector<4x16x16xbf16>, vector<4x16x32xbf16>, vector<4x16x32xf32> -> vector<4x16x32xf32>
    "tpu.trace_stop"() : () -> ()
    %182 = vector.shape_cast %181 : vector<4x16x32xf32> to vector<64x32xf32>
    %183 = arith.truncf %182 : vector<64x32xf32> to vector<64x32xbf16>
    %184 = vector.extract_strided_slice %1 {offsets = [32, 0], sizes = [32, 128], strides = [1, 1]} : vector<128x128xbf16> to vector<32x128xbf16>
    %cst_48 = arith.constant dense<0.000000e+00> : vector<64x128xf32>
    %185 = tpu.matmul %183, %184, %cst_48 {dimension_numbers = #tpu.dot_dimension_numbers<[1], [0], [0], [1], [0, 0, 1, 1], [], []>} : vector<64x32xbf16>, vector<32x128xbf16>, vector<64x128xf32> -> vector<64x128xf32>
    %186 = arith.addf %162, %185 : vector<64x128xf32>
    %187 = vector.extract_strided_slice %137 {offsets = [0, 0, 64], sizes = [4, 16, 32], strides = [1, 1, 1]} : vector<4x16x384xf32> to vector<4x16x32xf32>
    %188 = arith.truncf %187 : vector<4x16x32xf32> to vector<4x16x32xbf16>
    %189 = vector.extract_strided_slice %137 {offsets = [0, 0, 192], sizes = [4, 16, 32], strides = [1, 1, 1]} : vector<4x16x384xf32> to vector<4x16x32xf32>
    %190 = arith.truncf %189 : vector<4x16x32xf32> to vector<4x16x32xbf16>
    %191 = vector.extract_strided_slice %137 {offsets = [0, 0, 320], sizes = [4, 16, 32], strides = [1, 1, 1]} : vector<4x16x384xf32> to vector<4x16x32xf32>
    %192 = arith.truncf %191 : vector<4x16x32xf32> to vector<4x16x32xbf16>
    "tpu.trace_start"() <{level = 10 : i32, message = "bqd,bkd->bqk"}> : () -> ()
    %cst_49 = arith.constant dense<0.000000e+00> : vector<4x16x16xf32>
    %193 = tpu.matmul %188, %190, %cst_49 {dimension_numbers = #tpu.dot_dimension_numbers<[2], [2], [1], [1], [0, 0, 0, 1, 1, 1], [0], [0]>} : vector<4x16x32xbf16>, vector<4x16x32xbf16>, vector<4x16x16xf32> -> vector<4x16x16xf32>
    "tpu.trace_stop"() : () -> ()
    %cst_50 = arith.constant dense<0xFF800000> : vector<4x16xf32>
    %194 = vector.multi_reduction <maximumf>, %193, %cst_50 [2] : vector<4x16x16xf32> to vector<4x16xf32>
    %195 = vector.shape_cast %194 : vector<4x16xf32> to vector<4x16x1xf32>
    %196 = vector.broadcast %195 : vector<4x16x1xf32> to vector<4x16x16xf32>
    %197 = arith.subf %193, %196 : vector<4x16x16xf32>
    %198 = math.exp %197 : vector<4x16x16xf32>
    %cst_51 = arith.constant dense<0.000000e+00> : vector<4x16xf32>
    %199 = vector.multi_reduction <add>, %198, %cst_51 [2] : vector<4x16x16xf32> to vector<4x16xf32>
    %200 = vector.shape_cast %199 : vector<4x16xf32> to vector<4x16x1xf32>
    %201 = tpu.reciprocal %200 {approx = true} : vector<4x16x1xf32> -> vector<4x16x1xf32>
    %202 = vector.broadcast %201 : vector<4x16x1xf32> to vector<4x16x16xf32>
    %203 = arith.mulf %198, %202 : vector<4x16x16xf32>
    %204 = arith.truncf %203 : vector<4x16x16xf32> to vector<4x16x16xbf16>
    "tpu.trace_start"() <{level = 10 : i32, message = "bqk,bkd->bqd"}> : () -> ()
    %cst_52 = arith.constant dense<0.000000e+00> : vector<4x16x32xf32>
    %205 = tpu.matmul %204, %192, %cst_52 {dimension_numbers = #tpu.dot_dimension_numbers<[2], [1], [1], [2], [0, 0, 0, 1, 1, 2], [0], [0]>} : vector<4x16x16xbf16>, vector<4x16x32xbf16>, vector<4x16x32xf32> -> vector<4x16x32xf32>
    "tpu.trace_stop"() : () -> ()
    %206 = vector.shape_cast %205 : vector<4x16x32xf32> to vector<64x32xf32>
    %207 = arith.truncf %206 : vector<64x32xf32> to vector<64x32xbf16>
    %208 = vector.extract_strided_slice %1 {offsets = [64, 0], sizes = [32, 128], strides = [1, 1]} : vector<128x128xbf16> to vector<32x128xbf16>
    %cst_53 = arith.constant dense<0.000000e+00> : vector<64x128xf32>
    %209 = tpu.matmul %207, %208, %cst_53 {dimension_numbers = #tpu.dot_dimension_numbers<[1], [0], [0], [1], [0, 0, 1, 1], [], []>} : vector<64x32xbf16>, vector<32x128xbf16>, vector<64x128xf32> -> vector<64x128xf32>
    %210 = arith.addf %186, %209 : vector<64x128xf32>
    %211 = vector.extract_strided_slice %137 {offsets = [0, 0, 96], sizes = [4, 16, 32], strides = [1, 1, 1]} : vector<4x16x384xf32> to vector<4x16x32xf32>
    %212 = arith.truncf %211 : vector<4x16x32xf32> to vector<4x16x32xbf16>
    %213 = vector.extract_strided_slice %137 {offsets = [0, 0, 224], sizes = [4, 16, 32], strides = [1, 1, 1]} : vector<4x16x384xf32> to vector<4x16x32xf32>
    %214 = arith.truncf %213 : vector<4x16x32xf32> to vector<4x16x32xbf16>
    %215 = vector.extract_strided_slice %137 {offsets = [0, 0, 352], sizes = [4, 16, 32], strides = [1, 1, 1]} : vector<4x16x384xf32> to vector<4x16x32xf32>
    %216 = arith.truncf %215 : vector<4x16x32xf32> to vector<4x16x32xbf16>
    "tpu.trace_start"() <{level = 10 : i32, message = "bqd,bkd->bqk"}> : () -> ()
    %cst_54 = arith.constant dense<0.000000e+00> : vector<4x16x16xf32>
    %217 = tpu.matmul %212, %214, %cst_54 {dimension_numbers = #tpu.dot_dimension_numbers<[2], [2], [1], [1], [0, 0, 0, 1, 1, 1], [0], [0]>} : vector<4x16x32xbf16>, vector<4x16x32xbf16>, vector<4x16x16xf32> -> vector<4x16x16xf32>
    "tpu.trace_stop"() : () -> ()
    %cst_55 = arith.constant dense<0xFF800000> : vector<4x16xf32>
    %218 = vector.multi_reduction <maximumf>, %217, %cst_55 [2] : vector<4x16x16xf32> to vector<4x16xf32>
    %219 = vector.shape_cast %218 : vector<4x16xf32> to vector<4x16x1xf32>
    %220 = vector.broadcast %219 : vector<4x16x1xf32> to vector<4x16x16xf32>
    %221 = arith.subf %217, %220 : vector<4x16x16xf32>
    %222 = math.exp %221 : vector<4x16x16xf32>
    %cst_56 = arith.constant dense<0.000000e+00> : vector<4x16xf32>
    %223 = vector.multi_reduction <add>, %222, %cst_56 [2] : vector<4x16x16xf32> to vector<4x16xf32>
    %224 = vector.shape_cast %223 : vector<4x16xf32> to vector<4x16x1xf32>
    %225 = tpu.reciprocal %224 {approx = true} : vector<4x16x1xf32> -> vector<4x16x1xf32>
    %226 = vector.broadcast %225 : vector<4x16x1xf32> to vector<4x16x16xf32>
    %227 = arith.mulf %222, %226 : vector<4x16x16xf32>
    %228 = arith.truncf %227 : vector<4x16x16xf32> to vector<4x16x16xbf16>
    "tpu.trace_start"() <{level = 10 : i32, message = "bqk,bkd->bqd"}> : () -> ()
    %cst_57 = arith.constant dense<0.000000e+00> : vector<4x16x32xf32>
    %229 = tpu.matmul %228, %216, %cst_57 {dimension_numbers = #tpu.dot_dimension_numbers<[2], [1], [1], [2], [0, 0, 0, 1, 1, 2], [0], [0]>} : vector<4x16x16xbf16>, vector<4x16x32xbf16>, vector<4x16x32xf32> -> vector<4x16x32xf32>
    "tpu.trace_stop"() : () -> ()
    %230 = vector.shape_cast %229 : vector<4x16x32xf32> to vector<64x32xf32>
    %231 = arith.truncf %230 : vector<64x32xf32> to vector<64x32xbf16>
    %232 = vector.extract_strided_slice %1 {offsets = [96, 0], sizes = [32, 128], strides = [1, 1]} : vector<128x128xbf16> to vector<32x128xbf16>
    %cst_58 = arith.constant dense<0.000000e+00> : vector<64x128xf32>
    %233 = tpu.matmul %231, %232, %cst_58 {dimension_numbers = #tpu.dot_dimension_numbers<[1], [0], [0], [1], [0, 0, 1, 1], [], []>} : vector<64x32xbf16>, vector<32x128xbf16>, vector<64x128xf32> -> vector<64x128xf32>
    %234 = arith.addf %210, %233 : vector<64x128xf32>
    %235 = vector.broadcast %3 : vector<1x128xf32> to vector<64x128xf32>
    %236 = arith.addf %234, %235 : vector<64x128xf32>
    %237 = vector.shape_cast %236 : vector<64x128xf32> to vector<4x16x128xf32>
    %238 = arith.addf %131, %237 : vector<4x16x128xf32>
    %cst_59 = arith.constant dense<0.000000e+00> : vector<4x128xf32>
    %239 = vector.multi_reduction <add>, %238, %cst_59 [1] : vector<4x16x128xf32> to vector<4x128xf32>
    %240 = vector.shape_cast %239 : vector<4x128xf32> to vector<4x1x128xf32>
    %cst_60 = arith.constant 1.600000e+01 : f32
    %241 = vector.broadcast %cst_60 : f32 to vector<4x1x128xf32>
    %242 = arith.divf %240, %241 : vector<4x1x128xf32>
    %243 = vector.broadcast %242 : vector<4x1x128xf32> to vector<4x16x128xf32>
    %244 = arith.subf %238, %243 : vector<4x16x128xf32>
    %245 = arith.mulf %244, %244 : vector<4x16x128xf32>
    %cst_61 = arith.constant dense<0.000000e+00> : vector<4x128xf32>
    %246 = vector.multi_reduction <add>, %245, %cst_61 [1] : vector<4x16x128xf32> to vector<4x128xf32>
    %247 = vector.shape_cast %246 : vector<4x128xf32> to vector<4x1x128xf32>
    %cst_62 = arith.constant 1.600000e+01 : f32
    %248 = vector.broadcast %cst_62 : f32 to vector<4x1x128xf32>
    %249 = arith.divf %247, %248 : vector<4x1x128xf32>
    %250 = vector.broadcast %242 : vector<4x1x128xf32> to vector<4x16x128xf32>
    %251 = arith.subf %238, %250 : vector<4x16x128xf32>
    %cst_63 = arith.constant 9.99999974E-6 : f32
    %252 = vector.broadcast %cst_63 : f32 to vector<4x1x128xf32>
    %253 = arith.addf %249, %252 : vector<4x1x128xf32>
    %254 = math.rsqrt %253 : vector<4x1x128xf32>
    %255 = vector.broadcast %254 : vector<4x1x128xf32> to vector<4x16x128xf32>
    %256 = arith.mulf %251, %255 : vector<4x16x128xf32>
    %cst_64 = arith.constant 0.000000e+00 : f32
    %257 = vector.broadcast %cst_64 : f32 to vector<4x16x128xf32>
    %258 = arith.maximumf %256, %257 : vector<4x16x128xf32>
    %c0_65 = arith.constant 0 : index
    %c0_66 = arith.constant 0 : index
    %c0_67 = arith.constant 0 : index
    %259 = vector.load %arg6[%c0_65, %c0_66, %c0_67] : memref<4x16x128xf32, #tpu.memory_space<vmem>>, vector<4x16x128xf32>
    tpu.vector_store %arg6[%c0_65, %c0_66, %c0_67], %258 {strides = array<i32>} : memref<4x16x128xf32, #tpu.memory_space<vmem>>, vector<4x16x128xf32>,
    return
  }
  func.func @transform_0(%arg0: i32) -> (i32, i32, i32) {
    %c0_i32 = arith.constant 0 : i32
    %c0_i32_0 = arith.constant 0 : i32
    %c0_i32_1 = arith.constant 0 : i32
    return %arg0, %c0_i32, %c0_i32_0 : i32, i32, i32
  }
  func.func @transform_1(%arg0: i32) -> (i32, i32) {
    %c0_i32 = arith.constant 0 : i32
    %c0_i32_0 = arith.constant 0 : i32
    %c0_i32_1 = arith.constant 0 : i32
    return %c0_i32, %c0_i32_0 : i32, i32
  }
  func.func @transform_2(%arg0: i32) -> (i32, i32) {
    %c0_i32 = arith.constant 0 : i32
    %c0_i32_0 = arith.constant 0 : i32
    %c0_i32_1 = arith.constant 0 : i32
    return %c0_i32, %c0_i32_0 : i32, i32
  }
  func.func @transform_3(%arg0: i32) -> (i32, i32) {
    %c0_i32 = arith.constant 0 : i32
    %c0_i32_0 = arith.constant 0 : i32
    %c0_i32_1 = arith.constant 0 : i32
    return %c0_i32, %c0_i32_0 : i32, i32
  }
  func.func @transform_4(%arg0: i32) -> (i32, i32) {
    %c0_i32 = arith.constant 0 : i32
    %c0_i32_0 = arith.constant 0 : i32
    %c0_i32_1 = arith.constant 0 : i32
    return %c0_i32, %c0_i32_0 : i32, i32
  }
  func.func @transform_5(%arg0: i32) -> (i32, i32, i32) {
    %c0_i32 = arith.constant 0 : i32
    %c0_i32_0 = arith.constant 0 : i32
    %c0_i32_1 = arith.constant 0 : i32
    return %arg0, %c0_i32, %c0_i32_0 : i32, i32, i32
  }
}

</mosaic_0001>

<llo_original>
// kernel: transformer_encoder.1
$region0: #{transformer_encoder.1}
  #allocation0 [shape = 'u32[]', space=smem, size = 0x4, offset = 0x4, fixed_abs, tag = 'smem constant byte address 0x4 - core index']
  #allocation1 [shape = 'u32[144,128]{1,0:T(1,128)}', space=vmem, size = 0x12000, scoped, tag = 'internal scratch']
  %s0 = inlined_call_operand.vmem [shape: f32[4,16,128], index: 0, kind: input, shape index: {}]
  %s1 = inlined_call_operand.hbm [shape: bf16[128,384], index: 1, kind: input, shape index: {}]
  %s2 = inlined_call_operand.vmem [shape: bf16[128,128], index: 2, kind: input, shape index: {}]
  %s3 = inlined_call_operand.vmem [shape: f32[1,384], index: 3, kind: input, shape index: {}]
  %s4 = inlined_call_operand.vmem [shape: f32[1,128], index: 4, kind: input, shape index: {}]
  %s5 = inlined_call_operand.vmem [shape: f32[4,16,128], index: 5, kind: output, shape index: {}]
  %s6 = sld [smem:[#allocation0]]
  $region34: #{transformer_encoder.1} parent=0
    _
  %s8 = ssub.s32 1, %s6
  %s9 = scalar_select 0, %s8, %s6
  $region1: #{transformer_encoder.1} parent=0
    #allocation2 [shape = 'u8[98304]{0}', space=vmem, size = 0x18000, scoped, tag = 'input window, operand 1, single buffered']
    #allocation3 [shape = 's32[1]{0}', space=sflag, size = 0x4, scoped, tag = 'scoped memory for transformer_encoder.1']
    %10 = vsyncpa [#allocation3], 0
    // Predicated region
    $region2: #{transformer_encoder.1} parent=1 // pred_check
      _
    $region3: #{transformer_encoder.1} parent=1 // pred_check_branch
      %12 = sbr.rel (0) target = $region5
    $region4: #{transformer_encoder.1} parent=1 // pred_region
      _
    $region5: #{transformer_encoder.1} parent=1 // pred_fallthru
      _
    // Predicated region
    $region6: #{transformer_encoder.1} parent=1 // pred_check
      _
    $region7: #{transformer_encoder.1} parent=1 // pred_check_branch
      %14 = sbr.rel (0) target = $region9
    $region8: #{transformer_encoder.1} parent=1 // pred_region
      %s16 = ssub.s32 3072, 3072
      %17 = vsyncadd [#allocation3], %s16
      %s18 = sshll.u32 [#allocation2], 4
      %s19 = int_to_ptr.vmem [resolvable:$true] %s18
      %24 = dma.hbm_to_vmem [thread:$0]  %s1, 3072, %s19, [#allocation3], 192, 192, 12
    $region9: #{transformer_encoder.1} parent=1 // pred_fallthru
      _
    // Predicated region
    $region10: #{transformer_encoder.1} parent=1 // pred_check
      _
    $region11: #{transformer_encoder.1} parent=1 // pred_check_branch
      %26 = sbr.rel (0) target = $region13
    $region12: #{transformer_encoder.1} parent=1 // pred_region
      _
    $region13: #{transformer_encoder.1} parent=1 // pred_fallthru
      _
    // Predicated region
    $region14: #{transformer_encoder.1} parent=1 // pred_check
      _
    $region15: #{transformer_encoder.1} parent=1 // pred_check_branch
      %28 = sbr.rel (0) target = $region17
    $region16: #{transformer_encoder.1} parent=1 // pred_region
      _
    $region17: #{transformer_encoder.1} parent=1 // pred_fallthru
      _
    // Predicated region
    $region18: #{transformer_encoder.1} parent=1 // pred_check
      _
    $region19: #{transformer_encoder.1} parent=1 // pred_check_branch
      %30 = sbr.rel (0) target = $region21
    $region20: #{transformer_encoder.1} parent=1 // pred_region
      _
    $region21: #{transformer_encoder.1} parent=1 // pred_fallthru
      _
    // Predicated region
    $region22: #{transformer_encoder.1} parent=1 // pred_check
      _
    $region23: #{transformer_encoder.1} parent=1 // pred_check_branch
      %32 = sbr.rel (0) target = $region25
    $region24: #{transformer_encoder.1} parent=1 // pred_region
      %33 = dma.done [#allocation3], 3072
    $region25: #{transformer_encoder.1} parent=1 // pred_fallthru
      _
    %v35 = vld [vmem:[#allocation2] sm:$0xff]
    %v36 = vld [vmem:[#allocation2 + $0x8] sm:$0xf]
    %v37 = vld [vmem:[#allocation2 + $0xc] sm:$0xff]
    %v38 = vld [vmem:[#allocation2 + $0x14] sm:$0xf]
    %v39 = vld [vmem:[#allocation2 + $0x18] sm:$0xff]
    %v40 = vld [vmem:[#allocation2 + $0x20] sm:$0xf]
    %v41 = vld [vmem:[#allocation2 + $0x24] sm:$0xff]
    %v42 = vld [vmem:[#allocation2 + $0x2c] sm:$0xf]
    %v43 = vld [vmem:[#allocation2 + $0x30] sm:$0xff]
    %v44 = vld [vmem:[#allocation2 + $0x38] sm:$0xf]
    %v45 = vld [vmem:[#allocation2 + $0x3c] sm:$0xff]
    %v46 = vld [vmem:[#allocation2 + $0x44] sm:$0xf]
    %v47 = vld [vmem:[#allocation2 + $0x48] sm:$0xff]
    %v48 = vld [vmem:[#allocation2 + $0x50] sm:$0xf]
    %v49 = vld [vmem:[#allocation2 + $0x54] sm:$0xff]
    %v50 = vld [vmem:[#allocation2 + $0x5c] sm:$0xf]
    %v51 = vld [vmem:[#allocation2 + $0x60] sm:$0xff]
    %v52 = vld [vmem:[#allocation2 + $0x68] sm:$0xf]
    %v53 = vld [vmem:[#allocation2 + $0x6c] sm:$0xff]
    %v54 = vld [vmem:[#allocation2 + $0x74] sm:$0xf]
    %v55 = vld [vmem:[#allocation2 + $0x78] sm:$0xff]
    %v56 = vld [vmem:[#allocation2 + $0x80] sm:$0xf]
    %v57 = vld [vmem:[#allocation2 + $0x84] sm:$0xff]
    %v58 = vld [vmem:[#allocation2 + $0x8c] sm:$0xf]
    %v59 = vld [vmem:[#allocation2 + $0x90] sm:$0xff]
    %v60 = vld [vmem:[#allocation2 + $0x98] sm:$0xf]
    %v61 = vld [vmem:[#allocation2 + $0x9c] sm:$0xff]
    %v62 = vld [vmem:[#allocation2 + $0xa4] sm:$0xf]
    %v63 = vld [vmem:[#allocation2 + $0xa8] sm:$0xff]
    %v64 = vld [vmem:[#allocation2 + $0xb0] sm:$0xf]
    %v65 = vld [vmem:[#allocation2 + $0xb4] sm:$0xff]
    %v66 = vld [vmem:[#allocation2 + $0xbc] sm:$0xf]
    %v67 = vld [vmem:[%s2] sm:$0xf]
    %v68 = vld [vmem:[%s2 + $0x4] sm:$0xf]
    %v69 = vld [vmem:[%s2 + $0x8] sm:$0xf]
    %v70 = vld [vmem:[%s2 + $0xc] sm:$0xf]
    %v71 = vld [vmem:[%s2 + $0x10] sm:$0xf]
    %v72 = vld [vmem:[%s2 + $0x14] sm:$0xf]
    %v73 = vld [vmem:[%s2 + $0x18] sm:$0xf]
    %v74 = vld [vmem:[%s2 + $0x1c] sm:$0xf]
    %v75 = vld [vmem:[%s2 + $0x20] sm:$0xf]
    %v76 = vld [vmem:[%s2 + $0x24] sm:$0xf]
    %v77 = vld [vmem:[%s2 + $0x28] sm:$0xf]
    %v78 = vld [vmem:[%s2 + $0x2c] sm:$0xf]
    %v79 = vld [vmem:[%s2 + $0x30] sm:$0xf]
    %v80 = vld [vmem:[%s2 + $0x34] sm:$0xf]
    %v81 = vld [vmem:[%s2 + $0x38] sm:$0xf]
    %v82 = vld [vmem:[%s2 + $0x3c] sm:$0xf]
    %v83 = vld [vmem:[%s3] sm:$0x7]
    %v84 = vld [vmem:[%s4] sm:$0x1]
    %v85 = vld [vmem:[%s0] sm:$0xff]
    %v86 = vld [vmem:[%s0 + $0x8] sm:$0xff]
    %v87 = vld [vmem:[%s0 + $0x10] sm:$0xff]
    %v88 = vld [vmem:[%s0 + $0x18] sm:$0xff]
    %v89 = vld [vmem:[%s0 + $0x20] sm:$0xff]
    %v90 = vld [vmem:[%s0 + $0x28] sm:$0xff]
    %v91 = vld [vmem:[%s0 + $0x30] sm:$0xff]
    %v92 = vld [vmem:[%s0 + $0x38] sm:$0xff]
    %v93 = vpack.c.bf16 %v86, %v85
    %v94 = vpack.c.bf16 %v88, %v87
    %v95 = vpack.c.bf16 %v90, %v89
    %v96 = vpack.c.bf16 %v92, %v91
    %v98 = vlaneseq
    %v99 = vshrl.u32 %v98, 7
    %v100 = vsub.s32 0, %v99
    %v101 = vrot.slane %v83, %v100
    %v102 = vlaneseq
    %v103 = vshrl.u32 %v102, 7
    %v104 = vsub.s32 1, %v103
    %v105 = vrot.slane %v83, %v104
    %v106 = vlaneseq
    %v107 = vshrl.u32 %v106, 7
    %v108 = vsub.s32 2, %v107
    %v109 = vrot.slane %v83, %v108
    %v145 = vunpack.c.l.b16 %v35
    %v146 = vunpack.c.h.b16 %v35
    %v147 = vunpack.c.l.b16 %v36
    %v148 = vunpack.c.l.b16 %v37
    %v149 = vunpack.c.h.b16 %v37
    %v150 = vunpack.c.l.b16 %v38
    %v151 = vunpack.c.l.b16 %v39
    %v152 = vunpack.c.h.b16 %v39
    %v153 = vunpack.c.l.b16 %v40
    %v154 = vunpack.c.l.b16 %v41
    %v155 = vunpack.c.h.b16 %v41
    %v156 = vunpack.c.l.b16 %v42
    %v157 = vunpack.c.l.b16 %v43
    %v158 = vunpack.c.h.b16 %v43
    %v159 = vunpack.c.l.b16 %v44
    %v160 = vunpack.c.l.b16 %v45
    %v161 = vunpack.c.h.b16 %v45
    %v162 = vunpack.c.l.b16 %v46
    %v163 = vunpack.c.l.b16 %v47
    %v164 = vunpack.c.h.b16 %v47
    %v165 = vunpack.c.l.b16 %v48
    %v166 = vunpack.c.l.b16 %v49
    %v167 = vunpack.c.h.b16 %v49
    %v168 = vunpack.c.l.b16 %v50
    %v169 = vunpack.c.l.b16 %v51
    %v170 = vunpack.c.h.b16 %v51
    %v171 = vunpack.c.l.b16 %v52
    %v172 = vunpack.c.l.b16 %v53
    %v173 = vunpack.c.h.b16 %v53
    %v174 = vunpack.c.l.b16 %v54
    %v175 = vunpack.c.l.b16 %v55
    %v176 = vunpack.c.h.b16 %v55
    %v177 = vunpack.c.l.b16 %v56
    %v178 = vunpack.c.l.b16 %v57
    %v179 = vunpack.c.h.b16 %v57
    %v180 = vunpack.c.l.b16 %v58
    %v181 = vunpack.c.l.b16 %v59
    %v182 = vunpack.c.h.b16 %v59
    %v183 = vunpack.c.l.b16 %v60
    %v184 = vunpack.c.l.b16 %v61
    %v185 = vunpack.c.h.b16 %v61
    %v186 = vunpack.c.l.b16 %v62
    %v187 = vunpack.c.l.b16 %v63
    %v188 = vunpack.c.h.b16 %v63
    %v189 = vunpack.c.l.b16 %v64
    %v190 = vunpack.c.l.b16 %v65
    %v191 = vunpack.c.h.b16 %v65
    %v192 = vunpack.c.l.b16 %v66
    %v193 = vpack.c.b16 %v148, %v145
    %v194 = vpack.c.b16 %v149, %v146
    %v195 = vpack.c.b16 %v150, %v147
    %v196 = vpack.c.b16 %v154, %v151
    %v197 = vpack.c.b16 %v155, %v152
    %v198 = vpack.c.b16 %v156, %v153
    %v199 = vpack.c.b16 %v160, %v157
    %v200 = vpack.c.b16 %v161, %v158
    %v201 = vpack.c.b16 %v162, %v159
    %v202 = vpack.c.b16 %v166, %v163
    %v203 = vpack.c.b16 %v167, %v164
    %v204 = vpack.c.b16 %v168, %v165
    %v205 = vpack.c.b16 %v172, %v169
    %v206 = vpack.c.b16 %v173, %v170
    %v207 = vpack.c.b16 %v174, %v171
    %v208 = vpack.c.b16 %v178, %v175
    %v209 = vpack.c.b16 %v179, %v176
    %v210 = vpack.c.b16 %v180, %v177
    %v211 = vpack.c.b16 %v184, %v181
    %v212 = vpack.c.b16 %v185, %v182
    %v213 = vpack.c.b16 %v186, %v183
    %v214 = vpack.c.b16 %v190, %v187
    %v215 = vpack.c.b16 %v191, %v188
    %v216 = vpack.c.b16 %v192, %v189
    %241 = vmatprep.subr.bf16.mxu0 %v215
    %242 = vmatpush1.bf16.msra.mxu0 %v214
    %243 = vmatprep.subr.bf16.mxu0 %v212
    %244 = vmatpush1.bf16.msra.mxu0 %v211
    %245 = vmatprep.subr.bf16.mxu0 %v209
    %246 = vmatpush1.bf16.msra.mxu0 %v208
    %247 = vmatprep.subr.bf16.mxu0 %v206
    %248 = vmatpush1.bf16.msra.mxu0 %v205
    %249 = vmatprep.subr.bf16.mxu0 %v203
    %250 = vmatpush1.bf16.msra.mxu0 %v202
    %251 = vmatprep.subr.bf16.mxu0 %v200
    %252 = vmatpush1.bf16.msra.mxu0 %v199
    %253 = vmatprep.subr.bf16.mxu0 %v197
    %254 = vmatpush1.bf16.msra.mxu0 %v196
    %255 = vmatprep.subr.bf16.mxu0 %v194
    %256 = vmatpush1.bf16.msra.mxu0 %v193
    %257 = vmatprep.subr.bf16.mxu0 0
    %258 = vmatpush2.bf16.msra.mxu0 0
    %259 = vmatprep.subr.bf16.mxu0 0
    %260 = vmatpush2.bf16.msra.mxu0 0
    %261 = vmatprep.subr.bf16.mxu0 0
    %262 = vmatpush2.bf16.msra.mxu0 0
    %263 = vmatprep.subr.bf16.mxu0 0
    %264 = vmatpush2.bf16.msra.mxu0 0
    %265 = vmatprep.subr.bf16.mxu0 0
    %266 = vmatpush2.bf16.msra.mxu0 0
    %267 = vmatprep.subr.bf16.mxu0 0
    %268 = vmatpush2.bf16.msra.mxu0 0
    %269 = vmatprep.subr.bf16.mxu0 0
    %270 = vmatpush2.bf16.msra.mxu0 0
    %271 = vmatprep.subr.bf16.mxu0 0
    %272 = vmatpush2.bf16.msra.mxu0 0
    %273 = vmatprep.mubr.bf16.mxu0 0
    %274 = vmatmul.mubr.bf16.gmra.mxu0 %v93
    %v275 = vpop.f32.mrf.mxu0
    %v276 = vadd.f32 %v101, %v275
    %v277 = vpop.f32.mrf.mxu0
    %v278 = vadd.f32 %v105, %v277
    %v279 = vpop.f32.mrf.mxu0
    %v280 = vadd.f32 %v101, %v279
    %v281 = vpop.f32.mrf.mxu0
    %v282 = vadd.f32 %v105, %v281
    %283 = vmatprep.mubr.bf16.mxu0 0
    %284 = vmatmul.mubr.bf16.gmra.mxu0 %v94
    %v285 = vpop.f32.mrf.mxu0
    %v286 = vadd.f32 %v101, %v285
    %v287 = vpop.f32.mrf.mxu0
    %v288 = vadd.f32 %v105, %v287
    %v289 = vpop.f32.mrf.mxu0
    %v290 = vadd.f32 %v101, %v289
    %v291 = vpop.f32.mrf.mxu0
    %v292 = vadd.f32 %v105, %v291
    %293 = vmatprep.mubr.bf16.mxu0 0
    %294 = vmatmul.mubr.bf16.gmra.mxu0 %v95
    %v295 = vpop.f32.mrf.mxu0
    %v296 = vadd.f32 %v101, %v295
    %v297 = vpop.f32.mrf.mxu0
    %v298 = vadd.f32 %v105, %v297
    %v299 = vpop.f32.mrf.mxu0
    %v300 = vadd.f32 %v101, %v299
    %v301 = vpop.f32.mrf.mxu0
    %v302 = vadd.f32 %v105, %v301
    %303 = vmatprep.mubr.bf16.mxu0 0
    %304 = vmatmul.mubr.bf16.gmra.mxu0 %v96
    %v305 = vpop.f32.mrf.mxu0
    %v306 = vadd.f32 %v101, %v305
    %v307 = vpop.f32.mrf.mxu0
    %v308 = vadd.f32 %v105, %v307
    %v309 = vpop.f32.mrf.mxu0
    %v310 = vadd.f32 %v101, %v309
    %v311 = vpop.f32.mrf.mxu0
    %v312 = vadd.f32 %v105, %v311
    %313 = vdwg.mxu0
    %314 = vmatprep.subr.bf16.mxu0 0
    %315 = vmatpush1.bf16.msra.mxu0 %v216
    %316 = vmatprep.subr.bf16.mxu0 0
    %317 = vmatpush1.bf16.msra.mxu0 %v213
    %318 = vmatprep.subr.bf16.mxu0 0
    %319 = vmatpush1.bf16.msra.mxu0 %v210
    %320 = vmatprep.subr.bf16.mxu0 0
    %321 = vmatpush1.bf16.msra.mxu0 %v207
    %322 = vmatprep.subr.bf16.mxu0 0
    %323 = vmatpush1.bf16.msra.mxu0 %v204
    %324 = vmatprep.subr.bf16.mxu0 0
    %325 = vmatpush1.bf16.msra.mxu0 %v201
    %326 = vmatprep.subr.bf16.mxu0 0
    %327 = vmatpush1.bf16.msra.mxu0 %v198
    %328 = vmatprep.subr.bf16.mxu0 0
    %329 = vmatpush1.bf16.msra.mxu0 %v195
    %330 = vmatprep.subr.bf16.mxu0 0
    %331 = vmatpush2.bf16.msra.mxu0 0
    %332 = vmatprep.subr.bf16.mxu0 0
    %333 = vmatpush2.bf16.msra.mxu0 0
    %334 = vmatprep.subr.bf16.mxu0 0
    %335 = vmatpush2.bf16.msra.mxu0 0
    %336 = vmatprep.subr.bf16.mxu0 0
    %337 = vmatpush2.bf16.msra.mxu0 0
    %338 = vmatprep.subr.bf16.mxu0 0
    %339 = vmatpush2.bf16.msra.mxu0 0
    %340 = vmatprep.subr.bf16.mxu0 0
    %341 = vmatpush2.bf16.msra.mxu0 0
    %342 = vmatprep.subr.bf16.mxu0 0
    %343 = vmatpush2.bf16.msra.mxu0 0
    %344 = vmatprep.subr.bf16.mxu0 0
    %345 = vmatpush2.bf16.msra.mxu0 0
    %346 = vmatprep.mubr.bf16.mxu0 0
    %347 = vmatmul.mubr.bf16.gmra.mxu0 %v93
    %v348 = vpop.f32.mrf.mxu0
    %v349 = vadd.f32 %v109, %v348
    %v350 = vpop.f32.mrf.mxu0
    %v351 = vpop.f32.mrf.mxu0
    %v352 = vadd.f32 %v109, %v351
    %v353 = vpop.f32.mrf.mxu0
    %354 = vmatprep.mubr.bf16.mxu0 0
    %355 = vmatmul.mubr.bf16.gmra.mxu0 %v94
    %v356 = vpop.f32.mrf.mxu0
    %v357 = vadd.f32 %v109, %v356
    %v358 = vpop.f32.mrf.mxu0
    %v359 = vpop.f32.mrf.mxu0
    %v360 = vadd.f32 %v109, %v359
    %v361 = vpop.f32.mrf.mxu0
    %362 = vmatprep.mubr.bf16.mxu0 0
    %363 = vmatmul.mubr.bf16.gmra.mxu0 %v95
    %v364 = vpop.f32.mrf.mxu0
    %v365 = vadd.f32 %v109, %v364
    %v366 = vpop.f32.mrf.mxu0
    %v367 = vpop.f32.mrf.mxu0
    %v368 = vadd.f32 %v109, %v367
    %v369 = vpop.f32.mrf.mxu0
    %370 = vmatprep.mubr.bf16.mxu0 0
    %371 = vmatmul.mubr.bf16.gmra.mxu0 %v96
    %v372 = vpop.f32.mrf.mxu0
    %v373 = vadd.f32 %v109, %v372
    %v374 = vpop.f32.mrf.mxu0
    %v375 = vpop.f32.mrf.mxu0
    %v376 = vadd.f32 %v109, %v375
    %v377 = vpop.f32.mrf.mxu0
    %378 = vdwg.mxu0
    %v379 = vpack.c.bf16 %v280, %v276
    %v380 = vpack.c.bf16 %v290, %v286
    %v381 = vpack.c.bf16 %v300, %v296
    %v382 = vpack.c.bf16 %v310, %v306
    %v383 = vpack.c.bf16 %v282, %v278
    %v384 = vpack.c.bf16 %v292, %v288
    %v385 = vpack.c.bf16 %v302, %v298
    %v386 = vpack.c.bf16 %v312, %v308
    %v387 = vpack.c.bf16 %v352, %v349
    %v388 = vpack.c.bf16 %v360, %v357
    %v389 = vpack.c.bf16 %v368, %v365
    %v390 = vpack.c.bf16 %v376, %v373
    %vm391 = vcmask 261120
    %v393 = vsel %vm391, %v379, 0
    %v396 = vsel %vm391, %v383, 0
    %398 = vmatprep.subr.bf16.mxu0 0
    %399 = vmatpush1.bf16.xpose.msra.mxu0 0
    %400 = vmatprep.subr.bf16.mxu0 0
    %401 = vmatpush1.bf16.xpose.msra.mxu0 0
    %402 = vmatprep.subr.bf16.mxu0 0
    %403 = vmatpush1.bf16.xpose.msra.mxu0 0
    %404 = vmatprep.subr.bf16.mxu0 0
    %405 = vmatpush1.bf16.xpose.msra.mxu0 0
    %406 = vmatprep.subr.bf16.mxu0 0
    %407 = vmatpush1.bf16.xpose.msra.mxu0 0
    %408 = vmatprep.subr.bf16.mxu0 0
    %409 = vmatpush1.bf16.xpose.msra.mxu0 0
    %410 = vmatprep.subr.bf16.mxu0 0
    %411 = vmatpush1.bf16.xpose.msra.mxu0 0
    %412 = vmatprep.subr.bf16.mxu0 0
    %413 = vmatpush1.bf16.xpose.msra.mxu0 %v396
    %414 = vmatprep.subr.bf16.mxu0 0
    %415 = vmatpush2.bf16.xpose.msra.mxu0 0
    %416 = vmatprep.subr.bf16.mxu0 0
    %417 = vmatpush2.bf16.xpose.msra.mxu0 0
    %418 = vmatprep.subr.bf16.mxu0 0
    %419 = vmatpush2.bf16.xpose.msra.mxu0 0
    %420 = vmatprep.subr.bf16.mxu0 0
    %421 = vmatpush2.bf16.xpose.msra.mxu0 0
    %422 = vmatprep.subr.bf16.mxu0 0
    %423 = vmatpush2.bf16.xpose.msra.mxu0 0
    %424 = vmatprep.subr.bf16.mxu0 0
    %425 = vmatpush2.bf16.xpose.msra.mxu0 0
    %426 = vmatprep.subr.bf16.mxu0 0
    %427 = vmatpush2.bf16.xpose.msra.mxu0 0
    %428 = vmatprep.subr.bf16.mxu0 0
    %429 = vmatpush2.bf16.xpose.msra.mxu0 0
    %430 = vmatprep.mubr.bf16.mxu0 0
    %431 = vmatmul.mubr.bf16.gmra.mxu0 %v393
    %v432 = vpop.f32.mrf.mxu0
    %v433 = vadd.f32 0.0, %v432
    %v434 = vpop.f32.mrf.mxu0
    %v435 = vpop.f32.mrf.mxu0
    %v436 = vadd.f32 0.0, %v435
    %v437 = vpop.f32.mrf.mxu0
    %438 = vdwg.mxu0
    %v440 = vsel %vm391, %v380, 0
    %v443 = vsel %vm391, %v384, 0
    %445 = vmatprep.subr.bf16.mxu0 0
    %446 = vmatpush1.bf16.xpose.msra.mxu0 0
    %447 = vmatprep.subr.bf16.mxu0 0
    %448 = vmatpush1.bf16.xpose.msra.mxu0 0
    %449 = vmatprep.subr.bf16.mxu0 0
    %450 = vmatpush1.bf16.xpose.msra.mxu0 0
    %451 = vmatprep.subr.bf16.mxu0 0
    %452 = vmatpush1.bf16.xpose.msra.mxu0 0
    %453 = vmatprep.subr.bf16.mxu0 0
    %454 = vmatpush1.bf16.xpose.msra.mxu0 0
    %455 = vmatprep.subr.bf16.mxu0 0
    %456 = vmatpush1.bf16.xpose.msra.mxu0 0
    %457 = vmatprep.subr.bf16.mxu0 0
    %458 = vmatpush1.bf16.xpose.msra.mxu0 0
    %459 = vmatprep.subr.bf16.mxu0 0
    %460 = vmatpush1.bf16.xpose.msra.mxu0 %v443
    %461 = vmatprep.subr.bf16.mxu0 0
    %462 = vmatpush2.bf16.xpose.msra.mxu0 0
    %463 = vmatprep.subr.bf16.mxu0 0
    %464 = vmatpush2.bf16.xpose.msra.mxu0 0
    %465 = vmatprep.subr.bf16.mxu0 0
    %466 = vmatpush2.bf16.xpose.msra.mxu0 0
    %467 = vmatprep.subr.bf16.mxu0 0
    %468 = vmatpush2.bf16.xpose.msra.mxu0 0
    %469 = vmatprep.subr.bf16.mxu0 0
    %470 = vmatpush2.bf16.xpose.msra.mxu0 0
    %471 = vmatprep.subr.bf16.mxu0 0
    %472 = vmatpush2.bf16.xpose.msra.mxu0 0
    %473 = vmatprep.subr.bf16.mxu0 0
    %474 = vmatpush2.bf16.xpose.msra.mxu0 0
    %475 = vmatprep.subr.bf16.mxu0 0
    %476 = vmatpush2.bf16.xpose.msra.mxu0 0
    %477 = vmatprep.mubr.bf16.mxu0 0
    %478 = vmatmul.mubr.bf16.gmra.mxu0 %v440
    %v479 = vpop.f32.mrf.mxu0
    %v480 = vadd.f32 0.0, %v479
    %v481 = vpop.f32.mrf.mxu0
    %v482 = vpop.f32.mrf.mxu0
    %v483 = vadd.f32 0.0, %v482
    %v484 = vpop.f32.mrf.mxu0
    %485 = vdwg.mxu0
    %v487 = vsel %vm391, %v381, 0
    %v490 = vsel %vm391, %v385, 0
    %492 = vmatprep.subr.bf16.mxu0 0
    %493 = vmatpush1.bf16.xpose.msra.mxu0 0
    %494 = vmatprep.subr.bf16.mxu0 0
    %495 = vmatpush1.bf16.xpose.msra.mxu0 0
    %496 = vmatprep.subr.bf16.mxu0 0
    %497 = vmatpush1.bf16.xpose.msra.mxu0 0
    %498 = vmatprep.subr.bf16.mxu0 0
    %499 = vmatpush1.bf16.xpose.msra.mxu0 0
    %500 = vmatprep.subr.bf16.mxu0 0
    %501 = vmatpush1.bf16.xpose.msra.mxu0 0
    %502 = vmatprep.subr.bf16.mxu0 0
    %503 = vmatpush1.bf16.xpose.msra.mxu0 0
    %504 = vmatprep.subr.bf16.mxu0 0
    %505 = vmatpush1.bf16.xpose.msra.mxu0 0
    %506 = vmatprep.subr.bf16.mxu0 0
    %507 = vmatpush1.bf16.xpose.msra.mxu0 %v490
    %508 = vmatprep.subr.bf16.mxu0 0
    %509 = vmatpush2.bf16.xpose.msra.mxu0 0
    %510 = vmatprep.subr.bf16.mxu0 0
    %511 = vmatpush2.bf16.xpose.msra.mxu0 0
    %512 = vmatprep.subr.bf16.mxu0 0
    %513 = vmatpush2.bf16.xpose.msra.mxu0 0
    %514 = vmatprep.subr.bf16.mxu0 0
    %515 = vmatpush2.bf16.xpose.msra.mxu0 0
    %516 = vmatprep.subr.bf16.mxu0 0
    %517 = vmatpush2.bf16.xpose.msra.mxu0 0
    %518 = vmatprep.subr.bf16.mxu0 0
    %519 = vmatpush2.bf16.xpose.msra.mxu0 0
    %520 = vmatprep.subr.bf16.mxu0 0
    %521 = vmatpush2.bf16.xpose.msra.mxu0 0
    %522 = vmatprep.subr.bf16.mxu0 0
    %523 = vmatpush2.bf16.xpose.msra.mxu0 0
    %524 = vmatprep.mubr.bf16.mxu0 0
    %525 = vmatmul.mubr.bf16.gmra.mxu0 %v487
    %v526 = vpop.f32.mrf.mxu0
    %v527 = vadd.f32 0.0, %v526
    %v528 = vpop.f32.mrf.mxu0
    %v529 = vpop.f32.mrf.mxu0
    %v530 = vadd.f32 0.0, %v529
    %v531 = vpop.f32.mrf.mxu0
    %532 = vdwg.mxu0
    %v534 = vsel %vm391, %v382, 0
    %v537 = vsel %vm391, %v386, 0
    %539 = vmatprep.subr.bf16.mxu0 0
    %540 = vmatpush1.bf16.xpose.msra.mxu0 0
    %541 = vmatprep.subr.bf16.mxu0 0
    %542 = vmatpush1.bf16.xpose.msra.mxu0 0
    %543 = vmatprep.subr.bf16.mxu0 0
    %544 = vmatpush1.bf16.xpose.msra.mxu0 0
    %545 = vmatprep.subr.bf16.mxu0 0
    %546 = vmatpush1.bf16.xpose.msra.mxu0 0
    %547 = vmatprep.subr.bf16.mxu0 0
    %548 = vmatpush1.bf16.xpose.msra.mxu0 0
    %549 = vmatprep.subr.bf16.mxu0 0
    %550 = vmatpush1.bf16.xpose.msra.mxu0 0
    %551 = vmatprep.subr.bf16.mxu0 0
    %552 = vmatpush1.bf16.xpose.msra.mxu0 0
    %553 = vmatprep.subr.bf16.mxu0 0
    %554 = vmatpush1.bf16.xpose.msra.mxu0 %v537
    %555 = vmatprep.subr.bf16.mxu0 0
    %556 = vmatpush2.bf16.xpose.msra.mxu0 0
    %557 = vmatprep.subr.bf16.mxu0 0
    %558 = vmatpush2.bf16.xpose.msra.mxu0 0
    %559 = vmatprep.subr.bf16.mxu0 0
    %560 = vmatpush2.bf16.xpose.msra.mxu0 0
    %561 = vmatprep.subr.bf16.mxu0 0
    %562 = vmatpush2.bf16.xpose.msra.mxu0 0
    %563 = vmatprep.subr.bf16.mxu0 0
    %564 = vmatpush2.bf16.xpose.msra.mxu0 0
    %565 = vmatprep.subr.bf16.mxu0 0
    %566 = vmatpush2.bf16.xpose.msra.mxu0 0
    %567 = vmatprep.subr.bf16.mxu0 0
    %568 = vmatpush2.bf16.xpose.msra.mxu0 0
    %569 = vmatprep.subr.bf16.mxu0 0
    %570 = vmatpush2.bf16.xpose.msra.mxu0 0
    %571 = vmatprep.mubr.bf16.mxu0 0
    %572 = vmatmul.mubr.bf16.gmra.mxu0 %v534
    %v573 = vpop.f32.mrf.mxu0
    %v574 = vadd.f32 0.0, %v573
    %v575 = vpop.f32.mrf.mxu0
    %v576 = vpop.f32.mrf.mxu0
    %v577 = vadd.f32 0.0, %v576
    %v578 = vpop.f32.mrf.mxu0
    %579 = vdwg.mxu0
    %vm580 = vcmask 130048
    %v581 = vsel %vm580, %v433, -inf
    %582 = vmax.xlane.f32.xlu0 %v581
    %v583 = vpop.xlane.xlu0 %582
    %v584 = vsel %vm580, %v436, -inf
    %585 = vmax.xlane.f32.xlu0 %v584
    %v586 = vpop.xlane.xlu0 %585
    %v587 = vsel %vm580, %v480, -inf
    %588 = vmax.xlane.f32.xlu0 %v587
    %v589 = vpop.xlane.xlu0 %588
    %v590 = vsel %vm580, %v483, -inf
    %591 = vmax.xlane.f32.xlu0 %v590
    %v592 = vpop.xlane.xlu0 %591
    %v593 = vsel %vm580, %v527, -inf
    %594 = vmax.xlane.f32.xlu0 %v593
    %v595 = vpop.xlane.xlu0 %594
    %v596 = vsel %vm580, %v530, -inf
    %597 = vmax.xlane.f32.xlu0 %v596
    %v598 = vpop.xlane.xlu0 %597
    %v599 = vsel %vm580, %v574, -inf
    %600 = vmax.xlane.f32.xlu0 %v599
    %v601 = vpop.xlane.xlu0 %600
    %v602 = vsel %vm580, %v577, -inf
    %603 = vmax.xlane.f32.xlu0 %v602
    %v604 = vpop.xlane.xlu0 %603
    %v605 = vsub.f32 %v433, %v583
    %v606 = vsub.f32 %v436, %v586
    %v607 = vsub.f32 %v480, %v589
    %v608 = vsub.f32 %v483, %v592
    %v609 = vsub.f32 %v527, %v595
    %v610 = vsub.f32 %v530, %v598
    %v611 = vsub.f32 %v574, %v601
    %v612 = vsub.f32 %v577, %v604
    %v613 = vmul.f32 %v605, 1.442695
    %v614 = vpow.pop %v613
    %v615 = vmul.f32 %v606, 1.442695
    %v616 = vpow.pop %v615
    %v617 = vmul.f32 %v607, 1.442695
    %v618 = vpow.pop %v617
    %v619 = vmul.f32 %v608, 1.442695
    %v620 = vpow.pop %v619
    %v621 = vmul.f32 %v609, 1.442695
    %v622 = vpow.pop %v621
    %v623 = vmul.f32 %v610, 1.442695
    %v624 = vpow.pop %v623
    %v625 = vmul.f32 %v611, 1.442695
    %v626 = vpow.pop %v625
    %v627 = vmul.f32 %v612, 1.442695
    %v628 = vpow.pop %v627
    %v629 = vsel %vm580, %v614, 0.0
    %630 = vadd.xlane.f32.xlu0 %v629
    %v631 = vpop.xlane.xlu0 %630
    %v632 = vsel %vm580, %v616, 0.0
    %633 = vadd.xlane.f32.xlu0 %v632
    %v634 = vpop.xlane.xlu0 %633
    %v635 = vsel %vm580, %v618, 0.0
    %636 = vadd.xlane.f32.xlu0 %v635
    %v637 = vpop.xlane.xlu0 %636
    %v638 = vsel %vm580, %v620, 0.0
    %639 = vadd.xlane.f32.xlu0 %v638
    %v640 = vpop.xlane.xlu0 %639
    %v641 = vsel %vm580, %v622, 0.0
    %642 = vadd.xlane.f32.xlu0 %v641
    %v643 = vpop.xlane.xlu0 %642
    %v644 = vsel %vm580, %v624, 0.0
    %645 = vadd.xlane.f32.xlu0 %v644
    %v646 = vpop.xlane.xlu0 %645
    %v647 = vsel %vm580, %v626, 0.0
    %648 = vadd.xlane.f32.xlu0 %v647
    %v649 = vpop.xlane.xlu0 %648
    %v650 = vsel %vm580, %v628, 0.0
    %651 = vadd.xlane.f32.xlu0 %v650
    %v652 = vpop.xlane.xlu0 %651
    %v653 = vrcp.pop %v631
    %v654 = vrcp.pop %v634
    %v655 = vrcp.pop %v637
    %v656 = vrcp.pop %v640
    %v657 = vrcp.pop %v643
    %v658 = vrcp.pop %v646
    %v659 = vrcp.pop %v649
    %v660 = vrcp.pop %v652
    %v661 = vmul.f32 %v614, %v653
    %v662 = vmul.f32 %v616, %v654
    %v663 = vmul.f32 %v618, %v655
    %v664 = vmul.f32 %v620, %v656
    %v665 = vmul.f32 %v622, %v657
    %v666 = vmul.f32 %v624, %v658
    %v667 = vmul.f32 %v626, %v659
    %v668 = vmul.f32 %v628, %v660
    %v669 = vpack.c.bf16 %v662, %v661
    %v670 = vpack.c.bf16 %v664, %v663
    %v671 = vpack.c.bf16 %v666, %v665
    %v672 = vpack.c.bf16 %v668, %v667
    %v674 = vsel %vm580, %v669, 0
    %676 = vmatprep.subr.bf16.mxu0 0
    %677 = vmatpush1.bf16.msra.mxu0 0
    %678 = vmatprep.subr.bf16.mxu0 0
    %679 = vmatpush1.bf16.msra.mxu0 0
    %680 = vmatprep.subr.bf16.mxu0 0
    %681 = vmatpush1.bf16.msra.mxu0 0
    %682 = vmatprep.subr.bf16.mxu0 0
    %683 = vmatpush1.bf16.msra.mxu0 0
    %684 = vmatprep.subr.bf16.mxu0 0
    %685 = vmatpush1.bf16.msra.mxu0 0
    %686 = vmatprep.subr.bf16.mxu0 0
    %687 = vmatpush1.bf16.msra.mxu0 0
    %688 = vmatprep.subr.bf16.mxu0 0
    %689 = vmatpush1.bf16.msra.mxu0 0
    %690 = vmatprep.subr.bf16.mxu0 0
    %691 = vmatpush1.bf16.msra.mxu0 %v387
    %692 = vmatprep.subr.bf16.mxu0 0
    %693 = vmatpush2.bf16.msra.mxu0 0
    %694 = vmatprep.subr.bf16.mxu0 0
    %695 = vmatpush2.bf16.msra.mxu0 0
    %696 = vmatprep.subr.bf16.mxu0 0
    %697 = vmatpush2.bf16.msra.mxu0 0
    %698 = vmatprep.subr.bf16.mxu0 0
    %699 = vmatpush2.bf16.msra.mxu0 0
    %700 = vmatprep.subr.bf16.mxu0 0
    %701 = vmatpush2.bf16.msra.mxu0 0
    %702 = vmatprep.subr.bf16.mxu0 0
    %703 = vmatpush2.bf16.msra.mxu0 0
    %704 = vmatprep.subr.bf16.mxu0 0
    %705 = vmatpush2.bf16.msra.mxu0 0
    %706 = vmatprep.subr.bf16.mxu0 0
    %707 = vmatpush2.bf16.msra.mxu0 0
    %708 = vmatprep.mubr.bf16.mxu0 0
    %709 = vmatmul.mubr.bf16.gmra.mxu0 %v674
    %v710 = vpop.f32.mrf.mxu0
    %v711 = vadd.f32 0.0, %v710
    %v712 = vpop.f32.mrf.mxu0
    %v713 = vpop.f32.mrf.mxu0
    %v714 = vadd.f32 0.0, %v713
    %v715 = vpop.f32.mrf.mxu0
    %716 = vdwg.mxu0
    %v718 = vsel %vm580, %v670, 0
    %720 = vmatprep.subr.bf16.mxu0 0
    %721 = vmatpush1.bf16.msra.mxu0 0
    %722 = vmatprep.subr.bf16.mxu0 0
    %723 = vmatpush1.bf16.msra.mxu0 0
    %724 = vmatprep.subr.bf16.mxu0 0
    %725 = vmatpush1.bf16.msra.mxu0 0
    %726 = vmatprep.subr.bf16.mxu0 0
    %727 = vmatpush1.bf16.msra.mxu0 0
    %728 = vmatprep.subr.bf16.mxu0 0
    %729 = vmatpush1.bf16.msra.mxu0 0
    %730 = vmatprep.subr.bf16.mxu0 0
    %731 = vmatpush1.bf16.msra.mxu0 0
    %732 = vmatprep.subr.bf16.mxu0 0
    %733 = vmatpush1.bf16.msra.mxu0 0
    %734 = vmatprep.subr.bf16.mxu0 0
    %735 = vmatpush1.bf16.msra.mxu0 %v388
    %736 = vmatprep.subr.bf16.mxu0 0
    %737 = vmatpush2.bf16.msra.mxu0 0
    %738 = vmatprep.subr.bf16.mxu0 0
    %739 = vmatpush2.bf16.msra.mxu0 0
    %740 = vmatprep.subr.bf16.mxu0 0
    %741 = vmatpush2.bf16.msra.mxu0 0
    %742 = vmatprep.subr.bf16.mxu0 0
    %743 = vmatpush2.bf16.msra.mxu0 0
    %744 = vmatprep.subr.bf16.mxu0 0
    %745 = vmatpush2.bf16.msra.mxu0 0
    %746 = vmatprep.subr.bf16.mxu0 0
    %747 = vmatpush2.bf16.msra.mxu0 0
    %748 = vmatprep.subr.bf16.mxu0 0
    %749 = vmatpush2.bf16.msra.mxu0 0
    %750 = vmatprep.subr.bf16.mxu0 0
    %751 = vmatpush2.bf16.msra.mxu0 0
    %752 = vmatprep.mubr.bf16.mxu0 0
    %753 = vmatmul.mubr.bf16.gmra.mxu0 %v718
    %v754 = vpop.f32.mrf.mxu0
    %v755 = vadd.f32 0.0, %v754
    %v756 = vpop.f32.mrf.mxu0
    %v757 = vpop.f32.mrf.mxu0
    %v758 = vadd.f32 0.0, %v757
    %v759 = vpop.f32.mrf.mxu0
    %760 = vdwg.mxu0
    %v762 = vsel %vm580, %v671, 0
    %764 = vmatprep.subr.bf16.mxu0 0
    %765 = vmatpush1.bf16.msra.mxu0 0
    %766 = vmatprep.subr.bf16.mxu0 0
    %767 = vmatpush1.bf16.msra.mxu0 0
    %768 = vmatprep.subr.bf16.mxu0 0
    %769 = vmatpush1.bf16.msra.mxu0 0
    %770 = vmatprep.subr.bf16.mxu0 0
    %771 = vmatpush1.bf16.msra.mxu0 0
    %772 = vmatprep.subr.bf16.mxu0 0
    %773 = vmatpush1.bf16.msra.mxu0 0
    %774 = vmatprep.subr.bf16.mxu0 0
    %775 = vmatpush1.bf16.msra.mxu0 0
    %776 = vmatprep.subr.bf16.mxu0 0
    %777 = vmatpush1.bf16.msra.mxu0 0
    %778 = vmatprep.subr.bf16.mxu0 0
    %779 = vmatpush1.bf16.msra.mxu0 %v389
    %780 = vmatprep.subr.bf16.mxu0 0
    %781 = vmatpush2.bf16.msra.mxu0 0
    %782 = vmatprep.subr.bf16.mxu0 0
    %783 = vmatpush2.bf16.msra.mxu0 0
    %784 = vmatprep.subr.bf16.mxu0 0
    %785 = vmatpush2.bf16.msra.mxu0 0
    %786 = vmatprep.subr.bf16.mxu0 0
    %787 = vmatpush2.bf16.msra.mxu0 0
    %788 = vmatprep.subr.bf16.mxu0 0
    %789 = vmatpush2.bf16.msra.mxu0 0
    %790 = vmatprep.subr.bf16.mxu0 0
    %791 = vmatpush2.bf16.msra.mxu0 0
    %792 = vmatprep.subr.bf16.mxu0 0
    %793 = vmatpush2.bf16.msra.mxu0 0
    %794 = vmatprep.subr.bf16.mxu0 0
    %795 = vmatpush2.bf16.msra.mxu0 0
    %796 = vmatprep.mubr.bf16.mxu0 0
    %797 = vmatmul.mubr.bf16.gmra.mxu0 %v762
    %v798 = vpop.f32.mrf.mxu0
    %v799 = vadd.f32 0.0, %v798
    %v800 = vpop.f32.mrf.mxu0
    %v801 = vpop.f32.mrf.mxu0
    %v802 = vadd.f32 0.0, %v801
    %v803 = vpop.f32.mrf.mxu0
    %804 = vdwg.mxu0
    %v806 = vsel %vm580, %v672, 0
    %808 = vmatprep.subr.bf16.mxu0 0
    %809 = vmatpush1.bf16.msra.mxu0 0
    %810 = vmatprep.subr.bf16.mxu0 0
    %811 = vmatpush1.bf16.msra.mxu0 0
    %812 = vmatprep.subr.bf16.mxu0 0
    %813 = vmatpush1.bf16.msra.mxu0 0
    %814 = vmatprep.subr.bf16.mxu0 0
    %815 = vmatpush1.bf16.msra.mxu0 0
    %816 = vmatprep.subr.bf16.mxu0 0
    %817 = vmatpush1.bf16.msra.mxu0 0
    %818 = vmatprep.subr.bf16.mxu0 0
    %819 = vmatpush1.bf16.msra.mxu0 0
    %820 = vmatprep.subr.bf16.mxu0 0
    %821 = vmatpush1.bf16.msra.mxu0 0
    %822 = vmatprep.subr.bf16.mxu0 0
    %823 = vmatpush1.bf16.msra.mxu0 %v390
    %824 = vmatprep.subr.bf16.mxu0 0
    %825 = vmatpush2.bf16.msra.mxu0 0
    %826 = vmatprep.subr.bf16.mxu0 0
    %827 = vmatpush2.bf16.msra.mxu0 0
    %828 = vmatprep.subr.bf16.mxu0 0
    %829 = vmatpush2.bf16.msra.mxu0 0
    %830 = vmatprep.subr.bf16.mxu0 0
    %831 = vmatpush2.bf16.msra.mxu0 0
    %832 = vmatprep.subr.bf16.mxu0 0
    %833 = vmatpush2.bf16.msra.mxu0 0
    %834 = vmatprep.subr.bf16.mxu0 0
    %835 = vmatpush2.bf16.msra.mxu0 0
    %836 = vmatprep.subr.bf16.mxu0 0
    %837 = vmatpush2.bf16.msra.mxu0 0
    %838 = vmatprep.subr.bf16.mxu0 0
    %839 = vmatpush2.bf16.msra.mxu0 0
    %840 = vmatprep.mubr.bf16.mxu0 0
    %841 = vmatmul.mubr.bf16.gmra.mxu0 %v806
    %v842 = vpop.f32.mrf.mxu0
    %v843 = vadd.f32 0.0, %v842
    %v844 = vpop.f32.mrf.mxu0
    %v845 = vpop.f32.mrf.mxu0
    %v846 = vadd.f32 0.0, %v845
    %v847 = vpop.f32.mrf.mxu0
    %848 = vdwg.mxu0
    %v849 = vpack.c.bf16 %v714, %v711
    %v850 = vpack.c.bf16 %v758, %v755
    %v851 = vpack.c.bf16 %v802, %v799
    %v852 = vpack.c.bf16 %v846, %v843
    %854 = vrot.lane.b32.xlu0 %v379, 96
    %v855 = vpop.permute.xlu0 %854
    %857 = vrot.lane.b32.xlu0 %v383, 96
    %v858 = vpop.permute.xlu0 %857
    %v860 = vsel %vm391, %v855, 0
    %v863 = vsel %vm391, %v858, 0
    %865 = vmatprep.subr.bf16.mxu0 0
    %866 = vmatpush1.bf16.xpose.msra.mxu0 0
    %867 = vmatprep.subr.bf16.mxu0 0
    %868 = vmatpush1.bf16.xpose.msra.mxu0 0
    %869 = vmatprep.subr.bf16.mxu0 0
    %870 = vmatpush1.bf16.xpose.msra.mxu0 0
    %871 = vmatprep.subr.bf16.mxu0 0
    %872 = vmatpush1.bf16.xpose.msra.mxu0 0
    %873 = vmatprep.subr.bf16.mxu0 0
    %874 = vmatpush1.bf16.xpose.msra.mxu0 0
    %875 = vmatprep.subr.bf16.mxu0 0
    %876 = vmatpush1.bf16.xpose.msra.mxu0 0
    %877 = vmatprep.subr.bf16.mxu0 0
    %878 = vmatpush1.bf16.xpose.msra.mxu0 0
    %879 = vmatprep.subr.bf16.mxu0 0
    %880 = vmatpush1.bf16.xpose.msra.mxu0 %v863
    %881 = vmatprep.subr.bf16.mxu0 0
    %882 = vmatpush2.bf16.xpose.msra.mxu0 0
    %883 = vmatprep.subr.bf16.mxu0 0
    %884 = vmatpush2.bf16.xpose.msra.mxu0 0
    %885 = vmatprep.subr.bf16.mxu0 0
    %886 = vmatpush2.bf16.xpose.msra.mxu0 0
    %887 = vmatprep.subr.bf16.mxu0 0
    %888 = vmatpush2.bf16.xpose.msra.mxu0 0
    %889 = vmatprep.subr.bf16.mxu0 0
    %890 = vmatpush2.bf16.xpose.msra.mxu0 0
    %891 = vmatprep.subr.bf16.mxu0 0
    %892 = vmatpush2.bf16.xpose.msra.mxu0 0
    %893 = vmatprep.subr.bf16.mxu0 0
    %894 = vmatpush2.bf16.xpose.msra.mxu0 0
    %895 = vmatprep.subr.bf16.mxu0 0
    %896 = vmatpush2.bf16.xpose.msra.mxu0 0
    %897 = vmatprep.mubr.bf16.mxu0 0
    %898 = vmatmul.mubr.bf16.gmra.mxu0 %v860
    %v899 = vpop.f32.mrf.mxu0
    %v900 = vadd.f32 0.0, %v899
    %v901 = vpop.f32.mrf.mxu0
    %v902 = vpop.f32.mrf.mxu0
    %v903 = vadd.f32 0.0, %v902
    %v904 = vpop.f32.mrf.mxu0
    %905 = vdwg.mxu0
    %907 = vrot.lane.b32.xlu0 %v380, 96
    %v908 = vpop.permute.xlu0 %907
    %910 = vrot.lane.b32.xlu0 %v384, 96
    %v911 = vpop.permute.xlu0 %910
    %v913 = vsel %vm391, %v908, 0
    %v916 = vsel %vm391, %v911, 0
    %918 = vmatprep.subr.bf16.mxu0 0
    %919 = vmatpush1.bf16.xpose.msra.mxu0 0
    %920 = vmatprep.subr.bf16.mxu0 0
    %921 = vmatpush1.bf16.xpose.msra.mxu0 0
    %922 = vmatprep.subr.bf16.mxu0 0
    %923 = vmatpush1.bf16.xpose.msra.mxu0 0
    %924 = vmatprep.subr.bf16.mxu0 0
    %925 = vmatpush1.bf16.xpose.msra.mxu0 0
    %926 = vmatprep.subr.bf16.mxu0 0
    %927 = vmatpush1.bf16.xpose.msra.mxu0 0
    %928 = vmatprep.subr.bf16.mxu0 0
    %929 = vmatpush1.bf16.xpose.msra.mxu0 0
    %930 = vmatprep.subr.bf16.mxu0 0
    %931 = vmatpush1.bf16.xpose.msra.mxu0 0
    %932 = vmatprep.subr.bf16.mxu0 0
    %933 = vmatpush1.bf16.xpose.msra.mxu0 %v916
    %934 = vmatprep.subr.bf16.mxu0 0
    %935 = vmatpush2.bf16.xpose.msra.mxu0 0
    %936 = vmatprep.subr.bf16.mxu0 0
    %937 = vmatpush2.bf16.xpose.msra.mxu0 0
    %938 = vmatprep.subr.bf16.mxu0 0
    %939 = vmatpush2.bf16.xpose.msra.mxu0 0
    %940 = vmatprep.subr.bf16.mxu0 0
    %941 = vmatpush2.bf16.xpose.msra.mxu0 0
    %942 = vmatprep.subr.bf16.mxu0 0
    %943 = vmatpush2.bf16.xpose.msra.mxu0 0
    %944 = vmatprep.subr.bf16.mxu0 0
    %945 = vmatpush2.bf16.xpose.msra.mxu0 0
    %946 = vmatprep.subr.bf16.mxu0 0
    %947 = vmatpush2.bf16.xpose.msra.mxu0 0
    %948 = vmatprep.subr.bf16.mxu0 0
    %949 = vmatpush2.bf16.xpose.msra.mxu0 0
    %950 = vmatprep.mubr.bf16.mxu0 0
    %951 = vmatmul.mubr.bf16.gmra.mxu0 %v913
    %v952 = vpop.f32.mrf.mxu0
    %v953 = vadd.f32 0.0, %v952
    %v954 = vpop.f32.mrf.mxu0
    %v955 = vpop.f32.mrf.mxu0
    %v956 = vadd.f32 0.0, %v955
    %v957 = vpop.f32.mrf.mxu0
    %958 = vdwg.mxu0
    %960 = vrot.lane.b32.xlu0 %v381, 96
    %v961 = vpop.permute.xlu0 %960
    %963 = vrot.lane.b32.xlu0 %v385, 96
    %v964 = vpop.permute.xlu0 %963
    %v966 = vsel %vm391, %v961, 0
    %v969 = vsel %vm391, %v964, 0
    %971 = vmatprep.subr.bf16.mxu0 0
    %972 = vmatpush1.bf16.xpose.msra.mxu0 0
    %973 = vmatprep.subr.bf16.mxu0 0
    %974 = vmatpush1.bf16.xpose.msra.mxu0 0
    %975 = vmatprep.subr.bf16.mxu0 0
    %976 = vmatpush1.bf16.xpose.msra.mxu0 0
    %977 = vmatprep.subr.bf16.mxu0 0
    %978 = vmatpush1.bf16.xpose.msra.mxu0 0
    %979 = vmatprep.subr.bf16.mxu0 0
    %980 = vmatpush1.bf16.xpose.msra.mxu0 0
    %981 = vmatprep.subr.bf16.mxu0 0
    %982 = vmatpush1.bf16.xpose.msra.mxu0 0
    %983 = vmatprep.subr.bf16.mxu0 0
    %984 = vmatpush1.bf16.xpose.msra.mxu0 0
    %985 = vmatprep.subr.bf16.mxu0 0
    %986 = vmatpush1.bf16.xpose.msra.mxu0 %v969
    %987 = vmatprep.subr.bf16.mxu0 0
    %988 = vmatpush2.bf16.xpose.msra.mxu0 0
    %989 = vmatprep.subr.bf16.mxu0 0
    %990 = vmatpush2.bf16.xpose.msra.mxu0 0
    %991 = vmatprep.subr.bf16.mxu0 0
    %992 = vmatpush2.bf16.xpose.msra.mxu0 0
    %993 = vmatprep.subr.bf16.mxu0 0
    %994 = vmatpush2.bf16.xpose.msra.mxu0 0
    %995 = vmatprep.subr.bf16.mxu0 0
    %996 = vmatpush2.bf16.xpose.msra.mxu0 0
    %997 = vmatprep.subr.bf16.mxu0 0
    %998 = vmatpush2.bf16.xpose.msra.mxu0 0
    %999 = vmatprep.subr.bf16.mxu0 0
    %1000 = vmatpush2.bf16.xpose.msra.mxu0 0
    %1001 = vmatprep.subr.bf16.mxu0 0
    %1002 = vmatpush2.bf16.xpose.msra.mxu0 0
    %1003 = vmatprep.mubr.bf16.mxu0 0
    %1004 = vmatmul.mubr.bf16.gmra.mxu0 %v966
    %v1005 = vpop.f32.mrf.mxu0
    %v1006 = vadd.f32 0.0, %v1005
    %v1007 = vpop.f32.mrf.mxu0
    %v1008 = vpop.f32.mrf.mxu0
    %v1009 = vadd.f32 0.0, %v1008
    %v1010 = vpop.f32.mrf.mxu0
    %1011 = vdwg.mxu0
    %1013 = vrot.lane.b32.xlu0 %v382, 96
    %v1014 = vpop.permute.xlu0 %1013
    %1016 = vrot.lane.b32.xlu0 %v386, 96
    %v1017 = vpop.permute.xlu0 %1016
    %v1019 = vsel %vm391, %v1014, 0
    %v1022 = vsel %vm391, %v1017, 0
    %1024 = vmatprep.subr.bf16.mxu0 0
    %1025 = vmatpush1.bf16.xpose.msra.mxu0 0
    %1026 = vmatprep.subr.bf16.mxu0 0
    %1027 = vmatpush1.bf16.xpose.msra.mxu0 0
    %1028 = vmatprep.subr.bf16.mxu0 0
    %1029 = vmatpush1.bf16.xpose.msra.mxu0 0
    %1030 = vmatprep.subr.bf16.mxu0 0
    %1031 = vmatpush1.bf16.xpose.msra.mxu0 0
    %1032 = vmatprep.subr.bf16.mxu0 0
    %1033 = vmatpush1.bf16.xpose.msra.mxu0 0
    %1034 = vmatprep.subr.bf16.mxu0 0
    %1035 = vmatpush1.bf16.xpose.msra.mxu0 0
    %1036 = vmatprep.subr.bf16.mxu0 0
    %1037 = vmatpush1.bf16.xpose.msra.mxu0 0
    %1038 = vmatprep.subr.bf16.mxu0 0
    %1039 = vmatpush1.bf16.xpose.msra.mxu0 %v1022
    %1040 = vmatprep.subr.bf16.mxu0 0
    %1041 = vmatpush2.bf16.xpose.msra.mxu0 0
    %1042 = vmatprep.subr.bf16.mxu0 0
    %1043 = vmatpush2.bf16.xpose.msra.mxu0 0
    %1044 = vmatprep.subr.bf16.mxu0 0
    %1045 = vmatpush2.bf16.xpose.msra.mxu0 0
    %1046 = vmatprep.subr.bf16.mxu0 0
    %1047 = vmatpush2.bf16.xpose.msra.mxu0 0
    %1048 = vmatprep.subr.bf16.mxu0 0
    %1049 = vmatpush2.bf16.xpose.msra.mxu0 0
    %1050 = vmatprep.subr.bf16.mxu0 0
    %1051 = vmatpush2.bf16.xpose.msra.mxu0 0
    %1052 = vmatprep.subr.bf16.mxu0 0
    %1053 = vmatpush2.bf16.xpose.msra.mxu0 0
    %1054 = vmatprep.subr.bf16.mxu0 0
    %1055 = vmatpush2.bf16.xpose.msra.mxu0 0
    %1056 = vmatprep.mubr.bf16.mxu0 0
    %1057 = vmatmul.mubr.bf16.gmra.mxu0 %v1019
    %v1058 = vpop.f32.mrf.mxu0
    %v1059 = vadd.f32 0.0, %v1058
    %v1060 = vpop.f32.mrf.mxu0
    %v1061 = vpop.f32.mrf.mxu0
    %v1062 = vadd.f32 0.0, %v1061
    %v1063 = vpop.f32.mrf.mxu0
    %1064 = vdwg.mxu0
    %v1065 = vsel %vm580, %v900, -inf
    %1066 = vmax.xlane.f32.xlu0 %v1065
    %v1067 = vpop.xlane.xlu0 %1066
    %v1068 = vsel %vm580, %v903, -inf
    %1069 = vmax.xlane.f32.xlu0 %v1068
    %v1070 = vpop.xlane.xlu0 %1069
    %v1071 = vsel %vm580, %v953, -inf
    %1072 = vmax.xlane.f32.xlu0 %v1071
    %v1073 = vpop.xlane.xlu0 %1072
    %v1074 = vsel %vm580, %v956, -inf
    %1075 = vmax.xlane.f32.xlu0 %v1074
    %v1076 = vpop.xlane.xlu0 %1075
    %v1077 = vsel %vm580, %v1006, -inf
    %1078 = vmax.xlane.f32.xlu0 %v1077
    %v1079 = vpop.xlane.xlu0 %1078
    %v1080 = vsel %vm580, %v1009, -inf
    %1081 = vmax.xlane.f32.xlu0 %v1080
    %v1082 = vpop.xlane.xlu0 %1081
    %v1083 = vsel %vm580, %v1059, -inf
    %1084 = vmax.xlane.f32.xlu0 %v1083
    %v1085 = vpop.xlane.xlu0 %1084
    %v1086 = vsel %vm580, %v1062, -inf
    %1087 = vmax.xlane.f32.xlu0 %v1086
    %v1088 = vpop.xlane.xlu0 %1087
    %v1089 = vsub.f32 %v900, %v1067
    %v1090 = vsub.f32 %v903, %v1070
    %v1091 = vsub.f32 %v953, %v1073
    %v1092 = vsub.f32 %v956, %v1076
    %v1093 = vsub.f32 %v1006, %v1079
    %v1094 = vsub.f32 %v1009, %v1082
    %v1095 = vsub.f32 %v1059, %v1085
    %v1096 = vsub.f32 %v1062, %v1088
    %v1097 = vmul.f32 %v1089, 1.442695
    %v1098 = vpow.pop %v1097
    %v1099 = vmul.f32 %v1090, 1.442695
    %v1100 = vpow.pop %v1099
    %v1101 = vmul.f32 %v1091, 1.442695
    %v1102 = vpow.pop %v1101
    %v1103 = vmul.f32 %v1092, 1.442695
    %v1104 = vpow.pop %v1103
    %v1105 = vmul.f32 %v1093, 1.442695
    %v1106 = vpow.pop %v1105
    %v1107 = vmul.f32 %v1094, 1.442695
    %v1108 = vpow.pop %v1107
    %v1109 = vmul.f32 %v1095, 1.442695
    %v1110 = vpow.pop %v1109
    %v1111 = vmul.f32 %v1096, 1.442695
    %v1112 = vpow.pop %v1111
    %v1113 = vsel %vm580, %v1098, 0.0
    %1114 = vadd.xlane.f32.xlu0 %v1113
    %v1115 = vpop.xlane.xlu0 %1114
    %v1116 = vsel %vm580, %v1100, 0.0
    %1117 = vadd.xlane.f32.xlu0 %v1116
    %v1118 = vpop.xlane.xlu0 %1117
    %v1119 = vsel %vm580, %v1102, 0.0
    %1120 = vadd.xlane.f32.xlu0 %v1119
    %v1121 = vpop.xlane.xlu0 %1120
    %v1122 = vsel %vm580, %v1104, 0.0
    %1123 = vadd.xlane.f32.xlu0 %v1122
    %v1124 = vpop.xlane.xlu0 %1123
    %v1125 = vsel %vm580, %v1106, 0.0
    %1126 = vadd.xlane.f32.xlu0 %v1125
    %v1127 = vpop.xlane.xlu0 %1126
    %v1128 = vsel %vm580, %v1108, 0.0
    %1129 = vadd.xlane.f32.xlu0 %v1128
    %v1130 = vpop.xlane.xlu0 %1129
    %v1131 = vsel %vm580, %v1110, 0.0
    %1132 = vadd.xlane.f32.xlu0 %v1131
    %v1133 = vpop.xlane.xlu0 %1132
    %v1134 = vsel %vm580, %v1112, 0.0
    %1135 = vadd.xlane.f32.xlu0 %v1134
    %v1136 = vpop.xlane.xlu0 %1135
    %v1137 = vrcp.pop %v1115
    %v1138 = vrcp.pop %v1118
    %v1139 = vrcp.pop %v1121
    %v1140 = vrcp.pop %v1124
    %v1141 = vrcp.pop %v1127
    %v1142 = vrcp.pop %v1130
    %v1143 = vrcp.pop %v1133
    %v1144 = vrcp.pop %v1136
    %v1145 = vmul.f32 %v1098, %v1137
    %v1146 = vmul.f32 %v1100, %v1138
    %v1147 = vmul.f32 %v1102, %v1139
    %v1148 = vmul.f32 %v1104, %v1140
    %v1149 = vmul.f32 %v1106, %v1141
    %v1150 = vmul.f32 %v1108, %v1142
    %v1151 = vmul.f32 %v1110, %v1143
    %v1152 = vmul.f32 %v1112, %v1144
    %v1153 = vpack.c.bf16 %v1146, %v1145
    %v1154 = vpack.c.bf16 %v1148, %v1147
    %v1155 = vpack.c.bf16 %v1150, %v1149
    %v1156 = vpack.c.bf16 %v1152, %v1151
    %1158 = vrot.lane.b32.xlu0 %v387, 96
    %v1159 = vpop.permute.xlu0 %1158
    %v1162 = vsel %vm580, %v1153, 0
    %1164 = vmatprep.subr.bf16.mxu0 0
    %1165 = vmatpush1.bf16.msra.mxu0 0
    %1166 = vmatprep.subr.bf16.mxu0 0
    %1167 = vmatpush1.bf16.msra.mxu0 0
    %1168 = vmatprep.subr.bf16.mxu0 0
    %1169 = vmatpush1.bf16.msra.mxu0 0
    %1170 = vmatprep.subr.bf16.mxu0 0
    %1171 = vmatpush1.bf16.msra.mxu0 0
    %1172 = vmatprep.subr.bf16.mxu0 0
    %1173 = vmatpush1.bf16.msra.mxu0 0
    %1174 = vmatprep.subr.bf16.mxu0 0
    %1175 = vmatpush1.bf16.msra.mxu0 0
    %1176 = vmatprep.subr.bf16.mxu0 0
    %1177 = vmatpush1.bf16.msra.mxu0 0
    %1178 = vmatprep.subr.bf16.mxu0 0
    %1179 = vmatpush1.bf16.msra.mxu0 %v1159
    %1180 = vmatprep.subr.bf16.mxu0 0
    %1181 = vmatpush2.bf16.msra.mxu0 0
    %1182 = vmatprep.subr.bf16.mxu0 0
    %1183 = vmatpush2.bf16.msra.mxu0 0
    %1184 = vmatprep.subr.bf16.mxu0 0
    %1185 = vmatpush2.bf16.msra.mxu0 0
    %1186 = vmatprep.subr.bf16.mxu0 0
    %1187 = vmatpush2.bf16.msra.mxu0 0
    %1188 = vmatprep.subr.bf16.mxu0 0
    %1189 = vmatpush2.bf16.msra.mxu0 0
    %1190 = vmatprep.subr.bf16.mxu0 0
    %1191 = vmatpush2.bf16.msra.mxu0 0
    %1192 = vmatprep.subr.bf16.mxu0 0
    %1193 = vmatpush2.bf16.msra.mxu0 0
    %1194 = vmatprep.subr.bf16.mxu0 0
    %1195 = vmatpush2.bf16.msra.mxu0 0
    %1196 = vmatprep.mubr.bf16.mxu0 0
    %1197 = vmatmul.mubr.bf16.gmra.mxu0 %v1162
    %v1198 = vpop.f32.mrf.mxu0
    %v1199 = vadd.f32 0.0, %v1198
    %v1200 = vpop.f32.mrf.mxu0
    %v1201 = vpop.f32.mrf.mxu0
    %v1202 = vadd.f32 0.0, %v1201
    %v1203 = vpop.f32.mrf.mxu0
    %1204 = vdwg.mxu0
    %1206 = vrot.lane.b32.xlu0 %v388, 96
    %v1207 = vpop.permute.xlu0 %1206
    %v1210 = vsel %vm580, %v1154, 0
    %1212 = vmatprep.subr.bf16.mxu0 0
    %1213 = vmatpush1.bf16.msra.mxu0 0
    %1214 = vmatprep.subr.bf16.mxu0 0
    %1215 = vmatpush1.bf16.msra.mxu0 0
    %1216 = vmatprep.subr.bf16.mxu0 0
    %1217 = vmatpush1.bf16.msra.mxu0 0
    %1218 = vmatprep.subr.bf16.mxu0 0
    %1219 = vmatpush1.bf16.msra.mxu0 0
    %1220 = vmatprep.subr.bf16.mxu0 0
    %1221 = vmatpush1.bf16.msra.mxu0 0
    %1222 = vmatprep.subr.bf16.mxu0 0
    %1223 = vmatpush1.bf16.msra.mxu0 0
    %1224 = vmatprep.subr.bf16.mxu0 0
    %1225 = vmatpush1.bf16.msra.mxu0 0
    %1226 = vmatprep.subr.bf16.mxu0 0
    %1227 = vmatpush1.bf16.msra.mxu0 %v1207
    %1228 = vmatprep.subr.bf16.mxu0 0
    %1229 = vmatpush2.bf16.msra.mxu0 0
    %1230 = vmatprep.subr.bf16.mxu0 0
    %1231 = vmatpush2.bf16.msra.mxu0 0
    %1232 = vmatprep.subr.bf16.mxu0 0
    %1233 = vmatpush2.bf16.msra.mxu0 0
    %1234 = vmatprep.subr.bf16.mxu0 0
    %1235 = vmatpush2.bf16.msra.mxu0 0
    %1236 = vmatprep.subr.bf16.mxu0 0
    %1237 = vmatpush2.bf16.msra.mxu0 0
    %1238 = vmatprep.subr.bf16.mxu0 0
    %1239 = vmatpush2.bf16.msra.mxu0 0
    %1240 = vmatprep.subr.bf16.mxu0 0
    %1241 = vmatpush2.bf16.msra.mxu0 0
    %1242 = vmatprep.subr.bf16.mxu0 0
    %1243 = vmatpush2.bf16.msra.mxu0 0
    %1244 = vmatprep.mubr.bf16.mxu0 0
    %1245 = vmatmul.mubr.bf16.gmra.mxu0 %v1210
    %v1246 = vpop.f32.mrf.mxu0
    %v1247 = vadd.f32 0.0, %v1246
    %v1248 = vpop.f32.mrf.mxu0
    %v1249 = vpop.f32.mrf.mxu0
    %v1250 = vadd.f32 0.0, %v1249
    %v1251 = vpop.f32.mrf.mxu0
    %1252 = vdwg.mxu0
    %1254 = vrot.lane.b32.xlu0 %v389, 96
    %v1255 = vpop.permute.xlu0 %1254
    %v1258 = vsel %vm580, %v1155, 0
    %1260 = vmatprep.subr.bf16.mxu0 0
    %1261 = vmatpush1.bf16.msra.mxu0 0
    %1262 = vmatprep.subr.bf16.mxu0 0
    %1263 = vmatpush1.bf16.msra.mxu0 0
    %1264 = vmatprep.subr.bf16.mxu0 0
    %1265 = vmatpush1.bf16.msra.mxu0 0
    %1266 = vmatprep.subr.bf16.mxu0 0
    %1267 = vmatpush1.bf16.msra.mxu0 0
    %1268 = vmatprep.subr.bf16.mxu0 0
    %1269 = vmatpush1.bf16.msra.mxu0 0
    %1270 = vmatprep.subr.bf16.mxu0 0
    %1271 = vmatpush1.bf16.msra.mxu0 0
    %1272 = vmatprep.subr.bf16.mxu0 0
    %1273 = vmatpush1.bf16.msra.mxu0 0
    %1274 = vmatprep.subr.bf16.mxu0 0
    %1275 = vmatpush1.bf16.msra.mxu0 %v1255
    %1276 = vmatprep.subr.bf16.mxu0 0
    %1277 = vmatpush2.bf16.msra.mxu0 0
    %1278 = vmatprep.subr.bf16.mxu0 0
    %1279 = vmatpush2.bf16.msra.mxu0 0
    %1280 = vmatprep.subr.bf16.mxu0 0
    %1281 = vmatpush2.bf16.msra.mxu0 0
    %1282 = vmatprep.subr.bf16.mxu0 0
    %1283 = vmatpush2.bf16.msra.mxu0 0
    %1284 = vmatprep.subr.bf16.mxu0 0
    %1285 = vmatpush2.bf16.msra.mxu0 0
    %1286 = vmatprep.subr.bf16.mxu0 0
    %1287 = vmatpush2.bf16.msra.mxu0 0
    %1288 = vmatprep.subr.bf16.mxu0 0
    %1289 = vmatpush2.bf16.msra.mxu0 0
    %1290 = vmatprep.subr.bf16.mxu0 0
    %1291 = vmatpush2.bf16.msra.mxu0 0
    %1292 = vmatprep.mubr.bf16.mxu0 0
    %1293 = vmatmul.mubr.bf16.gmra.mxu0 %v1258
    %v1294 = vpop.f32.mrf.mxu0
    %v1295 = vadd.f32 0.0, %v1294
    %v1296 = vpop.f32.mrf.mxu0
    %v1297 = vpop.f32.mrf.mxu0
    %v1298 = vadd.f32 0.0, %v1297
    %v1299 = vpop.f32.mrf.mxu0
    %1300 = vdwg.mxu0
    %1302 = vrot.lane.b32.xlu0 %v390, 96
    %v1303 = vpop.permute.xlu0 %1302
    %v1306 = vsel %vm580, %v1156, 0
    %1308 = vmatprep.subr.bf16.mxu0 0
    %1309 = vmatpush1.bf16.msra.mxu0 0
    %1310 = vmatprep.subr.bf16.mxu0 0
    %1311 = vmatpush1.bf16.msra.mxu0 0
    %1312 = vmatprep.subr.bf16.mxu0 0
    %1313 = vmatpush1.bf16.msra.mxu0 0
    %1314 = vmatprep.subr.bf16.mxu0 0
    %1315 = vmatpush1.bf16.msra.mxu0 0
    %1316 = vmatprep.subr.bf16.mxu0 0
    %1317 = vmatpush1.bf16.msra.mxu0 0
    %1318 = vmatprep.subr.bf16.mxu0 0
    %1319 = vmatpush1.bf16.msra.mxu0 0
    %1320 = vmatprep.subr.bf16.mxu0 0
    %1321 = vmatpush1.bf16.msra.mxu0 0
    %1322 = vmatprep.subr.bf16.mxu0 0
    %1323 = vmatpush1.bf16.msra.mxu0 %v1303
    %1324 = vmatprep.subr.bf16.mxu0 0
    %1325 = vmatpush2.bf16.msra.mxu0 0
    %1326 = vmatprep.subr.bf16.mxu0 0
    %1327 = vmatpush2.bf16.msra.mxu0 0
    %1328 = vmatprep.subr.bf16.mxu0 0
    %1329 = vmatpush2.bf16.msra.mxu0 0
    %1330 = vmatprep.subr.bf16.mxu0 0
    %1331 = vmatpush2.bf16.msra.mxu0 0
    %1332 = vmatprep.subr.bf16.mxu0 0
    %1333 = vmatpush2.bf16.msra.mxu0 0
    %1334 = vmatprep.subr.bf16.mxu0 0
    %1335 = vmatpush2.bf16.msra.mxu0 0
    %1336 = vmatprep.subr.bf16.mxu0 0
    %1337 = vmatpush2.bf16.msra.mxu0 0
    %1338 = vmatprep.subr.bf16.mxu0 0
    %1339 = vmatpush2.bf16.msra.mxu0 0
    %1340 = vmatprep.mubr.bf16.mxu0 0
    %1341 = vmatmul.mubr.bf16.gmra.mxu0 %v1306
    %v1342 = vpop.f32.mrf.mxu0
    %v1343 = vadd.f32 0.0, %v1342
    %v1344 = vpop.f32.mrf.mxu0
    %v1345 = vpop.f32.mrf.mxu0
    %v1346 = vadd.f32 0.0, %v1345
    %v1347 = vpop.f32.mrf.mxu0
    %1348 = vdwg.mxu0
    %v1349 = vpack.c.bf16 %v1202, %v1199
    %v1350 = vpack.c.bf16 %v1250, %v1247
    %v1351 = vpack.c.bf16 %v1298, %v1295
    %v1352 = vpack.c.bf16 %v1346, %v1343
    %v1357 = vunpack.c.l.b16 %v71
    %v1358 = vunpack.c.l.b16 %v72
    %v1359 = vunpack.c.l.b16 %v73
    %v1360 = vunpack.c.l.b16 %v74
    %v1361 = vpack.c.b16 %v1358, %v1357
    %v1362 = vpack.c.b16 %v1360, %v1359
    %v1366 = vsel %vm391, %v1349, 0
    %v1369 = vsel %vm391, %v1350, 0
    %v1372 = vsel %vm391, %v1351, 0
    %v1375 = vsel %vm391, %v1352, 0
    %1377 = vmatprep.subr.bf16.mxu0 0
    %1378 = vmatpush1.bf16.msra.mxu0 0
    %1379 = vmatprep.subr.bf16.mxu0 0
    %1380 = vmatpush1.bf16.msra.mxu0 0
    %1381 = vmatprep.subr.bf16.mxu0 0
    %1382 = vmatpush1.bf16.msra.mxu0 0
    %1383 = vmatprep.subr.bf16.mxu0 0
    %1384 = vmatpush1.bf16.msra.mxu0 0
    %1385 = vmatprep.subr.bf16.mxu0 0
    %1386 = vmatpush1.bf16.msra.mxu0 0
    %1387 = vmatprep.subr.bf16.mxu0 0
    %1388 = vmatpush1.bf16.msra.mxu0 0
    %1389 = vmatprep.subr.bf16.mxu0 0
    %1390 = vmatpush1.bf16.msra.mxu0 %v1362
    %1391 = vmatprep.subr.bf16.mxu0 0
    %1392 = vmatpush1.bf16.msra.mxu0 %v1361
    %1393 = vmatprep.subr.bf16.mxu0 0
    %1394 = vmatpush2.bf16.msra.mxu0 0
    %1395 = vmatprep.subr.bf16.mxu0 0
    %1396 = vmatpush2.bf16.msra.mxu0 0
    %1397 = vmatprep.subr.bf16.mxu0 0
    %1398 = vmatpush2.bf16.msra.mxu0 0
    %1399 = vmatprep.subr.bf16.mxu0 0
    %1400 = vmatpush2.bf16.msra.mxu0 0
    %1401 = vmatprep.subr.bf16.mxu0 0
    %1402 = vmatpush2.bf16.msra.mxu0 0
    %1403 = vmatprep.subr.bf16.mxu0 0
    %1404 = vmatpush2.bf16.msra.mxu0 0
    %1405 = vmatprep.subr.bf16.mxu0 0
    %1406 = vmatpush2.bf16.msra.mxu0 0
    %1407 = vmatprep.subr.bf16.mxu0 0
    %1408 = vmatpush2.bf16.msra.mxu0 0
    %1409 = vmatprep.mubr.bf16.mxu0 0
    %1410 = vmatmul.mubr.bf16.gmra.mxu0 %v1366
    %v1411 = vpop.f32.mrf.mxu0
    %v1412 = vadd.f32 0.0, %v1411
    %v1413 = vpop.f32.mrf.mxu0
    %v1414 = vpop.f32.mrf.mxu0
    %v1415 = vadd.f32 0.0, %v1414
    %v1416 = vpop.f32.mrf.mxu0
    %1417 = vmatprep.mubr.bf16.mxu0 0
    %1418 = vmatmul.mubr.bf16.gmra.mxu0 %v1369
    %v1419 = vpop.f32.mrf.mxu0
    %v1420 = vadd.f32 0.0, %v1419
    %v1421 = vpop.f32.mrf.mxu0
    %v1422 = vpop.f32.mrf.mxu0
    %v1423 = vadd.f32 0.0, %v1422
    %v1424 = vpop.f32.mrf.mxu0
    %1425 = vmatprep.mubr.bf16.mxu0 0
    %1426 = vmatmul.mubr.bf16.gmra.mxu0 %v1372
    %v1427 = vpop.f32.mrf.mxu0
    %v1428 = vadd.f32 0.0, %v1427
    %v1429 = vpop.f32.mrf.mxu0
    %v1430 = vpop.f32.mrf.mxu0
    %v1431 = vadd.f32 0.0, %v1430
    %v1432 = vpop.f32.mrf.mxu0
    %1433 = vmatprep.mubr.bf16.mxu0 0
    %1434 = vmatmul.mubr.bf16.gmra.mxu0 %v1375
    %v1435 = vpop.f32.mrf.mxu0
    %v1436 = vadd.f32 0.0, %v1435
    %v1437 = vpop.f32.mrf.mxu0
    %v1438 = vpop.f32.mrf.mxu0
    %v1439 = vadd.f32 0.0, %v1438
    %v1440 = vpop.f32.mrf.mxu0
    %1441 = vdwg.mxu0
    %v1446 = vunpack.c.l.b16 %v67
    %v1447 = vunpack.c.l.b16 %v68
    %v1448 = vunpack.c.l.b16 %v69
    %v1449 = vunpack.c.l.b16 %v70
    %v1450 = vpack.c.b16 %v1447, %v1446
    %v1451 = vpack.c.b16 %v1449, %v1448
    %v1455 = vsel %vm391, %v849, 0
    %v1458 = vsel %vm391, %v850, 0
    %v1461 = vsel %vm391, %v851, 0
    %v1464 = vsel %vm391, %v852, 0
    %1466 = vmatprep.subr.bf16.mxu0 0
    %1467 = vmatpush1.bf16.msra.mxu0 0
    %1468 = vmatprep.subr.bf16.mxu0 0
    %1469 = vmatpush1.bf16.msra.mxu0 0
    %1470 = vmatprep.subr.bf16.mxu0 0
    %1471 = vmatpush1.bf16.msra.mxu0 0
    %1472 = vmatprep.subr.bf16.mxu0 0
    %1473 = vmatpush1.bf16.msra.mxu0 0
    %1474 = vmatprep.subr.bf16.mxu0 0
    %1475 = vmatpush1.bf16.msra.mxu0 0
    %1476 = vmatprep.subr.bf16.mxu0 0
    %1477 = vmatpush1.bf16.msra.mxu0 0
    %1478 = vmatprep.subr.bf16.mxu0 0
    %1479 = vmatpush1.bf16.msra.mxu0 %v1451
    %1480 = vmatprep.subr.bf16.mxu0 0
    %1481 = vmatpush1.bf16.msra.mxu0 %v1450
    %1482 = vmatprep.subr.bf16.mxu0 0
    %1483 = vmatpush2.bf16.msra.mxu0 0
    %1484 = vmatprep.subr.bf16.mxu0 0
    %1485 = vmatpush2.bf16.msra.mxu0 0
    %1486 = vmatprep.subr.bf16.mxu0 0
    %1487 = vmatpush2.bf16.msra.mxu0 0
    %1488 = vmatprep.subr.bf16.mxu0 0
    %1489 = vmatpush2.bf16.msra.mxu0 0
    %1490 = vmatprep.subr.bf16.mxu0 0
    %1491 = vmatpush2.bf16.msra.mxu0 0
    %1492 = vmatprep.subr.bf16.mxu0 0
    %1493 = vmatpush2.bf16.msra.mxu0 0
    %1494 = vmatprep.subr.bf16.mxu0 0
    %1495 = vmatpush2.bf16.msra.mxu0 0
    %1496 = vmatprep.subr.bf16.mxu0 0
    %1497 = vmatpush2.bf16.msra.mxu0 0
    %1498 = vmatprep.mubr.bf16.mxu0 0
    %1499 = vmatmul.mubr.bf16.gmra.mxu0 %v1455
    %v1500 = vpop.f32.mrf.mxu0
    %v1501 = vadd.f32 %v1412, %v1500
    %v1502 = vpop.f32.mrf.mxu0
    %v1503 = vpop.f32.mrf.mxu0
    %v1504 = vadd.f32 %v1415, %v1503
    %v1505 = vpop.f32.mrf.mxu0
    %1506 = vmatprep.mubr.bf16.mxu0 0
    %1507 = vmatmul.mubr.bf16.gmra.mxu0 %v1458
    %v1508 = vpop.f32.mrf.mxu0
    %v1509 = vadd.f32 %v1420, %v1508
    %v1510 = vpop.f32.mrf.mxu0
    %v1511 = vpop.f32.mrf.mxu0
    %v1512 = vadd.f32 %v1423, %v1511
    %v1513 = vpop.f32.mrf.mxu0
    %1514 = vmatprep.mubr.bf16.mxu0 0
    %1515 = vmatmul.mubr.bf16.gmra.mxu0 %v1461
    %v1516 = vpop.f32.mrf.mxu0
    %v1517 = vadd.f32 %v1428, %v1516
    %v1518 = vpop.f32.mrf.mxu0
    %v1519 = vpop.f32.mrf.mxu0
    %v1520 = vadd.f32 %v1431, %v1519
    %v1521 = vpop.f32.mrf.mxu0
    %1522 = vmatprep.mubr.bf16.mxu0 0
    %1523 = vmatmul.mubr.bf16.gmra.mxu0 %v1464
    %v1524 = vpop.f32.mrf.mxu0
    %v1525 = vadd.f32 %v1436, %v1524
    %v1526 = vpop.f32.mrf.mxu0
    %v1527 = vpop.f32.mrf.mxu0
    %v1528 = vadd.f32 %v1439, %v1527
    %v1529 = vpop.f32.mrf.mxu0
    %1530 = vdwg.mxu0
    %1531 = vrot.lane.b32.xlu0 %v379, 64
    %v1532 = vpop.permute.xlu0 %1531
    %1533 = vrot.lane.b32.xlu0 %v383, 64
    %v1534 = vpop.permute.xlu0 %1533
    %v1536 = vsel %vm391, %v1532, 0
    %v1539 = vsel %vm391, %v1534, 0
    %1541 = vmatprep.subr.bf16.mxu0 0
    %1542 = vmatpush1.bf16.xpose.msra.mxu0 0
    %1543 = vmatprep.subr.bf16.mxu0 0
    %1544 = vmatpush1.bf16.xpose.msra.mxu0 0
    %1545 = vmatprep.subr.bf16.mxu0 0
    %1546 = vmatpush1.bf16.xpose.msra.mxu0 0
    %1547 = vmatprep.subr.bf16.mxu0 0
    %1548 = vmatpush1.bf16.xpose.msra.mxu0 0
    %1549 = vmatprep.subr.bf16.mxu0 0
    %1550 = vmatpush1.bf16.xpose.msra.mxu0 0
    %1551 = vmatprep.subr.bf16.mxu0 0
    %1552 = vmatpush1.bf16.xpose.msra.mxu0 0
    %1553 = vmatprep.subr.bf16.mxu0 0
    %1554 = vmatpush1.bf16.xpose.msra.mxu0 0
    %1555 = vmatprep.subr.bf16.mxu0 0
    %1556 = vmatpush1.bf16.xpose.msra.mxu0 %v1539
    %1557 = vmatprep.subr.bf16.mxu0 0
    %1558 = vmatpush2.bf16.xpose.msra.mxu0 0
    %1559 = vmatprep.subr.bf16.mxu0 0
    %1560 = vmatpush2.bf16.xpose.msra.mxu0 0
    %1561 = vmatprep.subr.bf16.mxu0 0
    %1562 = vmatpush2.bf16.xpose.msra.mxu0 0
    %1563 = vmatprep.subr.bf16.mxu0 0
    %1564 = vmatpush2.bf16.xpose.msra.mxu0 0
    %1565 = vmatprep.subr.bf16.mxu0 0
    %1566 = vmatpush2.bf16.xpose.msra.mxu0 0
    %1567 = vmatprep.subr.bf16.mxu0 0
    %1568 = vmatpush2.bf16.xpose.msra.mxu0 0
    %1569 = vmatprep.subr.bf16.mxu0 0
    %1570 = vmatpush2.bf16.xpose.msra.mxu0 0
    %1571 = vmatprep.subr.bf16.mxu0 0
    %1572 = vmatpush2.bf16.xpose.msra.mxu0 0
    %1573 = vmatprep.mubr.bf16.mxu0 0
    %1574 = vmatmul.mubr.bf16.gmra.mxu0 %v1536
    %v1575 = vpop.f32.mrf.mxu0
    %v1576 = vadd.f32 0.0, %v1575
    %v1577 = vpop.f32.mrf.mxu0
    %v1578 = vpop.f32.mrf.mxu0
    %v1579 = vadd.f32 0.0, %v1578
    %v1580 = vpop.f32.mrf.mxu0
    %1581 = vdwg.mxu0
    %1582 = vrot.lane.b32.xlu0 %v380, 64
    %v1583 = vpop.permute.xlu0 %1582
    %1584 = vrot.lane.b32.xlu0 %v384, 64
    %v1585 = vpop.permute.xlu0 %1584
    %v1587 = vsel %vm391, %v1583, 0
    %v1590 = vsel %vm391, %v1585, 0
    %1592 = vmatprep.subr.bf16.mxu0 0
    %1593 = vmatpush1.bf16.xpose.msra.mxu0 0
    %1594 = vmatprep.subr.bf16.mxu0 0
    %1595 = vmatpush1.bf16.xpose.msra.mxu0 0
    %1596 = vmatprep.subr.bf16.mxu0 0
    %1597 = vmatpush1.bf16.xpose.msra.mxu0 0
    %1598 = vmatprep.subr.bf16.mxu0 0
    %1599 = vmatpush1.bf16.xpose.msra.mxu0 0
    %1600 = vmatprep.subr.bf16.mxu0 0
    %1601 = vmatpush1.bf16.xpose.msra.mxu0 0
    %1602 = vmatprep.subr.bf16.mxu0 0
    %1603 = vmatpush1.bf16.xpose.msra.mxu0 0
    %1604 = vmatprep.subr.bf16.mxu0 0
    %1605 = vmatpush1.bf16.xpose.msra.mxu0 0
    %1606 = vmatprep.subr.bf16.mxu0 0
    %1607 = vmatpush1.bf16.xpose.msra.mxu0 %v1590
    %1608 = vmatprep.subr.bf16.mxu0 0
    %1609 = vmatpush2.bf16.xpose.msra.mxu0 0
    %1610 = vmatprep.subr.bf16.mxu0 0
    %1611 = vmatpush2.bf16.xpose.msra.mxu0 0
    %1612 = vmatprep.subr.bf16.mxu0 0
    %1613 = vmatpush2.bf16.xpose.msra.mxu0 0
    %1614 = vmatprep.subr.bf16.mxu0 0
    %1615 = vmatpush2.bf16.xpose.msra.mxu0 0
    %1616 = vmatprep.subr.bf16.mxu0 0
    %1617 = vmatpush2.bf16.xpose.msra.mxu0 0
    %1618 = vmatprep.subr.bf16.mxu0 0
    %1619 = vmatpush2.bf16.xpose.msra.mxu0 0
    %1620 = vmatprep.subr.bf16.mxu0 0
    %1621 = vmatpush2.bf16.xpose.msra.mxu0 0
    %1622 = vmatprep.subr.bf16.mxu0 0
    %1623 = vmatpush2.bf16.xpose.msra.mxu0 0
    %1624 = vmatprep.mubr.bf16.mxu0 0
    %1625 = vmatmul.mubr.bf16.gmra.mxu0 %v1587
    %v1626 = vpop.f32.mrf.mxu0
    %v1627 = vadd.f32 0.0, %v1626
    %v1628 = vpop.f32.mrf.mxu0
    %v1629 = vpop.f32.mrf.mxu0
    %v1630 = vadd.f32 0.0, %v1629
    %v1631 = vpop.f32.mrf.mxu0
    %1632 = vdwg.mxu0
    %1633 = vrot.lane.b32.xlu0 %v381, 64
    %v1634 = vpop.permute.xlu0 %1633
    %1635 = vrot.lane.b32.xlu0 %v385, 64
    %v1636 = vpop.permute.xlu0 %1635
    %v1638 = vsel %vm391, %v1634, 0
    %v1641 = vsel %vm391, %v1636, 0
    %1643 = vmatprep.subr.bf16.mxu0 0
    %1644 = vmatpush1.bf16.xpose.msra.mxu0 0
    %1645 = vmatprep.subr.bf16.mxu0 0
    %1646 = vmatpush1.bf16.xpose.msra.mxu0 0
    %1647 = vmatprep.subr.bf16.mxu0 0
    %1648 = vmatpush1.bf16.xpose.msra.mxu0 0
    %1649 = vmatprep.subr.bf16.mxu0 0
    %1650 = vmatpush1.bf16.xpose.msra.mxu0 0
    %1651 = vmatprep.subr.bf16.mxu0 0
    %1652 = vmatpush1.bf16.xpose.msra.mxu0 0
    %1653 = vmatprep.subr.bf16.mxu0 0
    %1654 = vmatpush1.bf16.xpose.msra.mxu0 0
    %1655 = vmatprep.subr.bf16.mxu0 0
    %1656 = vmatpush1.bf16.xpose.msra.mxu0 0
    %1657 = vmatprep.subr.bf16.mxu0 0
    %1658 = vmatpush1.bf16.xpose.msra.mxu0 %v1641
    %1659 = vmatprep.subr.bf16.mxu0 0
    %1660 = vmatpush2.bf16.xpose.msra.mxu0 0
    %1661 = vmatprep.subr.bf16.mxu0 0
    %1662 = vmatpush2.bf16.xpose.msra.mxu0 0
    %1663 = vmatprep.subr.bf16.mxu0 0
    %1664 = vmatpush2.bf16.xpose.msra.mxu0 0
    %1665 = vmatprep.subr.bf16.mxu0 0
    %1666 = vmatpush2.bf16.xpose.msra.mxu0 0
    %1667 = vmatprep.subr.bf16.mxu0 0
    %1668 = vmatpush2.bf16.xpose.msra.mxu0 0
    %1669 = vmatprep.subr.bf16.mxu0 0
    %1670 = vmatpush2.bf16.xpose.msra.mxu0 0
    %1671 = vmatprep.subr.bf16.mxu0 0
    %1672 = vmatpush2.bf16.xpose.msra.mxu0 0
    %1673 = vmatprep.subr.bf16.mxu0 0
    %1674 = vmatpush2.bf16.xpose.msra.mxu0 0
    %1675 = vmatprep.mubr.bf16.mxu0 0
    %1676 = vmatmul.mubr.bf16.gmra.mxu0 %v1638
    %v1677 = vpop.f32.mrf.mxu0
    %v1678 = vadd.f32 0.0, %v1677
    %v1679 = vpop.f32.mrf.mxu0
    %v1680 = vpop.f32.mrf.mxu0
    %v1681 = vadd.f32 0.0, %v1680
    %v1682 = vpop.f32.mrf.mxu0
    %1683 = vdwg.mxu0
    %1684 = vrot.lane.b32.xlu0 %v382, 64
    %v1685 = vpop.permute.xlu0 %1684
    %1686 = vrot.lane.b32.xlu0 %v386, 64
    %v1687 = vpop.permute.xlu0 %1686
    %v1689 = vsel %vm391, %v1685, 0
    %v1692 = vsel %vm391, %v1687, 0
    %1694 = vmatprep.subr.bf16.mxu0 0
    %1695 = vmatpush1.bf16.xpose.msra.mxu0 0
    %1696 = vmatprep.subr.bf16.mxu0 0
    %1697 = vmatpush1.bf16.xpose.msra.mxu0 0
    %1698 = vmatprep.subr.bf16.mxu0 0
    %1699 = vmatpush1.bf16.xpose.msra.mxu0 0
    %1700 = vmatprep.subr.bf16.mxu0 0
    %1701 = vmatpush1.bf16.xpose.msra.mxu0 0
    %1702 = vmatprep.subr.bf16.mxu0 0
    %1703 = vmatpush1.bf16.xpose.msra.mxu0 0
    %1704 = vmatprep.subr.bf16.mxu0 0
    %1705 = vmatpush1.bf16.xpose.msra.mxu0 0
    %1706 = vmatprep.subr.bf16.mxu0 0
    %1707 = vmatpush1.bf16.xpose.msra.mxu0 0
    %1708 = vmatprep.subr.bf16.mxu0 0
    %1709 = vmatpush1.bf16.xpose.msra.mxu0 %v1692
    %1710 = vmatprep.subr.bf16.mxu0 0
    %1711 = vmatpush2.bf16.xpose.msra.mxu0 0
    %1712 = vmatprep.subr.bf16.mxu0 0
    %1713 = vmatpush2.bf16.xpose.msra.mxu0 0
    %1714 = vmatprep.subr.bf16.mxu0 0
    %1715 = vmatpush2.bf16.xpose.msra.mxu0 0
    %1716 = vmatprep.subr.bf16.mxu0 0
    %1717 = vmatpush2.bf16.xpose.msra.mxu0 0
    %1718 = vmatprep.subr.bf16.mxu0 0
    %1719 = vmatpush2.bf16.xpose.msra.mxu0 0
    %1720 = vmatprep.subr.bf16.mxu0 0
    %1721 = vmatpush2.bf16.xpose.msra.mxu0 0
    %1722 = vmatprep.subr.bf16.mxu0 0
    %1723 = vmatpush2.bf16.xpose.msra.mxu0 0
    %1724 = vmatprep.subr.bf16.mxu0 0
    %1725 = vmatpush2.bf16.xpose.msra.mxu0 0
    %1726 = vmatprep.mubr.bf16.mxu0 0
    %1727 = vmatmul.mubr.bf16.gmra.mxu0 %v1689
    %v1728 = vpop.f32.mrf.mxu0
    %v1729 = vadd.f32 0.0, %v1728
    %v1730 = vpop.f32.mrf.mxu0
    %v1731 = vpop.f32.mrf.mxu0
    %v1732 = vadd.f32 0.0, %v1731
    %v1733 = vpop.f32.mrf.mxu0
    %1734 = vdwg.mxu0
    %v1735 = vsel %vm580, %v1576, -inf
    %1736 = vmax.xlane.f32.xlu0 %v1735
    %v1737 = vpop.xlane.xlu0 %1736
    %v1738 = vsel %vm580, %v1579, -inf
    %1739 = vmax.xlane.f32.xlu0 %v1738
    %v1740 = vpop.xlane.xlu0 %1739
    %v1741 = vsel %vm580, %v1627, -inf
    %1742 = vmax.xlane.f32.xlu0 %v1741
    %v1743 = vpop.xlane.xlu0 %1742
    %v1744 = vsel %vm580, %v1630, -inf
    %1745 = vmax.xlane.f32.xlu0 %v1744
    %v1746 = vpop.xlane.xlu0 %1745
    %v1747 = vsel %vm580, %v1678, -inf
    %1748 = vmax.xlane.f32.xlu0 %v1747
    %v1749 = vpop.xlane.xlu0 %1748
    %v1750 = vsel %vm580, %v1681, -inf
    %1751 = vmax.xlane.f32.xlu0 %v1750
    %v1752 = vpop.xlane.xlu0 %1751
    %v1753 = vsel %vm580, %v1729, -inf
    %1754 = vmax.xlane.f32.xlu0 %v1753
    %v1755 = vpop.xlane.xlu0 %1754
    %v1756 = vsel %vm580, %v1732, -inf
    %1757 = vmax.xlane.f32.xlu0 %v1756
    %v1758 = vpop.xlane.xlu0 %1757
    %v1759 = vsub.f32 %v1576, %v1737
    %v1760 = vsub.f32 %v1579, %v1740
    %v1761 = vsub.f32 %v1627, %v1743
    %v1762 = vsub.f32 %v1630, %v1746
    %v1763 = vsub.f32 %v1678, %v1749
    %v1764 = vsub.f32 %v1681, %v1752
    %v1765 = vsub.f32 %v1729, %v1755
    %v1766 = vsub.f32 %v1732, %v1758
    %v1767 = vmul.f32 %v1759, 1.442695
    %v1768 = vpow.pop %v1767
    %v1769 = vmul.f32 %v1760, 1.442695
    %v1770 = vpow.pop %v1769
    %v1771 = vmul.f32 %v1761, 1.442695
    %v1772 = vpow.pop %v1771
    %v1773 = vmul.f32 %v1762, 1.442695
    %v1774 = vpow.pop %v1773
    %v1775 = vmul.f32 %v1763, 1.442695
    %v1776 = vpow.pop %v1775
    %v1777 = vmul.f32 %v1764, 1.442695
    %v1778 = vpow.pop %v1777
    %v1779 = vmul.f32 %v1765, 1.442695
    %v1780 = vpow.pop %v1779
    %v1781 = vmul.f32 %v1766, 1.442695
    %v1782 = vpow.pop %v1781
    %v1783 = vsel %vm580, %v1768, 0.0
    %1784 = vadd.xlane.f32.xlu0 %v1783
    %v1785 = vpop.xlane.xlu0 %1784
    %v1786 = vsel %vm580, %v1770, 0.0
    %1787 = vadd.xlane.f32.xlu0 %v1786
    %v1788 = vpop.xlane.xlu0 %1787
    %v1789 = vsel %vm580, %v1772, 0.0
    %1790 = vadd.xlane.f32.xlu0 %v1789
    %v1791 = vpop.xlane.xlu0 %1790
    %v1792 = vsel %vm580, %v1774, 0.0
    %1793 = vadd.xlane.f32.xlu0 %v1792
    %v1794 = vpop.xlane.xlu0 %1793
    %v1795 = vsel %vm580, %v1776, 0.0
    %1796 = vadd.xlane.f32.xlu0 %v1795
    %v1797 = vpop.xlane.xlu0 %1796
    %v1798 = vsel %vm580, %v1778, 0.0
    %1799 = vadd.xlane.f32.xlu0 %v1798
    %v1800 = vpop.xlane.xlu0 %1799
    %v1801 = vsel %vm580, %v1780, 0.0
    %1802 = vadd.xlane.f32.xlu0 %v1801
    %v1803 = vpop.xlane.xlu0 %1802
    %v1804 = vsel %vm580, %v1782, 0.0
    %1805 = vadd.xlane.f32.xlu0 %v1804
    %v1806 = vpop.xlane.xlu0 %1805
    %v1807 = vrcp.pop %v1785
    %v1808 = vrcp.pop %v1788
    %v1809 = vrcp.pop %v1791
    %v1810 = vrcp.pop %v1794
    %v1811 = vrcp.pop %v1797
    %v1812 = vrcp.pop %v1800
    %v1813 = vrcp.pop %v1803
    %v1814 = vrcp.pop %v1806
    %v1815 = vmul.f32 %v1768, %v1807
    %v1816 = vmul.f32 %v1770, %v1808
    %v1817 = vmul.f32 %v1772, %v1809
    %v1818 = vmul.f32 %v1774, %v1810
    %v1819 = vmul.f32 %v1776, %v1811
    %v1820 = vmul.f32 %v1778, %v1812
    %v1821 = vmul.f32 %v1780, %v1813
    %v1822 = vmul.f32 %v1782, %v1814
    %v1823 = vpack.c.bf16 %v1816, %v1815
    %v1824 = vpack.c.bf16 %v1818, %v1817
    %v1825 = vpack.c.bf16 %v1820, %v1819
    %v1826 = vpack.c.bf16 %v1822, %v1821
    %1827 = vrot.lane.b32.xlu0 %v387, 64
    %v1828 = vpop.permute.xlu0 %1827
    %v1831 = vsel %vm580, %v1823, 0
    %1833 = vmatprep.subr.bf16.mxu0 0
    %1834 = vmatpush1.bf16.msra.mxu0 0
    %1835 = vmatprep.subr.bf16.mxu0 0
    %1836 = vmatpush1.bf16.msra.mxu0 0
    %1837 = vmatprep.subr.bf16.mxu0 0
    %1838 = vmatpush1.bf16.msra.mxu0 0
    %1839 = vmatprep.subr.bf16.mxu0 0
    %1840 = vmatpush1.bf16.msra.mxu0 0
    %1841 = vmatprep.subr.bf16.mxu0 0
    %1842 = vmatpush1.bf16.msra.mxu0 0
    %1843 = vmatprep.subr.bf16.mxu0 0
    %1844 = vmatpush1.bf16.msra.mxu0 0
    %1845 = vmatprep.subr.bf16.mxu0 0
    %1846 = vmatpush1.bf16.msra.mxu0 0
    %1847 = vmatprep.subr.bf16.mxu0 0
    %1848 = vmatpush1.bf16.msra.mxu0 %v1828
    %1849 = vmatprep.subr.bf16.mxu0 0
    %1850 = vmatpush2.bf16.msra.mxu0 0
    %1851 = vmatprep.subr.bf16.mxu0 0
    %1852 = vmatpush2.bf16.msra.mxu0 0
    %1853 = vmatprep.subr.bf16.mxu0 0
    %1854 = vmatpush2.bf16.msra.mxu0 0
    %1855 = vmatprep.subr.bf16.mxu0 0
    %1856 = vmatpush2.bf16.msra.mxu0 0
    %1857 = vmatprep.subr.bf16.mxu0 0
    %1858 = vmatpush2.bf16.msra.mxu0 0
    %1859 = vmatprep.subr.bf16.mxu0 0
    %1860 = vmatpush2.bf16.msra.mxu0 0
    %1861 = vmatprep.subr.bf16.mxu0 0
    %1862 = vmatpush2.bf16.msra.mxu0 0
    %1863 = vmatprep.subr.bf16.mxu0 0
    %1864 = vmatpush2.bf16.msra.mxu0 0
    %1865 = vmatprep.mubr.bf16.mxu0 0
    %1866 = vmatmul.mubr.bf16.gmra.mxu0 %v1831
    %v1867 = vpop.f32.mrf.mxu0
    %v1868 = vadd.f32 0.0, %v1867
    %v1869 = vpop.f32.mrf.mxu0
    %v1870 = vpop.f32.mrf.mxu0
    %v1871 = vadd.f32 0.0, %v1870
    %v1872 = vpop.f32.mrf.mxu0
    %1873 = vdwg.mxu0
    %1874 = vrot.lane.b32.xlu0 %v388, 64
    %v1875 = vpop.permute.xlu0 %1874
    %v1878 = vsel %vm580, %v1824, 0
    %1880 = vmatprep.subr.bf16.mxu0 0
    %1881 = vmatpush1.bf16.msra.mxu0 0
    %1882 = vmatprep.subr.bf16.mxu0 0
    %1883 = vmatpush1.bf16.msra.mxu0 0
    %1884 = vmatprep.subr.bf16.mxu0 0
    %1885 = vmatpush1.bf16.msra.mxu0 0
    %1886 = vmatprep.subr.bf16.mxu0 0
    %1887 = vmatpush1.bf16.msra.mxu0 0
    %1888 = vmatprep.subr.bf16.mxu0 0
    %1889 = vmatpush1.bf16.msra.mxu0 0
    %1890 = vmatprep.subr.bf16.mxu0 0
    %1891 = vmatpush1.bf16.msra.mxu0 0
    %1892 = vmatprep.subr.bf16.mxu0 0
    %1893 = vmatpush1.bf16.msra.mxu0 0
    %1894 = vmatprep.subr.bf16.mxu0 0
    %1895 = vmatpush1.bf16.msra.mxu0 %v1875
    %1896 = vmatprep.subr.bf16.mxu0 0
    %1897 = vmatpush2.bf16.msra.mxu0 0
    %1898 = vmatprep.subr.bf16.mxu0 0
    %1899 = vmatpush2.bf16.msra.mxu0 0
    %1900 = vmatprep.subr.bf16.mxu0 0
    %1901 = vmatpush2.bf16.msra.mxu0 0
    %1902 = vmatprep.subr.bf16.mxu0 0
    %1903 = vmatpush2.bf16.msra.mxu0 0
    %1904 = vmatprep.subr.bf16.mxu0 0
    %1905 = vmatpush2.bf16.msra.mxu0 0
    %1906 = vmatprep.subr.bf16.mxu0 0
    %1907 = vmatpush2.bf16.msra.mxu0 0
    %1908 = vmatprep.subr.bf16.mxu0 0
    %1909 = vmatpush2.bf16.msra.mxu0 0
    %1910 = vmatprep.subr.bf16.mxu0 0
    %1911 = vmatpush2.bf16.msra.mxu0 0
    %1912 = vmatprep.mubr.bf16.mxu0 0
    %1913 = vmatmul.mubr.bf16.gmra.mxu0 %v1878
    %v1914 = vpop.f32.mrf.mxu0
    %v1915 = vadd.f32 0.0, %v1914
    %v1916 = vpop.f32.mrf.mxu0
    %v1917 = vpop.f32.mrf.mxu0
    %v1918 = vadd.f32 0.0, %v1917
    %v1919 = vpop.f32.mrf.mxu0
    %1920 = vdwg.mxu0
    %1921 = vrot.lane.b32.xlu0 %v389, 64
    %v1922 = vpop.permute.xlu0 %1921
    %v1925 = vsel %vm580, %v1825, 0
    %1927 = vmatprep.subr.bf16.mxu0 0
    %1928 = vmatpush1.bf16.msra.mxu0 0
    %1929 = vmatprep.subr.bf16.mxu0 0
    %1930 = vmatpush1.bf16.msra.mxu0 0
    %1931 = vmatprep.subr.bf16.mxu0 0
    %1932 = vmatpush1.bf16.msra.mxu0 0
    %1933 = vmatprep.subr.bf16.mxu0 0
    %1934 = vmatpush1.bf16.msra.mxu0 0
    %1935 = vmatprep.subr.bf16.mxu0 0
    %1936 = vmatpush1.bf16.msra.mxu0 0
    %1937 = vmatprep.subr.bf16.mxu0 0
    %1938 = vmatpush1.bf16.msra.mxu0 0
    %1939 = vmatprep.subr.bf16.mxu0 0
    %1940 = vmatpush1.bf16.msra.mxu0 0
    %1941 = vmatprep.subr.bf16.mxu0 0
    %1942 = vmatpush1.bf16.msra.mxu0 %v1922
    %1943 = vmatprep.subr.bf16.mxu0 0
    %1944 = vmatpush2.bf16.msra.mxu0 0
    %1945 = vmatprep.subr.bf16.mxu0 0
    %1946 = vmatpush2.bf16.msra.mxu0 0
    %1947 = vmatprep.subr.bf16.mxu0 0
    %1948 = vmatpush2.bf16.msra.mxu0 0
    %1949 = vmatprep.subr.bf16.mxu0 0
    %1950 = vmatpush2.bf16.msra.mxu0 0
    %1951 = vmatprep.subr.bf16.mxu0 0
    %1952 = vmatpush2.bf16.msra.mxu0 0
    %1953 = vmatprep.subr.bf16.mxu0 0
    %1954 = vmatpush2.bf16.msra.mxu0 0
    %1955 = vmatprep.subr.bf16.mxu0 0
    %1956 = vmatpush2.bf16.msra.mxu0 0
    %1957 = vmatprep.subr.bf16.mxu0 0
    %1958 = vmatpush2.bf16.msra.mxu0 0
    %1959 = vmatprep.mubr.bf16.mxu0 0
    %1960 = vmatmul.mubr.bf16.gmra.mxu0 %v1925
    %v1961 = vpop.f32.mrf.mxu0
    %v1962 = vadd.f32 0.0, %v1961
    %v1963 = vpop.f32.mrf.mxu0
    %v1964 = vpop.f32.mrf.mxu0
    %v1965 = vadd.f32 0.0, %v1964
    %v1966 = vpop.f32.mrf.mxu0
    %1967 = vdwg.mxu0
    %1968 = vrot.lane.b32.xlu0 %v390, 64
    %v1969 = vpop.permute.xlu0 %1968
    %v1972 = vsel %vm580, %v1826, 0
    %1974 = vmatprep.subr.bf16.mxu0 0
    %1975 = vmatpush1.bf16.msra.mxu0 0
    %1976 = vmatprep.subr.bf16.mxu0 0
    %1977 = vmatpush1.bf16.msra.mxu0 0
    %1978 = vmatprep.subr.bf16.mxu0 0
    %1979 = vmatpush1.bf16.msra.mxu0 0
    %1980 = vmatprep.subr.bf16.mxu0 0
    %1981 = vmatpush1.bf16.msra.mxu0 0
    %1982 = vmatprep.subr.bf16.mxu0 0
    %1983 = vmatpush1.bf16.msra.mxu0 0
    %1984 = vmatprep.subr.bf16.mxu0 0
    %1985 = vmatpush1.bf16.msra.mxu0 0
    %1986 = vmatprep.subr.bf16.mxu0 0
    %1987 = vmatpush1.bf16.msra.mxu0 0
    %1988 = vmatprep.subr.bf16.mxu0 0
    %1989 = vmatpush1.bf16.msra.mxu0 %v1969
    %1990 = vmatprep.subr.bf16.mxu0 0
    %1991 = vmatpush2.bf16.msra.mxu0 0
    %1992 = vmatprep.subr.bf16.mxu0 0
    %1993 = vmatpush2.bf16.msra.mxu0 0
    %1994 = vmatprep.subr.bf16.mxu0 0
    %1995 = vmatpush2.bf16.msra.mxu0 0
    %1996 = vmatprep.subr.bf16.mxu0 0
    %1997 = vmatpush2.bf16.msra.mxu0 0
    %1998 = vmatprep.subr.bf16.mxu0 0
    %1999 = vmatpush2.bf16.msra.mxu0 0
    %2000 = vmatprep.subr.bf16.mxu0 0
    %2001 = vmatpush2.bf16.msra.mxu0 0
    %2002 = vmatprep.subr.bf16.mxu0 0
    %2003 = vmatpush2.bf16.msra.mxu0 0
    %2004 = vmatprep.subr.bf16.mxu0 0
    %2005 = vmatpush2.bf16.msra.mxu0 0
    %2006 = vmatprep.mubr.bf16.mxu0 0
    %2007 = vmatmul.mubr.bf16.gmra.mxu0 %v1972
    %v2008 = vpop.f32.mrf.mxu0
    %v2009 = vadd.f32 0.0, %v2008
    %v2010 = vpop.f32.mrf.mxu0
    %v2011 = vpop.f32.mrf.mxu0
    %v2012 = vadd.f32 0.0, %v2011
    %v2013 = vpop.f32.mrf.mxu0
    %2014 = vdwg.mxu0
    %v2015 = vpack.c.bf16 %v1871, %v1868
    %v2016 = vpack.c.bf16 %v1918, %v1915
    %v2017 = vpack.c.bf16 %v1965, %v1962
    %v2018 = vpack.c.bf16 %v2012, %v2009
    %v2023 = vunpack.c.l.b16 %v75
    %v2024 = vunpack.c.l.b16 %v76
    %v2025 = vunpack.c.l.b16 %v77
    %v2026 = vunpack.c.l.b16 %v78
    %v2027 = vpack.c.b16 %v2024, %v2023
    %v2028 = vpack.c.b16 %v2026, %v2025
    %v2032 = vsel %vm391, %v2015, 0
    %v2035 = vsel %vm391, %v2016, 0
    %v2038 = vsel %vm391, %v2017, 0
    %v2041 = vsel %vm391, %v2018, 0
    %2043 = vmatprep.subr.bf16.mxu0 0
    %2044 = vmatpush1.bf16.msra.mxu0 0
    %2045 = vmatprep.subr.bf16.mxu0 0
    %2046 = vmatpush1.bf16.msra.mxu0 0
    %2047 = vmatprep.subr.bf16.mxu0 0
    %2048 = vmatpush1.bf16.msra.mxu0 0
    %2049 = vmatprep.subr.bf16.mxu0 0
    %2050 = vmatpush1.bf16.msra.mxu0 0
    %2051 = vmatprep.subr.bf16.mxu0 0
    %2052 = vmatpush1.bf16.msra.mxu0 0
    %2053 = vmatprep.subr.bf16.mxu0 0
    %2054 = vmatpush1.bf16.msra.mxu0 0
    %2055 = vmatprep.subr.bf16.mxu0 0
    %2056 = vmatpush1.bf16.msra.mxu0 %v2028
    %2057 = vmatprep.subr.bf16.mxu0 0
    %2058 = vmatpush1.bf16.msra.mxu0 %v2027
    %2059 = vmatprep.subr.bf16.mxu0 0
    %2060 = vmatpush2.bf16.msra.mxu0 0
    %2061 = vmatprep.subr.bf16.mxu0 0
    %2062 = vmatpush2.bf16.msra.mxu0 0
    %2063 = vmatprep.subr.bf16.mxu0 0
    %2064 = vmatpush2.bf16.msra.mxu0 0
    %2065 = vmatprep.subr.bf16.mxu0 0
    %2066 = vmatpush2.bf16.msra.mxu0 0
    %2067 = vmatprep.subr.bf16.mxu0 0
    %2068 = vmatpush2.bf16.msra.mxu0 0
    %2069 = vmatprep.subr.bf16.mxu0 0
    %2070 = vmatpush2.bf16.msra.mxu0 0
    %2071 = vmatprep.subr.bf16.mxu0 0
    %2072 = vmatpush2.bf16.msra.mxu0 0
    %2073 = vmatprep.subr.bf16.mxu0 0
    %2074 = vmatpush2.bf16.msra.mxu0 0
    %2075 = vmatprep.mubr.bf16.mxu0 0
    %2076 = vmatmul.mubr.bf16.gmra.mxu0 %v2032
    %v2077 = vpop.f32.mrf.mxu0
    %v2078 = vadd.f32 0.0, %v2077
    %v2079 = vpop.f32.mrf.mxu0
    %v2080 = vpop.f32.mrf.mxu0
    %v2081 = vadd.f32 0.0, %v2080
    %v2082 = vpop.f32.mrf.mxu0
    %2083 = vmatprep.mubr.bf16.mxu0 0
    %2084 = vmatmul.mubr.bf16.gmra.mxu0 %v2035
    %v2085 = vpop.f32.mrf.mxu0
    %v2086 = vadd.f32 0.0, %v2085
    %v2087 = vpop.f32.mrf.mxu0
    %v2088 = vpop.f32.mrf.mxu0
    %v2089 = vadd.f32 0.0, %v2088
    %v2090 = vpop.f32.mrf.mxu0
    %2091 = vmatprep.mubr.bf16.mxu0 0
    %2092 = vmatmul.mubr.bf16.gmra.mxu0 %v2038
    %v2093 = vpop.f32.mrf.mxu0
    %v2094 = vadd.f32 0.0, %v2093
    %v2095 = vpop.f32.mrf.mxu0
    %v2096 = vpop.f32.mrf.mxu0
    %v2097 = vadd.f32 0.0, %v2096
    %v2098 = vpop.f32.mrf.mxu0
    %2099 = vmatprep.mubr.bf16.mxu0 0
    %2100 = vmatmul.mubr.bf16.gmra.mxu0 %v2041
    %v2101 = vpop.f32.mrf.mxu0
    %v2102 = vadd.f32 0.0, %v2101
    %v2103 = vpop.f32.mrf.mxu0
    %v2104 = vpop.f32.mrf.mxu0
    %v2105 = vadd.f32 0.0, %v2104
    %v2106 = vpop.f32.mrf.mxu0
    %2107 = vdwg.mxu0
    %v2108 = vadd.f32 %v1501, %v2078
    %v2109 = vadd.f32 %v1504, %v2081
    %v2110 = vadd.f32 %v1509, %v2086
    %v2111 = vadd.f32 %v1512, %v2089
    %v2112 = vadd.f32 %v1517, %v2094
    %v2113 = vadd.f32 %v1520, %v2097
    %v2114 = vadd.f32 %v1525, %v2102
    %v2115 = vadd.f32 %v1528, %v2105
    %2116 = vrot.lane.b32.xlu0 %v379, 32
    %v2117 = vpop.permute.xlu0 %2116
    %2118 = vrot.lane.b32.xlu0 %v383, 32
    %v2119 = vpop.permute.xlu0 %2118
    %v2121 = vsel %vm391, %v2117, 0
    %v2124 = vsel %vm391, %v2119, 0
    %2126 = vmatprep.subr.bf16.mxu0 0
    %2127 = vmatpush1.bf16.xpose.msra.mxu0 0
    %2128 = vmatprep.subr.bf16.mxu0 0
    %2129 = vmatpush1.bf16.xpose.msra.mxu0 0
    %2130 = vmatprep.subr.bf16.mxu0 0
    %2131 = vmatpush1.bf16.xpose.msra.mxu0 0
    %2132 = vmatprep.subr.bf16.mxu0 0
    %2133 = vmatpush1.bf16.xpose.msra.mxu0 0
    %2134 = vmatprep.subr.bf16.mxu0 0
    %2135 = vmatpush1.bf16.xpose.msra.mxu0 0
    %2136 = vmatprep.subr.bf16.mxu0 0
    %2137 = vmatpush1.bf16.xpose.msra.mxu0 0
    %2138 = vmatprep.subr.bf16.mxu0 0
    %2139 = vmatpush1.bf16.xpose.msra.mxu0 0
    %2140 = vmatprep.subr.bf16.mxu0 0
    %2141 = vmatpush1.bf16.xpose.msra.mxu0 %v2124
    %2142 = vmatprep.subr.bf16.mxu0 0
    %2143 = vmatpush2.bf16.xpose.msra.mxu0 0
    %2144 = vmatprep.subr.bf16.mxu0 0
    %2145 = vmatpush2.bf16.xpose.msra.mxu0 0
    %2146 = vmatprep.subr.bf16.mxu0 0
    %2147 = vmatpush2.bf16.xpose.msra.mxu0 0
    %2148 = vmatprep.subr.bf16.mxu0 0
    %2149 = vmatpush2.bf16.xpose.msra.mxu0 0
    %2150 = vmatprep.subr.bf16.mxu0 0
    %2151 = vmatpush2.bf16.xpose.msra.mxu0 0
    %2152 = vmatprep.subr.bf16.mxu0 0
    %2153 = vmatpush2.bf16.xpose.msra.mxu0 0
    %2154 = vmatprep.subr.bf16.mxu0 0
    %2155 = vmatpush2.bf16.xpose.msra.mxu0 0
    %2156 = vmatprep.subr.bf16.mxu0 0
    %2157 = vmatpush2.bf16.xpose.msra.mxu0 0
    %2158 = vmatprep.mubr.bf16.mxu0 0
    %2159 = vmatmul.mubr.bf16.gmra.mxu0 %v2121
    %v2160 = vpop.f32.mrf.mxu0
    %v2161 = vadd.f32 0.0, %v2160
    %v2162 = vpop.f32.mrf.mxu0
    %v2163 = vpop.f32.mrf.mxu0
    %v2164 = vadd.f32 0.0, %v2163
    %v2165 = vpop.f32.mrf.mxu0
    %2166 = vdwg.mxu0
    %2167 = vrot.lane.b32.xlu0 %v380, 32
    %v2168 = vpop.permute.xlu0 %2167
    %2169 = vrot.lane.b32.xlu0 %v384, 32
    %v2170 = vpop.permute.xlu0 %2169
    %v2172 = vsel %vm391, %v2168, 0
    %v2175 = vsel %vm391, %v2170, 0
    %2177 = vmatprep.subr.bf16.mxu0 0
    %2178 = vmatpush1.bf16.xpose.msra.mxu0 0
    %2179 = vmatprep.subr.bf16.mxu0 0
    %2180 = vmatpush1.bf16.xpose.msra.mxu0 0
    %2181 = vmatprep.subr.bf16.mxu0 0
    %2182 = vmatpush1.bf16.xpose.msra.mxu0 0
    %2183 = vmatprep.subr.bf16.mxu0 0
    %2184 = vmatpush1.bf16.xpose.msra.mxu0 0
    %2185 = vmatprep.subr.bf16.mxu0 0
    %2186 = vmatpush1.bf16.xpose.msra.mxu0 0
    %2187 = vmatprep.subr.bf16.mxu0 0
    %2188 = vmatpush1.bf16.xpose.msra.mxu0 0
    %2189 = vmatprep.subr.bf16.mxu0 0
    %2190 = vmatpush1.bf16.xpose.msra.mxu0 0
    %2191 = vmatprep.subr.bf16.mxu0 0
    %2192 = vmatpush1.bf16.xpose.msra.mxu0 %v2175
    %2193 = vmatprep.subr.bf16.mxu0 0
    %2194 = vmatpush2.bf16.xpose.msra.mxu0 0
    %2195 = vmatprep.subr.bf16.mxu0 0
    %2196 = vmatpush2.bf16.xpose.msra.mxu0 0
    %2197 = vmatprep.subr.bf16.mxu0 0
    %2198 = vmatpush2.bf16.xpose.msra.mxu0 0
    %2199 = vmatprep.subr.bf16.mxu0 0
    %2200 = vmatpush2.bf16.xpose.msra.mxu0 0
    %2201 = vmatprep.subr.bf16.mxu0 0
    %2202 = vmatpush2.bf16.xpose.msra.mxu0 0
    %2203 = vmatprep.subr.bf16.mxu0 0
    %2204 = vmatpush2.bf16.xpose.msra.mxu0 0
    %2205 = vmatprep.subr.bf16.mxu0 0
    %2206 = vmatpush2.bf16.xpose.msra.mxu0 0
    %2207 = vmatprep.subr.bf16.mxu0 0
    %2208 = vmatpush2.bf16.xpose.msra.mxu0 0
    %2209 = vmatprep.mubr.bf16.mxu0 0
    %2210 = vmatmul.mubr.bf16.gmra.mxu0 %v2172
    %v2211 = vpop.f32.mrf.mxu0
    %v2212 = vadd.f32 0.0, %v2211
    %v2213 = vpop.f32.mrf.mxu0
    %v2214 = vpop.f32.mrf.mxu0
    %v2215 = vadd.f32 0.0, %v2214
    %v2216 = vpop.f32.mrf.mxu0
    %2217 = vdwg.mxu0
    %2218 = vrot.lane.b32.xlu0 %v381, 32
    %v2219 = vpop.permute.xlu0 %2218
    %2220 = vrot.lane.b32.xlu0 %v385, 32
    %v2221 = vpop.permute.xlu0 %2220
    %v2223 = vsel %vm391, %v2219, 0
    %v2226 = vsel %vm391, %v2221, 0
    %2228 = vmatprep.subr.bf16.mxu0 0
    %2229 = vmatpush1.bf16.xpose.msra.mxu0 0
    %2230 = vmatprep.subr.bf16.mxu0 0
    %2231 = vmatpush1.bf16.xpose.msra.mxu0 0
    %2232 = vmatprep.subr.bf16.mxu0 0
    %2233 = vmatpush1.bf16.xpose.msra.mxu0 0
    %2234 = vmatprep.subr.bf16.mxu0 0
    %2235 = vmatpush1.bf16.xpose.msra.mxu0 0
    %2236 = vmatprep.subr.bf16.mxu0 0
    %2237 = vmatpush1.bf16.xpose.msra.mxu0 0
    %2238 = vmatprep.subr.bf16.mxu0 0
    %2239 = vmatpush1.bf16.xpose.msra.mxu0 0
    %2240 = vmatprep.subr.bf16.mxu0 0
    %2241 = vmatpush1.bf16.xpose.msra.mxu0 0
    %2242 = vmatprep.subr.bf16.mxu0 0
    %2243 = vmatpush1.bf16.xpose.msra.mxu0 %v2226
    %2244 = vmatprep.subr.bf16.mxu0 0
    %2245 = vmatpush2.bf16.xpose.msra.mxu0 0
    %2246 = vmatprep.subr.bf16.mxu0 0
    %2247 = vmatpush2.bf16.xpose.msra.mxu0 0
    %2248 = vmatprep.subr.bf16.mxu0 0
    %2249 = vmatpush2.bf16.xpose.msra.mxu0 0
    %2250 = vmatprep.subr.bf16.mxu0 0
    %2251 = vmatpush2.bf16.xpose.msra.mxu0 0
    %2252 = vmatprep.subr.bf16.mxu0 0
    %2253 = vmatpush2.bf16.xpose.msra.mxu0 0
    %2254 = vmatprep.subr.bf16.mxu0 0
    %2255 = vmatpush2.bf16.xpose.msra.mxu0 0
    %2256 = vmatprep.subr.bf16.mxu0 0
    %2257 = vmatpush2.bf16.xpose.msra.mxu0 0
    %2258 = vmatprep.subr.bf16.mxu0 0
    %2259 = vmatpush2.bf16.xpose.msra.mxu0 0
    %2260 = vmatprep.mubr.bf16.mxu0 0
    %2261 = vmatmul.mubr.bf16.gmra.mxu0 %v2223
    %v2262 = vpop.f32.mrf.mxu0
    %v2263 = vadd.f32 0.0, %v2262
    %v2264 = vpop.f32.mrf.mxu0
    %v2265 = vpop.f32.mrf.mxu0
    %v2266 = vadd.f32 0.0, %v2265
    %v2267 = vpop.f32.mrf.mxu0
    %2268 = vdwg.mxu0
    %2269 = vrot.lane.b32.xlu0 %v382, 32
    %v2270 = vpop.permute.xlu0 %2269
    %2271 = vrot.lane.b32.xlu0 %v386, 32
    %v2272 = vpop.permute.xlu0 %2271
    %v2274 = vsel %vm391, %v2270, 0
    %v2277 = vsel %vm391, %v2272, 0
    %2279 = vmatprep.subr.bf16.mxu0 0
    %2280 = vmatpush1.bf16.xpose.msra.mxu0 0
    %2281 = vmatprep.subr.bf16.mxu0 0
    %2282 = vmatpush1.bf16.xpose.msra.mxu0 0
    %2283 = vmatprep.subr.bf16.mxu0 0
    %2284 = vmatpush1.bf16.xpose.msra.mxu0 0
    %2285 = vmatprep.subr.bf16.mxu0 0
    %2286 = vmatpush1.bf16.xpose.msra.mxu0 0
    %2287 = vmatprep.subr.bf16.mxu0 0
    %2288 = vmatpush1.bf16.xpose.msra.mxu0 0
    %2289 = vmatprep.subr.bf16.mxu0 0
    %2290 = vmatpush1.bf16.xpose.msra.mxu0 0
    %2291 = vmatprep.subr.bf16.mxu0 0
    %2292 = vmatpush1.bf16.xpose.msra.mxu0 0
    %2293 = vmatprep.subr.bf16.mxu0 0
    %2294 = vmatpush1.bf16.xpose.msra.mxu0 %v2277
    %2295 = vmatprep.subr.bf16.mxu0 0
    %2296 = vmatpush2.bf16.xpose.msra.mxu0 0
    %2297 = vmatprep.subr.bf16.mxu0 0
    %2298 = vmatpush2.bf16.xpose.msra.mxu0 0
    %2299 = vmatprep.subr.bf16.mxu0 0
    %2300 = vmatpush2.bf16.xpose.msra.mxu0 0
    %2301 = vmatprep.subr.bf16.mxu0 0
    %2302 = vmatpush2.bf16.xpose.msra.mxu0 0
    %2303 = vmatprep.subr.bf16.mxu0 0
    %2304 = vmatpush2.bf16.xpose.msra.mxu0 0
    %2305 = vmatprep.subr.bf16.mxu0 0
    %2306 = vmatpush2.bf16.xpose.msra.mxu0 0
    %2307 = vmatprep.subr.bf16.mxu0 0
    %2308 = vmatpush2.bf16.xpose.msra.mxu0 0
    %2309 = vmatprep.subr.bf16.mxu0 0
    %2310 = vmatpush2.bf16.xpose.msra.mxu0 0
    %2311 = vmatprep.mubr.bf16.mxu0 0
    %2312 = vmatmul.mubr.bf16.gmra.mxu0 %v2274
    %v2313 = vpop.f32.mrf.mxu0
    %v2314 = vadd.f32 0.0, %v2313
    %v2315 = vpop.f32.mrf.mxu0
    %v2316 = vpop.f32.mrf.mxu0
    %v2317 = vadd.f32 0.0, %v2316
    %v2318 = vpop.f32.mrf.mxu0
    %2319 = vdwg.mxu0
    %v2320 = vsel %vm580, %v2161, -inf
    %2321 = vmax.xlane.f32.xlu0 %v2320
    %v2322 = vpop.xlane.xlu0 %2321
    %v2323 = vsel %vm580, %v2164, -inf
    %2324 = vmax.xlane.f32.xlu0 %v2323
    %v2325 = vpop.xlane.xlu0 %2324
    %v2326 = vsel %vm580, %v2212, -inf
    %2327 = vmax.xlane.f32.xlu0 %v2326
    %v2328 = vpop.xlane.xlu0 %2327
    %v2329 = vsel %vm580, %v2215, -inf
    %2330 = vmax.xlane.f32.xlu0 %v2329
    %v2331 = vpop.xlane.xlu0 %2330
    %v2332 = vsel %vm580, %v2263, -inf
    %2333 = vmax.xlane.f32.xlu0 %v2332
    %v2334 = vpop.xlane.xlu0 %2333
    %v2335 = vsel %vm580, %v2266, -inf
    %2336 = vmax.xlane.f32.xlu0 %v2335
    %v2337 = vpop.xlane.xlu0 %2336
    %v2338 = vsel %vm580, %v2314, -inf
    %2339 = vmax.xlane.f32.xlu0 %v2338
    %v2340 = vpop.xlane.xlu0 %2339
    %v2341 = vsel %vm580, %v2317, -inf
    %2342 = vmax.xlane.f32.xlu0 %v2341
    %v2343 = vpop.xlane.xlu0 %2342
    %v2344 = vsub.f32 %v2161, %v2322
    %v2345 = vsub.f32 %v2164, %v2325
    %v2346 = vsub.f32 %v2212, %v2328
    %v2347 = vsub.f32 %v2215, %v2331
    %v2348 = vsub.f32 %v2263, %v2334
    %v2349 = vsub.f32 %v2266, %v2337
    %v2350 = vsub.f32 %v2314, %v2340
    %v2351 = vsub.f32 %v2317, %v2343
    %v2352 = vmul.f32 %v2344, 1.442695
    %v2353 = vpow.pop %v2352
    %v2354 = vmul.f32 %v2345, 1.442695
    %v2355 = vpow.pop %v2354
    %v2356 = vmul.f32 %v2346, 1.442695
    %v2357 = vpow.pop %v2356
    %v2358 = vmul.f32 %v2347, 1.442695
    %v2359 = vpow.pop %v2358
    %v2360 = vmul.f32 %v2348, 1.442695
    %v2361 = vpow.pop %v2360
    %v2362 = vmul.f32 %v2349, 1.442695
    %v2363 = vpow.pop %v2362
    %v2364 = vmul.f32 %v2350, 1.442695
    %v2365 = vpow.pop %v2364
    %v2366 = vmul.f32 %v2351, 1.442695
    %v2367 = vpow.pop %v2366
    %v2368 = vsel %vm580, %v2353, 0.0
    %2369 = vadd.xlane.f32.xlu0 %v2368
    %v2370 = vpop.xlane.xlu0 %2369
    %v2371 = vsel %vm580, %v2355, 0.0
    %2372 = vadd.xlane.f32.xlu0 %v2371
    %v2373 = vpop.xlane.xlu0 %2372
    %v2374 = vsel %vm580, %v2357, 0.0
    %2375 = vadd.xlane.f32.xlu0 %v2374
    %v2376 = vpop.xlane.xlu0 %2375
    %v2377 = vsel %vm580, %v2359, 0.0
    %2378 = vadd.xlane.f32.xlu0 %v2377
    %v2379 = vpop.xlane.xlu0 %2378
    %v2380 = vsel %vm580, %v2361, 0.0
    %2381 = vadd.xlane.f32.xlu0 %v2380
    %v2382 = vpop.xlane.xlu0 %2381
    %v2383 = vsel %vm580, %v2363, 0.0
    %2384 = vadd.xlane.f32.xlu0 %v2383
    %v2385 = vpop.xlane.xlu0 %2384
    %v2386 = vsel %vm580, %v2365, 0.0
    %2387 = vadd.xlane.f32.xlu0 %v2386
    %v2388 = vpop.xlane.xlu0 %2387
    %v2389 = vsel %vm580, %v2367, 0.0
    %2390 = vadd.xlane.f32.xlu0 %v2389
    %v2391 = vpop.xlane.xlu0 %2390
    %v2392 = vrcp.pop %v2370
    %v2393 = vrcp.pop %v2373
    %v2394 = vrcp.pop %v2376
    %v2395 = vrcp.pop %v2379
    %v2396 = vrcp.pop %v2382
    %v2397 = vrcp.pop %v2385
    %v2398 = vrcp.pop %v2388
    %v2399 = vrcp.pop %v2391
    %v2400 = vmul.f32 %v2353, %v2392
    %v2401 = vmul.f32 %v2355, %v2393
    %v2402 = vmul.f32 %v2357, %v2394
    %v2403 = vmul.f32 %v2359, %v2395
    %v2404 = vmul.f32 %v2361, %v2396
    %v2405 = vmul.f32 %v2363, %v2397
    %v2406 = vmul.f32 %v2365, %v2398
    %v2407 = vmul.f32 %v2367, %v2399
    %v2408 = vpack.c.bf16 %v2401, %v2400
    %v2409 = vpack.c.bf16 %v2403, %v2402
    %v2410 = vpack.c.bf16 %v2405, %v2404
    %v2411 = vpack.c.bf16 %v2407, %v2406
    %2412 = vrot.lane.b32.xlu0 %v387, 32
    %v2413 = vpop.permute.xlu0 %2412
    %v2416 = vsel %vm580, %v2408, 0
    %2418 = vmatprep.subr.bf16.mxu0 0
    %2419 = vmatpush1.bf16.msra.mxu0 0
    %2420 = vmatprep.subr.bf16.mxu0 0
    %2421 = vmatpush1.bf16.msra.mxu0 0
    %2422 = vmatprep.subr.bf16.mxu0 0
    %2423 = vmatpush1.bf16.msra.mxu0 0
    %2424 = vmatprep.subr.bf16.mxu0 0
    %2425 = vmatpush1.bf16.msra.mxu0 0
    %2426 = vmatprep.subr.bf16.mxu0 0
    %2427 = vmatpush1.bf16.msra.mxu0 0
    %2428 = vmatprep.subr.bf16.mxu0 0
    %2429 = vmatpush1.bf16.msra.mxu0 0
    %2430 = vmatprep.subr.bf16.mxu0 0
    %2431 = vmatpush1.bf16.msra.mxu0 0
    %2432 = vmatprep.subr.bf16.mxu0 0
    %2433 = vmatpush1.bf16.msra.mxu0 %v2413
    %2434 = vmatprep.subr.bf16.mxu0 0
    %2435 = vmatpush2.bf16.msra.mxu0 0
    %2436 = vmatprep.subr.bf16.mxu0 0
    %2437 = vmatpush2.bf16.msra.mxu0 0
    %2438 = vmatprep.subr.bf16.mxu0 0
    %2439 = vmatpush2.bf16.msra.mxu0 0
    %2440 = vmatprep.subr.bf16.mxu0 0
    %2441 = vmatpush2.bf16.msra.mxu0 0
    %2442 = vmatprep.subr.bf16.mxu0 0
    %2443 = vmatpush2.bf16.msra.mxu0 0
    %2444 = vmatprep.subr.bf16.mxu0 0
    %2445 = vmatpush2.bf16.msra.mxu0 0
    %2446 = vmatprep.subr.bf16.mxu0 0
    %2447 = vmatpush2.bf16.msra.mxu0 0
    %2448 = vmatprep.subr.bf16.mxu0 0
    %2449 = vmatpush2.bf16.msra.mxu0 0
    %2450 = vmatprep.mubr.bf16.mxu0 0
    %2451 = vmatmul.mubr.bf16.gmra.mxu0 %v2416
    %v2452 = vpop.f32.mrf.mxu0
    %v2453 = vadd.f32 0.0, %v2452
    %v2454 = vpop.f32.mrf.mxu0
    %v2455 = vpop.f32.mrf.mxu0
    %v2456 = vadd.f32 0.0, %v2455
    %v2457 = vpop.f32.mrf.mxu0
    %2458 = vdwg.mxu0
    %2459 = vrot.lane.b32.xlu0 %v388, 32
    %v2460 = vpop.permute.xlu0 %2459
    %v2463 = vsel %vm580, %v2409, 0
    %2465 = vmatprep.subr.bf16.mxu0 0
    %2466 = vmatpush1.bf16.msra.mxu0 0
    %2467 = vmatprep.subr.bf16.mxu0 0
    %2468 = vmatpush1.bf16.msra.mxu0 0
    %2469 = vmatprep.subr.bf16.mxu0 0
    %2470 = vmatpush1.bf16.msra.mxu0 0
    %2471 = vmatprep.subr.bf16.mxu0 0
    %2472 = vmatpush1.bf16.msra.mxu0 0
    %2473 = vmatprep.subr.bf16.mxu0 0
    %2474 = vmatpush1.bf16.msra.mxu0 0
    %2475 = vmatprep.subr.bf16.mxu0 0
    %2476 = vmatpush1.bf16.msra.mxu0 0
    %2477 = vmatprep.subr.bf16.mxu0 0
    %2478 = vmatpush1.bf16.msra.mxu0 0
    %2479 = vmatprep.subr.bf16.mxu0 0
    %2480 = vmatpush1.bf16.msra.mxu0 %v2460
    %2481 = vmatprep.subr.bf16.mxu0 0
    %2482 = vmatpush2.bf16.msra.mxu0 0
    %2483 = vmatprep.subr.bf16.mxu0 0
    %2484 = vmatpush2.bf16.msra.mxu0 0
    %2485 = vmatprep.subr.bf16.mxu0 0
    %2486 = vmatpush2.bf16.msra.mxu0 0
    %2487 = vmatprep.subr.bf16.mxu0 0
    %2488 = vmatpush2.bf16.msra.mxu0 0
    %2489 = vmatprep.subr.bf16.mxu0 0
    %2490 = vmatpush2.bf16.msra.mxu0 0
    %2491 = vmatprep.subr.bf16.mxu0 0
    %2492 = vmatpush2.bf16.msra.mxu0 0
    %2493 = vmatprep.subr.bf16.mxu0 0
    %2494 = vmatpush2.bf16.msra.mxu0 0
    %2495 = vmatprep.subr.bf16.mxu0 0
    %2496 = vmatpush2.bf16.msra.mxu0 0
    %2497 = vmatprep.mubr.bf16.mxu0 0
    %2498 = vmatmul.mubr.bf16.gmra.mxu0 %v2463
    %v2499 = vpop.f32.mrf.mxu0
    %v2500 = vadd.f32 0.0, %v2499
    %v2501 = vpop.f32.mrf.mxu0
    %v2502 = vpop.f32.mrf.mxu0
    %v2503 = vadd.f32 0.0, %v2502
    %v2504 = vpop.f32.mrf.mxu0
    %2505 = vdwg.mxu0
    %2506 = vrot.lane.b32.xlu0 %v389, 32
    %v2507 = vpop.permute.xlu0 %2506
    %v2510 = vsel %vm580, %v2410, 0
    %2512 = vmatprep.subr.bf16.mxu0 0
    %2513 = vmatpush1.bf16.msra.mxu0 0
    %2514 = vmatprep.subr.bf16.mxu0 0
    %2515 = vmatpush1.bf16.msra.mxu0 0
    %2516 = vmatprep.subr.bf16.mxu0 0
    %2517 = vmatpush1.bf16.msra.mxu0 0
    %2518 = vmatprep.subr.bf16.mxu0 0
    %2519 = vmatpush1.bf16.msra.mxu0 0
    %2520 = vmatprep.subr.bf16.mxu0 0
    %2521 = vmatpush1.bf16.msra.mxu0 0
    %2522 = vmatprep.subr.bf16.mxu0 0
    %2523 = vmatpush1.bf16.msra.mxu0 0
    %2524 = vmatprep.subr.bf16.mxu0 0
    %2525 = vmatpush1.bf16.msra.mxu0 0
    %2526 = vmatprep.subr.bf16.mxu0 0
    %2527 = vmatpush1.bf16.msra.mxu0 %v2507
    %2528 = vmatprep.subr.bf16.mxu0 0
    %2529 = vmatpush2.bf16.msra.mxu0 0
    %2530 = vmatprep.subr.bf16.mxu0 0
    %2531 = vmatpush2.bf16.msra.mxu0 0
    %2532 = vmatprep.subr.bf16.mxu0 0
    %2533 = vmatpush2.bf16.msra.mxu0 0
    %2534 = vmatprep.subr.bf16.mxu0 0
    %2535 = vmatpush2.bf16.msra.mxu0 0
    %2536 = vmatprep.subr.bf16.mxu0 0
    %2537 = vmatpush2.bf16.msra.mxu0 0
    %2538 = vmatprep.subr.bf16.mxu0 0
    %2539 = vmatpush2.bf16.msra.mxu0 0
    %2540 = vmatprep.subr.bf16.mxu0 0
    %2541 = vmatpush2.bf16.msra.mxu0 0
    %2542 = vmatprep.subr.bf16.mxu0 0
    %2543 = vmatpush2.bf16.msra.mxu0 0
    %2544 = vmatprep.mubr.bf16.mxu0 0
    %2545 = vmatmul.mubr.bf16.gmra.mxu0 %v2510
    %v2546 = vpop.f32.mrf.mxu0
    %v2547 = vadd.f32 0.0, %v2546
    %v2548 = vpop.f32.mrf.mxu0
    %v2549 = vpop.f32.mrf.mxu0
    %v2550 = vadd.f32 0.0, %v2549
    %v2551 = vpop.f32.mrf.mxu0
    %2552 = vdwg.mxu0
    %2553 = vrot.lane.b32.xlu0 %v390, 32
    %v2554 = vpop.permute.xlu0 %2553
    %v2557 = vsel %vm580, %v2411, 0
    %2559 = vmatprep.subr.bf16.mxu0 0
    %2560 = vmatpush1.bf16.msra.mxu0 0
    %2561 = vmatprep.subr.bf16.mxu0 0
    %2562 = vmatpush1.bf16.msra.mxu0 0
    %2563 = vmatprep.subr.bf16.mxu0 0
    %2564 = vmatpush1.bf16.msra.mxu0 0
    %2565 = vmatprep.subr.bf16.mxu0 0
    %2566 = vmatpush1.bf16.msra.mxu0 0
    %2567 = vmatprep.subr.bf16.mxu0 0
    %2568 = vmatpush1.bf16.msra.mxu0 0
    %2569 = vmatprep.subr.bf16.mxu0 0
    %2570 = vmatpush1.bf16.msra.mxu0 0
    %2571 = vmatprep.subr.bf16.mxu0 0
    %2572 = vmatpush1.bf16.msra.mxu0 0
    %2573 = vmatprep.subr.bf16.mxu0 0
    %2574 = vmatpush1.bf16.msra.mxu0 %v2554
    %2575 = vmatprep.subr.bf16.mxu0 0
    %2576 = vmatpush2.bf16.msra.mxu0 0
    %2577 = vmatprep.subr.bf16.mxu0 0
    %2578 = vmatpush2.bf16.msra.mxu0 0
    %2579 = vmatprep.subr.bf16.mxu0 0
    %2580 = vmatpush2.bf16.msra.mxu0 0
    %2581 = vmatprep.subr.bf16.mxu0 0
    %2582 = vmatpush2.bf16.msra.mxu0 0
    %2583 = vmatprep.subr.bf16.mxu0 0
    %2584 = vmatpush2.bf16.msra.mxu0 0
    %2585 = vmatprep.subr.bf16.mxu0 0
    %2586 = vmatpush2.bf16.msra.mxu0 0
    %2587 = vmatprep.subr.bf16.mxu0 0
    %2588 = vmatpush2.bf16.msra.mxu0 0
    %2589 = vmatprep.subr.bf16.mxu0 0
    %2590 = vmatpush2.bf16.msra.mxu0 0
    %2591 = vmatprep.mubr.bf16.mxu0 0
    %2592 = vmatmul.mubr.bf16.gmra.mxu0 %v2557
    %v2593 = vpop.f32.mrf.mxu0
    %v2594 = vadd.f32 0.0, %v2593
    %v2595 = vpop.f32.mrf.mxu0
    %v2596 = vpop.f32.mrf.mxu0
    %v2597 = vadd.f32 0.0, %v2596
    %v2598 = vpop.f32.mrf.mxu0
    %2599 = vdwg.mxu0
    %v2600 = vpack.c.bf16 %v2456, %v2453
    %v2601 = vpack.c.bf16 %v2503, %v2500
    %v2602 = vpack.c.bf16 %v2550, %v2547
    %v2603 = vpack.c.bf16 %v2597, %v2594
    %v2608 = vunpack.c.l.b16 %v79
    %v2609 = vunpack.c.l.b16 %v80
    %v2610 = vunpack.c.l.b16 %v81
    %v2611 = vunpack.c.l.b16 %v82
    %v2612 = vpack.c.b16 %v2609, %v2608
    %v2613 = vpack.c.b16 %v2611, %v2610
    %v2617 = vsel %vm391, %v2600, 0
    %v2620 = vsel %vm391, %v2601, 0
    %v2623 = vsel %vm391, %v2602, 0
    %v2626 = vsel %vm391, %v2603, 0
    %2628 = vmatprep.subr.bf16.mxu0 0
    %2629 = vmatpush1.bf16.msra.mxu0 0
    %2630 = vmatprep.subr.bf16.mxu0 0
    %2631 = vmatpush1.bf16.msra.mxu0 0
    %2632 = vmatprep.subr.bf16.mxu0 0
    %2633 = vmatpush1.bf16.msra.mxu0 0
    %2634 = vmatprep.subr.bf16.mxu0 0
    %2635 = vmatpush1.bf16.msra.mxu0 0
    %2636 = vmatprep.subr.bf16.mxu0 0
    %2637 = vmatpush1.bf16.msra.mxu0 0
    %2638 = vmatprep.subr.bf16.mxu0 0
    %2639 = vmatpush1.bf16.msra.mxu0 0
    %2640 = vmatprep.subr.bf16.mxu0 0
    %2641 = vmatpush1.bf16.msra.mxu0 %v2613
    %2642 = vmatprep.subr.bf16.mxu0 0
    %2643 = vmatpush1.bf16.msra.mxu0 %v2612
    %2644 = vmatprep.subr.bf16.mxu0 0
    %2645 = vmatpush2.bf16.msra.mxu0 0
    %2646 = vmatprep.subr.bf16.mxu0 0
    %2647 = vmatpush2.bf16.msra.mxu0 0
    %2648 = vmatprep.subr.bf16.mxu0 0
    %2649 = vmatpush2.bf16.msra.mxu0 0
    %2650 = vmatprep.subr.bf16.mxu0 0
    %2651 = vmatpush2.bf16.msra.mxu0 0
    %2652 = vmatprep.subr.bf16.mxu0 0
    %2653 = vmatpush2.bf16.msra.mxu0 0
    %2654 = vmatprep.subr.bf16.mxu0 0
    %2655 = vmatpush2.bf16.msra.mxu0 0
    %2656 = vmatprep.subr.bf16.mxu0 0
    %2657 = vmatpush2.bf16.msra.mxu0 0
    %2658 = vmatprep.subr.bf16.mxu0 0
    %2659 = vmatpush2.bf16.msra.mxu0 0
    %2660 = vmatprep.mubr.bf16.mxu0 0
    %2661 = vmatmul.mubr.bf16.gmra.mxu0 %v2617
    %v2662 = vpop.f32.mrf.mxu0
    %v2663 = vadd.f32 0.0, %v2662
    %v2664 = vpop.f32.mrf.mxu0
    %v2665 = vpop.f32.mrf.mxu0
    %v2666 = vadd.f32 0.0, %v2665
    %v2667 = vpop.f32.mrf.mxu0
    %2668 = vmatprep.mubr.bf16.mxu0 0
    %2669 = vmatmul.mubr.bf16.gmra.mxu0 %v2620
    %v2670 = vpop.f32.mrf.mxu0
    %v2671 = vadd.f32 0.0, %v2670
    %v2672 = vpop.f32.mrf.mxu0
    %v2673 = vpop.f32.mrf.mxu0
    %v2674 = vadd.f32 0.0, %v2673
    %v2675 = vpop.f32.mrf.mxu0
    %2676 = vmatprep.mubr.bf16.mxu0 0
    %2677 = vmatmul.mubr.bf16.gmra.mxu0 %v2623
    %v2678 = vpop.f32.mrf.mxu0
    %v2679 = vadd.f32 0.0, %v2678
    %v2680 = vpop.f32.mrf.mxu0
    %v2681 = vpop.f32.mrf.mxu0
    %v2682 = vadd.f32 0.0, %v2681
    %v2683 = vpop.f32.mrf.mxu0
    %2684 = vmatprep.mubr.bf16.mxu0 0
    %2685 = vmatmul.mubr.bf16.gmra.mxu0 %v2626
    %v2686 = vpop.f32.mrf.mxu0
    %v2687 = vadd.f32 0.0, %v2686
    %v2688 = vpop.f32.mrf.mxu0
    %v2689 = vpop.f32.mrf.mxu0
    %v2690 = vadd.f32 0.0, %v2689
    %v2691 = vpop.f32.mrf.mxu0
    %2692 = vdwg.mxu0
    %v2693 = vadd.f32 %v2108, %v2663
    %v2694 = vadd.f32 %v2109, %v2666
    %v2695 = vadd.f32 %v2110, %v2671
    %v2696 = vadd.f32 %v2111, %v2674
    %v2697 = vadd.f32 %v2112, %v2679
    %v2698 = vadd.f32 %v2113, %v2682
    %v2699 = vadd.f32 %v2114, %v2687
    %v2700 = vadd.f32 %v2115, %v2690
    %v2702 = vlaneseq
    %v2703 = vshrl.u32 %v2702, 7
    %v2704 = vsub.s32 0, %v2703
    %v2705 = vrot.slane %v84, %v2704
    %v2707 = vadd.f32 %v2693, %v2705
    %v2708 = vadd.f32 %v2694, %v2705
    %v2709 = vadd.f32 %v2695, %v2705
    %v2710 = vadd.f32 %v2696, %v2705
    %v2711 = vadd.f32 %v2697, %v2705
    %v2712 = vadd.f32 %v2698, %v2705
    %v2713 = vadd.f32 %v2699, %v2705
    %v2714 = vadd.f32 %v2700, %v2705
    %v2715 = vadd.f32 %v85, %v2707
    %v2716 = vadd.f32 %v86, %v2708
    %v2717 = vadd.f32 %v87, %v2709
    %v2718 = vadd.f32 %v88, %v2710
    %v2719 = vadd.f32 %v89, %v2711
    %v2720 = vadd.f32 %v90, %v2712
    %v2721 = vadd.f32 %v91, %v2713
    %v2722 = vadd.f32 %v92, %v2714
    %v2723 = vadd.f32 %v2715, %v2716
    %v2724 = vrot.slane %v2723, 4
    %v2725 = vadd.f32 %v2723, %v2724
    %v2726 = vrot.slane %v2725, 2
    %v2727 = vadd.f32 %v2725, %v2726
    %v2728 = vrot.slane %v2727, 1
    %v2729 = vadd.f32 %v2727, %v2728
    %v2730 = vadd.f32 %v2717, %v2718
    %v2731 = vrot.slane %v2730, 4
    %v2732 = vadd.f32 %v2730, %v2731
    %v2733 = vrot.slane %v2732, 2
    %v2734 = vadd.f32 %v2732, %v2733
    %v2735 = vrot.slane %v2734, 1
    %v2736 = vadd.f32 %v2734, %v2735
    %v2737 = vadd.f32 %v2719, %v2720
    %v2738 = vrot.slane %v2737, 4
    %v2739 = vadd.f32 %v2737, %v2738
    %v2740 = vrot.slane %v2739, 2
    %v2741 = vadd.f32 %v2739, %v2740
    %v2742 = vrot.slane %v2741, 1
    %v2743 = vadd.f32 %v2741, %v2742
    %v2744 = vadd.f32 %v2721, %v2722
    %v2745 = vrot.slane %v2744, 4
    %v2746 = vadd.f32 %v2744, %v2745
    %v2747 = vrot.slane %v2746, 2
    %v2748 = vadd.f32 %v2746, %v2747
    %v2749 = vrot.slane %v2748, 1
    %v2750 = vadd.f32 %v2748, %v2749
    %v2751 = vrcp.pop 16.0
    %v2752 = vmul.f32 %v2729, %v2751
    %v2753 = vmul.f32 %v2736, %v2751
    %v2754 = vmul.f32 %v2743, %v2751
    %v2755 = vmul.f32 %v2750, %v2751
    %v2756 = vsub.f32 %v2715, %v2752
    %v2757 = vsub.f32 %v2716, %v2752
    %v2758 = vsub.f32 %v2717, %v2753
    %v2759 = vsub.f32 %v2718, %v2753
    %v2760 = vsub.f32 %v2719, %v2754
    %v2761 = vsub.f32 %v2720, %v2754
    %v2762 = vsub.f32 %v2721, %v2755
    %v2763 = vsub.f32 %v2722, %v2755
    %v2764 = vmul.f32 %v2756, %v2756
    %v2765 = vmul.f32 %v2757, %v2757
    %v2766 = vmul.f32 %v2758, %v2758
    %v2767 = vmul.f32 %v2759, %v2759
    %v2768 = vmul.f32 %v2760, %v2760
    %v2769 = vmul.f32 %v2761, %v2761
    %v2770 = vmul.f32 %v2762, %v2762
    %v2771 = vmul.f32 %v2763, %v2763
    %v2772 = vadd.f32 %v2764, %v2765
    %v2773 = vrot.slane %v2772, 4
    %v2774 = vadd.f32 %v2772, %v2773
    %v2775 = vrot.slane %v2774, 2
    %v2776 = vadd.f32 %v2774, %v2775
    %v2777 = vrot.slane %v2776, 1
    %v2778 = vadd.f32 %v2776, %v2777
    %v2779 = vadd.f32 %v2766, %v2767
    %v2780 = vrot.slane %v2779, 4
    %v2781 = vadd.f32 %v2779, %v2780
    %v2782 = vrot.slane %v2781, 2
    %v2783 = vadd.f32 %v2781, %v2782
    %v2784 = vrot.slane %v2783, 1
    %v2785 = vadd.f32 %v2783, %v2784
    %v2786 = vadd.f32 %v2768, %v2769
    %v2787 = vrot.slane %v2786, 4
    %v2788 = vadd.f32 %v2786, %v2787
    %v2789 = vrot.slane %v2788, 2
    %v2790 = vadd.f32 %v2788, %v2789
    %v2791 = vrot.slane %v2790, 1
    %v2792 = vadd.f32 %v2790, %v2791
    %v2793 = vadd.f32 %v2770, %v2771
    %v2794 = vrot.slane %v2793, 4
    %v2795 = vadd.f32 %v2793, %v2794
    %v2796 = vrot.slane %v2795, 2
    %v2797 = vadd.f32 %v2795, %v2796
    %v2798 = vrot.slane %v2797, 1
    %v2799 = vadd.f32 %v2797, %v2798
    %v2800 = vmul.f32 %v2778, %v2751
    %v2801 = vmul.f32 %v2785, %v2751
    %v2802 = vmul.f32 %v2792, %v2751
    %v2803 = vmul.f32 %v2799, %v2751
    %v2804 = vadd.f32 %v2800, 1e-05
    %v2805 = vadd.f32 %v2801, 1e-05
    %v2806 = vadd.f32 %v2802, 1e-05
    %v2807 = vadd.f32 %v2803, 1e-05
    %v2808 = vrsqrt.pop %v2804
    %v2809 = vrsqrt.pop %v2805
    %v2810 = vrsqrt.pop %v2806
    %v2811 = vrsqrt.pop %v2807
    %v2812 = vmul.f32 %v2756, %v2808
    %v2813 = vmul.f32 %v2757, %v2808
    %v2814 = vmul.f32 %v2758, %v2809
    %v2815 = vmul.f32 %v2759, %v2809
    %v2816 = vmul.f32 %v2760, %v2810
    %v2817 = vmul.f32 %v2761, %v2810
    %v2818 = vmul.f32 %v2762, %v2811
    %v2819 = vmul.f32 %v2763, %v2811
    %v2820 = vmax.f32 %v2812, 0.0
    %v2821 = vmax.f32 %v2813, 0.0
    %v2822 = vmax.f32 %v2814, 0.0
    %v2823 = vmax.f32 %v2815, 0.0
    %v2824 = vmax.f32 %v2816, 0.0
    %v2825 = vmax.f32 %v2817, 0.0
    %v2826 = vmax.f32 %v2818, 0.0
    %v2827 = vmax.f32 %v2819, 0.0
    %v2828 = vpack.c.bf16 %v2821, %v2820
    %v2829 = vpack.c.bf16 %v2823, %v2822
    %v2830 = vpack.c.bf16 %v2825, %v2824
    %v2831 = vpack.c.bf16 %v2827, %v2826
    %2832 = vmatprep.subr.bf16.mxu0 %v215
    %2833 = vmatpush1.bf16.msra.mxu0 %v214
    %2834 = vmatprep.subr.bf16.mxu0 %v212
    %2835 = vmatpush1.bf16.msra.mxu0 %v211
    %2836 = vmatprep.subr.bf16.mxu0 %v209
    %2837 = vmatpush1.bf16.msra.mxu0 %v208
    %2838 = vmatprep.subr.bf16.mxu0 %v206
    %2839 = vmatpush1.bf16.msra.mxu0 %v205
    %2840 = vmatprep.subr.bf16.mxu0 %v203
    %2841 = vmatpush1.bf16.msra.mxu0 %v202
    %2842 = vmatprep.subr.bf16.mxu0 %v200
    %2843 = vmatpush1.bf16.msra.mxu0 %v199
    %2844 = vmatprep.subr.bf16.mxu0 %v197
    %2845 = vmatpush1.bf16.msra.mxu0 %v196
    %2846 = vmatprep.subr.bf16.mxu0 %v194
    %2847 = vmatpush1.bf16.msra.mxu0 %v193
    %2848 = vmatprep.subr.bf16.mxu0 0
    %2849 = vmatpush2.bf16.msra.mxu0 0
    %2850 = vmatprep.subr.bf16.mxu0 0
    %2851 = vmatpush2.bf16.msra.mxu0 0
    %2852 = vmatprep.subr.bf16.mxu0 0
    %2853 = vmatpush2.bf16.msra.mxu0 0
    %2854 = vmatprep.subr.bf16.mxu0 0
    %2855 = vmatpush2.bf16.msra.mxu0 0
    %2856 = vmatprep.subr.bf16.mxu0 0
    %2857 = vmatpush2.bf16.msra.mxu0 0
    %2858 = vmatprep.subr.bf16.mxu0 0
    %2859 = vmatpush2.bf16.msra.mxu0 0
    %2860 = vmatprep.subr.bf16.mxu0 0
    %2861 = vmatpush2.bf16.msra.mxu0 0
    %2862 = vmatprep.subr.bf16.mxu0 0
    %2863 = vmatpush2.bf16.msra.mxu0 0
    %2864 = vmatprep.mubr.bf16.mxu0 0
    %2865 = vmatmul.mubr.bf16.gmra.mxu0 %v2828
    %v2866 = vpop.f32.mrf.mxu0
    %v2867 = vadd.f32 %v101, %v2866
    %v2868 = vpop.f32.mrf.mxu0
    %v2869 = vadd.f32 %v105, %v2868
    %v2870 = vpop.f32.mrf.mxu0
    %v2871 = vadd.f32 %v101, %v2870
    %v2872 = vpop.f32.mrf.mxu0
    %v2873 = vadd.f32 %v105, %v2872
    %2874 = vmatprep.mubr.bf16.mxu0 0
    %2875 = vmatmul.mubr.bf16.gmra.mxu0 %v2829
    %v2876 = vpop.f32.mrf.mxu0
    %v2877 = vadd.f32 %v101, %v2876
    %v2878 = vpop.f32.mrf.mxu0
    %v2879 = vadd.f32 %v105, %v2878
    %v2880 = vpop.f32.mrf.mxu0
    %v2881 = vadd.f32 %v101, %v2880
    %v2882 = vpop.f32.mrf.mxu0
    %v2883 = vadd.f32 %v105, %v2882
    %2884 = vmatprep.mubr.bf16.mxu0 0
    %2885 = vmatmul.mubr.bf16.gmra.mxu0 %v2830
    %v2886 = vpop.f32.mrf.mxu0
    %v2887 = vadd.f32 %v101, %v2886
    %v2888 = vpop.f32.mrf.mxu0
    %v2889 = vadd.f32 %v105, %v2888
    %v2890 = vpop.f32.mrf.mxu0
    %v2891 = vadd.f32 %v101, %v2890
    %v2892 = vpop.f32.mrf.mxu0
    %v2893 = vadd.f32 %v105, %v2892
    %2894 = vmatprep.mubr.bf16.mxu0 0
    %2895 = vmatmul.mubr.bf16.gmra.mxu0 %v2831
    %v2896 = vpop.f32.mrf.mxu0
    %v2897 = vadd.f32 %v101, %v2896
    %v2898 = vpop.f32.mrf.mxu0
    %v2899 = vadd.f32 %v105, %v2898
    %v2900 = vpop.f32.mrf.mxu0
    %v2901 = vadd.f32 %v101, %v2900
    %v2902 = vpop.f32.mrf.mxu0
    %v2903 = vadd.f32 %v105, %v2902
    %2904 = vdwg.mxu0
    %2905 = vmatprep.subr.bf16.mxu0 0
    %2906 = vmatpush1.bf16.msra.mxu0 %v216
    %2907 = vmatprep.subr.bf16.mxu0 0
    %2908 = vmatpush1.bf16.msra.mxu0 %v213
    %2909 = vmatprep.subr.bf16.mxu0 0
    %2910 = vmatpush1.bf16.msra.mxu0 %v210
    %2911 = vmatprep.subr.bf16.mxu0 0
    %2912 = vmatpush1.bf16.msra.mxu0 %v207
    %2913 = vmatprep.subr.bf16.mxu0 0
    %2914 = vmatpush1.bf16.msra.mxu0 %v204
    %2915 = vmatprep.subr.bf16.mxu0 0
    %2916 = vmatpush1.bf16.msra.mxu0 %v201
    %2917 = vmatprep.subr.bf16.mxu0 0
    %2918 = vmatpush1.bf16.msra.mxu0 %v198
    %2919 = vmatprep.subr.bf16.mxu0 0
    %2920 = vmatpush1.bf16.msra.mxu0 %v195
    %2921 = vmatprep.subr.bf16.mxu0 0
    %2922 = vmatpush2.bf16.msra.mxu0 0
    %2923 = vmatprep.subr.bf16.mxu0 0
    %2924 = vmatpush2.bf16.msra.mxu0 0
    %2925 = vmatprep.subr.bf16.mxu0 0
    %2926 = vmatpush2.bf16.msra.mxu0 0
    %2927 = vmatprep.subr.bf16.mxu0 0
    %2928 = vmatpush2.bf16.msra.mxu0 0
    %2929 = vmatprep.subr.bf16.mxu0 0
    %2930 = vmatpush2.bf16.msra.mxu0 0
    %2931 = vmatprep.subr.bf16.mxu0 0
    %2932 = vmatpush2.bf16.msra.mxu0 0
    %2933 = vmatprep.subr.bf16.mxu0 0
    %2934 = vmatpush2.bf16.msra.mxu0 0
    %2935 = vmatprep.subr.bf16.mxu0 0
    %2936 = vmatpush2.bf16.msra.mxu0 0
    %2937 = vmatprep.mubr.bf16.mxu0 0
    %2938 = vmatmul.mubr.bf16.gmra.mxu0 %v2828
    %v2939 = vpop.f32.mrf.mxu0
    %v2940 = vadd.f32 %v109, %v2939
    %v2941 = vpop.f32.mrf.mxu0
    %v2942 = vpop.f32.mrf.mxu0
    %v2943 = vadd.f32 %v109, %v2942
    %v2944 = vpop.f32.mrf.mxu0
    %2945 = vmatprep.mubr.bf16.mxu0 0
    %2946 = vmatmul.mubr.bf16.gmra.mxu0 %v2829
    %v2947 = vpop.f32.mrf.mxu0
    %v2948 = vadd.f32 %v109, %v2947
    %v2949 = vpop.f32.mrf.mxu0
    %v2950 = vpop.f32.mrf.mxu0
    %v2951 = vadd.f32 %v109, %v2950
    %v2952 = vpop.f32.mrf.mxu0
    %2953 = vmatprep.mubr.bf16.mxu0 0
    %2954 = vmatmul.mubr.bf16.gmra.mxu0 %v2830
    %v2955 = vpop.f32.mrf.mxu0
    %v2956 = vadd.f32 %v109, %v2955
    %v2957 = vpop.f32.mrf.mxu0
    %v2958 = vpop.f32.mrf.mxu0
    %v2959 = vadd.f32 %v109, %v2958
    %v2960 = vpop.f32.mrf.mxu0
    %2961 = vmatprep.mubr.bf16.mxu0 0
    %2962 = vmatmul.mubr.bf16.gmra.mxu0 %v2831
    %v2963 = vpop.f32.mrf.mxu0
    %v2964 = vadd.f32 %v109, %v2963
    %v2965 = vpop.f32.mrf.mxu0
    %v2966 = vpop.f32.mrf.mxu0
    %v2967 = vadd.f32 %v109, %v2966
    %v2968 = vpop.f32.mrf.mxu0
    %2969 = vdwg.mxu0
    %v2970 = vpack.c.bf16 %v2871, %v2867
    %v2971 = vpack.c.bf16 %v2881, %v2877
    %v2972 = vpack.c.bf16 %v2891, %v2887
    %v2973 = vpack.c.bf16 %v2901, %v2897
    %v2974 = vpack.c.bf16 %v2873, %v2869
    %v2975 = vpack.c.bf16 %v2883, %v2879
    %v2976 = vpack.c.bf16 %v2893, %v2889
    %v2977 = vpack.c.bf16 %v2903, %v2899
    %v2978 = vpack.c.bf16 %v2943, %v2940
    %v2979 = vpack.c.bf16 %v2951, %v2948
    %v2980 = vpack.c.bf16 %v2959, %v2956
    %v2981 = vpack.c.bf16 %v2967, %v2964
    %v2983 = vsel %vm391, %v2970, 0
    %v2986 = vsel %vm391, %v2974, 0
    %2988 = vmatprep.subr.bf16.mxu0 0
    %2989 = vmatpush1.bf16.xpose.msra.mxu0 0
    %2990 = vmatprep.subr.bf16.mxu0 0
    %2991 = vmatpush1.bf16.xpose.msra.mxu0 0
    %2992 = vmatprep.subr.bf16.mxu0 0
    %2993 = vmatpush1.bf16.xpose.msra.mxu0 0
    %2994 = vmatprep.subr.bf16.mxu0 0
    %2995 = vmatpush1.bf16.xpose.msra.mxu0 0
    %2996 = vmatprep.subr.bf16.mxu0 0
    %2997 = vmatpush1.bf16.xpose.msra.mxu0 0
    %2998 = vmatprep.subr.bf16.mxu0 0
    %2999 = vmatpush1.bf16.xpose.msra.mxu0 0
    %3000 = vmatprep.subr.bf16.mxu0 0
    %3001 = vmatpush1.bf16.xpose.msra.mxu0 0
    %3002 = vmatprep.subr.bf16.mxu0 0
    %3003 = vmatpush1.bf16.xpose.msra.mxu0 %v2986
    %3004 = vmatprep.subr.bf16.mxu0 0
    %3005 = vmatpush2.bf16.xpose.msra.mxu0 0
    %3006 = vmatprep.subr.bf16.mxu0 0
    %3007 = vmatpush2.bf16.xpose.msra.mxu0 0
    %3008 = vmatprep.subr.bf16.mxu0 0
    %3009 = vmatpush2.bf16.xpose.msra.mxu0 0
    %3010 = vmatprep.subr.bf16.mxu0 0
    %3011 = vmatpush2.bf16.xpose.msra.mxu0 0
    %3012 = vmatprep.subr.bf16.mxu0 0
    %3013 = vmatpush2.bf16.xpose.msra.mxu0 0
    %3014 = vmatprep.subr.bf16.mxu0 0
    %3015 = vmatpush2.bf16.xpose.msra.mxu0 0
    %3016 = vmatprep.subr.bf16.mxu0 0
    %3017 = vmatpush2.bf16.xpose.msra.mxu0 0
    %3018 = vmatprep.subr.bf16.mxu0 0
    %3019 = vmatpush2.bf16.xpose.msra.mxu0 0
    %3020 = vmatprep.mubr.bf16.mxu0 0
    %3021 = vmatmul.mubr.bf16.gmra.mxu0 %v2983
    %v3022 = vpop.f32.mrf.mxu0
    %v3023 = vadd.f32 0.0, %v3022
    %v3024 = vpop.f32.mrf.mxu0
    %v3025 = vpop.f32.mrf.mxu0
    %v3026 = vadd.f32 0.0, %v3025
    %v3027 = vpop.f32.mrf.mxu0
    %3028 = vdwg.mxu0
    %v3030 = vsel %vm391, %v2971, 0
    %v3033 = vsel %vm391, %v2975, 0
    %3035 = vmatprep.subr.bf16.mxu0 0
    %3036 = vmatpush1.bf16.xpose.msra.mxu0 0
    %3037 = vmatprep.subr.bf16.mxu0 0
    %3038 = vmatpush1.bf16.xpose.msra.mxu0 0
    %3039 = vmatprep.subr.bf16.mxu0 0
    %3040 = vmatpush1.bf16.xpose.msra.mxu0 0
    %3041 = vmatprep.subr.bf16.mxu0 0
    %3042 = vmatpush1.bf16.xpose.msra.mxu0 0
    %3043 = vmatprep.subr.bf16.mxu0 0
    %3044 = vmatpush1.bf16.xpose.msra.mxu0 0
    %3045 = vmatprep.subr.bf16.mxu0 0
    %3046 = vmatpush1.bf16.xpose.msra.mxu0 0
    %3047 = vmatprep.subr.bf16.mxu0 0
    %3048 = vmatpush1.bf16.xpose.msra.mxu0 0
    %3049 = vmatprep.subr.bf16.mxu0 0
    %3050 = vmatpush1.bf16.xpose.msra.mxu0 %v3033
    %3051 = vmatprep.subr.bf16.mxu0 0
    %3052 = vmatpush2.bf16.xpose.msra.mxu0 0
    %3053 = vmatprep.subr.bf16.mxu0 0
    %3054 = vmatpush2.bf16.xpose.msra.mxu0 0
    %3055 = vmatprep.subr.bf16.mxu0 0
    %3056 = vmatpush2.bf16.xpose.msra.mxu0 0
    %3057 = vmatprep.subr.bf16.mxu0 0
    %3058 = vmatpush2.bf16.xpose.msra.mxu0 0
    %3059 = vmatprep.subr.bf16.mxu0 0
    %3060 = vmatpush2.bf16.xpose.msra.mxu0 0
    %3061 = vmatprep.subr.bf16.mxu0 0
    %3062 = vmatpush2.bf16.xpose.msra.mxu0 0
    %3063 = vmatprep.subr.bf16.mxu0 0
    %3064 = vmatpush2.bf16.xpose.msra.mxu0 0
    %3065 = vmatprep.subr.bf16.mxu0 0
    %3066 = vmatpush2.bf16.xpose.msra.mxu0 0
    %3067 = vmatprep.mubr.bf16.mxu0 0
    %3068 = vmatmul.mubr.bf16.gmra.mxu0 %v3030
    %v3069 = vpop.f32.mrf.mxu0
    %v3070 = vadd.f32 0.0, %v3069
    %v3071 = vpop.f32.mrf.mxu0
    %v3072 = vpop.f32.mrf.mxu0
    %v3073 = vadd.f32 0.0, %v3072
    %v3074 = vpop.f32.mrf.mxu0
    %3075 = vdwg.mxu0
    %v3077 = vsel %vm391, %v2972, 0
    %v3080 = vsel %vm391, %v2976, 0
    %3082 = vmatprep.subr.bf16.mxu0 0
    %3083 = vmatpush1.bf16.xpose.msra.mxu0 0
    %3084 = vmatprep.subr.bf16.mxu0 0
    %3085 = vmatpush1.bf16.xpose.msra.mxu0 0
    %3086 = vmatprep.subr.bf16.mxu0 0
    %3087 = vmatpush1.bf16.xpose.msra.mxu0 0
    %3088 = vmatprep.subr.bf16.mxu0 0
    %3089 = vmatpush1.bf16.xpose.msra.mxu0 0
    %3090 = vmatprep.subr.bf16.mxu0 0
    %3091 = vmatpush1.bf16.xpose.msra.mxu0 0
    %3092 = vmatprep.subr.bf16.mxu0 0
    %3093 = vmatpush1.bf16.xpose.msra.mxu0 0
    %3094 = vmatprep.subr.bf16.mxu0 0
    %3095 = vmatpush1.bf16.xpose.msra.mxu0 0
    %3096 = vmatprep.subr.bf16.mxu0 0
    %3097 = vmatpush1.bf16.xpose.msra.mxu0 %v3080
    %3098 = vmatprep.subr.bf16.mxu0 0
    %3099 = vmatpush2.bf16.xpose.msra.mxu0 0
    %3100 = vmatprep.subr.bf16.mxu0 0
    %3101 = vmatpush2.bf16.xpose.msra.mxu0 0
    %3102 = vmatprep.subr.bf16.mxu0 0
    %3103 = vmatpush2.bf16.xpose.msra.mxu0 0
    %3104 = vmatprep.subr.bf16.mxu0 0
    %3105 = vmatpush2.bf16.xpose.msra.mxu0 0
    %3106 = vmatprep.subr.bf16.mxu0 0
    %3107 = vmatpush2.bf16.xpose.msra.mxu0 0
    %3108 = vmatprep.subr.bf16.mxu0 0
    %3109 = vmatpush2.bf16.xpose.msra.mxu0 0
    %3110 = vmatprep.subr.bf16.mxu0 0
    %3111 = vmatpush2.bf16.xpose.msra.mxu0 0
    %3112 = vmatprep.subr.bf16.mxu0 0
    %3113 = vmatpush2.bf16.xpose.msra.mxu0 0
    %3114 = vmatprep.mubr.bf16.mxu0 0
    %3115 = vmatmul.mubr.bf16.gmra.mxu0 %v3077
    %v3116 = vpop.f32.mrf.mxu0
    %v3117 = vadd.f32 0.0, %v3116
    %v3118 = vpop.f32.mrf.mxu0
    %v3119 = vpop.f32.mrf.mxu0
    %v3120 = vadd.f32 0.0, %v3119
    %v3121 = vpop.f32.mrf.mxu0
    %3122 = vdwg.mxu0
    %v3124 = vsel %vm391, %v2973, 0
    %v3127 = vsel %vm391, %v2977, 0
    %3129 = vmatprep.subr.bf16.mxu0 0
    %3130 = vmatpush1.bf16.xpose.msra.mxu0 0
    %3131 = vmatprep.subr.bf16.mxu0 0
    %3132 = vmatpush1.bf16.xpose.msra.mxu0 0
    %3133 = vmatprep.subr.bf16.mxu0 0
    %3134 = vmatpush1.bf16.xpose.msra.mxu0 0
    %3135 = vmatprep.subr.bf16.mxu0 0
    %3136 = vmatpush1.bf16.xpose.msra.mxu0 0
    %3137 = vmatprep.subr.bf16.mxu0 0
    %3138 = vmatpush1.bf16.xpose.msra.mxu0 0
    %3139 = vmatprep.subr.bf16.mxu0 0
    %3140 = vmatpush1.bf16.xpose.msra.mxu0 0
    %3141 = vmatprep.subr.bf16.mxu0 0
    %3142 = vmatpush1.bf16.xpose.msra.mxu0 0
    %3143 = vmatprep.subr.bf16.mxu0 0
    %3144 = vmatpush1.bf16.xpose.msra.mxu0 %v3127
    %3145 = vmatprep.subr.bf16.mxu0 0
    %3146 = vmatpush2.bf16.xpose.msra.mxu0 0
    %3147 = vmatprep.subr.bf16.mxu0 0
    %3148 = vmatpush2.bf16.xpose.msra.mxu0 0
    %3149 = vmatprep.subr.bf16.mxu0 0
    %3150 = vmatpush2.bf16.xpose.msra.mxu0 0
    %3151 = vmatprep.subr.bf16.mxu0 0
    %3152 = vmatpush2.bf16.xpose.msra.mxu0 0
    %3153 = vmatprep.subr.bf16.mxu0 0
    %3154 = vmatpush2.bf16.xpose.msra.mxu0 0
    %3155 = vmatprep.subr.bf16.mxu0 0
    %3156 = vmatpush2.bf16.xpose.msra.mxu0 0
    %3157 = vmatprep.subr.bf16.mxu0 0
    %3158 = vmatpush2.bf16.xpose.msra.mxu0 0
    %3159 = vmatprep.subr.bf16.mxu0 0
    %3160 = vmatpush2.bf16.xpose.msra.mxu0 0
    %3161 = vmatprep.mubr.bf16.mxu0 0
    %3162 = vmatmul.mubr.bf16.gmra.mxu0 %v3124
    %v3163 = vpop.f32.mrf.mxu0
    %v3164 = vadd.f32 0.0, %v3163
    %v3165 = vpop.f32.mrf.mxu0
    %v3166 = vpop.f32.mrf.mxu0
    %v3167 = vadd.f32 0.0, %v3166
    %v3168 = vpop.f32.mrf.mxu0
    %3169 = vdwg.mxu0
    %v3170 = vsel %vm580, %v3023, -inf
    %3171 = vmax.xlane.f32.xlu0 %v3170
    %v3172 = vpop.xlane.xlu0 %3171
    %v3173 = vsel %vm580, %v3026, -inf
    %3174 = vmax.xlane.f32.xlu0 %v3173
    %v3175 = vpop.xlane.xlu0 %3174
    %v3176 = vsel %vm580, %v3070, -inf
    %3177 = vmax.xlane.f32.xlu0 %v3176
    %v3178 = vpop.xlane.xlu0 %3177
    %v3179 = vsel %vm580, %v3073, -inf
    %3180 = vmax.xlane.f32.xlu0 %v3179
    %v3181 = vpop.xlane.xlu0 %3180
    %v3182 = vsel %vm580, %v3117, -inf
    %3183 = vmax.xlane.f32.xlu0 %v3182
    %v3184 = vpop.xlane.xlu0 %3183
    %v3185 = vsel %vm580, %v3120, -inf
    %3186 = vmax.xlane.f32.xlu0 %v3185
    %v3187 = vpop.xlane.xlu0 %3186
    %v3188 = vsel %vm580, %v3164, -inf
    %3189 = vmax.xlane.f32.xlu0 %v3188
    %v3190 = vpop.xlane.xlu0 %3189
    %v3191 = vsel %vm580, %v3167, -inf
    %3192 = vmax.xlane.f32.xlu0 %v3191
    %v3193 = vpop.xlane.xlu0 %3192
    %v3194 = vsub.f32 %v3023, %v3172
    %v3195 = vsub.f32 %v3026, %v3175
    %v3196 = vsub.f32 %v3070, %v3178
    %v3197 = vsub.f32 %v3073, %v3181
    %v3198 = vsub.f32 %v3117, %v3184
    %v3199 = vsub.f32 %v3120, %v3187
    %v3200 = vsub.f32 %v3164, %v3190
    %v3201 = vsub.f32 %v3167, %v3193
    %v3202 = vmul.f32 %v3194, 1.442695
    %v3203 = vpow.pop %v3202
    %v3204 = vmul.f32 %v3195, 1.442695
    %v3205 = vpow.pop %v3204
    %v3206 = vmul.f32 %v3196, 1.442695
    %v3207 = vpow.pop %v3206
    %v3208 = vmul.f32 %v3197, 1.442695
    %v3209 = vpow.pop %v3208
    %v3210 = vmul.f32 %v3198, 1.442695
    %v3211 = vpow.pop %v3210
    %v3212 = vmul.f32 %v3199, 1.442695
    %v3213 = vpow.pop %v3212
    %v3214 = vmul.f32 %v3200, 1.442695
    %v3215 = vpow.pop %v3214
    %v3216 = vmul.f32 %v3201, 1.442695
    %v3217 = vpow.pop %v3216
    %v3218 = vsel %vm580, %v3203, 0.0
    %3219 = vadd.xlane.f32.xlu0 %v3218
    %v3220 = vpop.xlane.xlu0 %3219
    %v3221 = vsel %vm580, %v3205, 0.0
    %3222 = vadd.xlane.f32.xlu0 %v3221
    %v3223 = vpop.xlane.xlu0 %3222
    %v3224 = vsel %vm580, %v3207, 0.0
    %3225 = vadd.xlane.f32.xlu0 %v3224
    %v3226 = vpop.xlane.xlu0 %3225
    %v3227 = vsel %vm580, %v3209, 0.0
    %3228 = vadd.xlane.f32.xlu0 %v3227
    %v3229 = vpop.xlane.xlu0 %3228
    %v3230 = vsel %vm580, %v3211, 0.0
    %3231 = vadd.xlane.f32.xlu0 %v3230
    %v3232 = vpop.xlane.xlu0 %3231
    %v3233 = vsel %vm580, %v3213, 0.0
    %3234 = vadd.xlane.f32.xlu0 %v3233
    %v3235 = vpop.xlane.xlu0 %3234
    %v3236 = vsel %vm580, %v3215, 0.0
    %3237 = vadd.xlane.f32.xlu0 %v3236
    %v3238 = vpop.xlane.xlu0 %3237
    %v3239 = vsel %vm580, %v3217, 0.0
    %3240 = vadd.xlane.f32.xlu0 %v3239
    %v3241 = vpop.xlane.xlu0 %3240
    %v3242 = vrcp.pop %v3220
    %v3243 = vrcp.pop %v3223
    %v3244 = vrcp.pop %v3226
    %v3245 = vrcp.pop %v3229
    %v3246 = vrcp.pop %v3232
    %v3247 = vrcp.pop %v3235
    %v3248 = vrcp.pop %v3238
    %v3249 = vrcp.pop %v3241
    %v3250 = vmul.f32 %v3203, %v3242
    %v3251 = vmul.f32 %v3205, %v3243
    %v3252 = vmul.f32 %v3207, %v3244
    %v3253 = vmul.f32 %v3209, %v3245
    %v3254 = vmul.f32 %v3211, %v3246
    %v3255 = vmul.f32 %v3213, %v3247
    %v3256 = vmul.f32 %v3215, %v3248
    %v3257 = vmul.f32 %v3217, %v3249
    %v3258 = vpack.c.bf16 %v3251, %v3250
    %v3259 = vpack.c.bf16 %v3253, %v3252
    %v3260 = vpack.c.bf16 %v3255, %v3254
    %v3261 = vpack.c.bf16 %v3257, %v3256
    %v3263 = vsel %vm580, %v3258, 0
    %3265 = vmatprep.subr.bf16.mxu0 0
    %3266 = vmatpush1.bf16.msra.mxu0 0
    %3267 = vmatprep.subr.bf16.mxu0 0
    %3268 = vmatpush1.bf16.msra.mxu0 0
    %3269 = vmatprep.subr.bf16.mxu0 0
    %3270 = vmatpush1.bf16.msra.mxu0 0
    %3271 = vmatprep.subr.bf16.mxu0 0
    %3272 = vmatpush1.bf16.msra.mxu0 0
    %3273 = vmatprep.subr.bf16.mxu0 0
    %3274 = vmatpush1.bf16.msra.mxu0 0
    %3275 = vmatprep.subr.bf16.mxu0 0
    %3276 = vmatpush1.bf16.msra.mxu0 0
    %3277 = vmatprep.subr.bf16.mxu0 0
    %3278 = vmatpush1.bf16.msra.mxu0 0
    %3279 = vmatprep.subr.bf16.mxu0 0
    %3280 = vmatpush1.bf16.msra.mxu0 %v2978
    %3281 = vmatprep.subr.bf16.mxu0 0
    %3282 = vmatpush2.bf16.msra.mxu0 0
    %3283 = vmatprep.subr.bf16.mxu0 0
    %3284 = vmatpush2.bf16.msra.mxu0 0
    %3285 = vmatprep.subr.bf16.mxu0 0
    %3286 = vmatpush2.bf16.msra.mxu0 0
    %3287 = vmatprep.subr.bf16.mxu0 0
    %3288 = vmatpush2.bf16.msra.mxu0 0
    %3289 = vmatprep.subr.bf16.mxu0 0
    %3290 = vmatpush2.bf16.msra.mxu0 0
    %3291 = vmatprep.subr.bf16.mxu0 0
    %3292 = vmatpush2.bf16.msra.mxu0 0
    %3293 = vmatprep.subr.bf16.mxu0 0
    %3294 = vmatpush2.bf16.msra.mxu0 0
    %3295 = vmatprep.subr.bf16.mxu0 0
    %3296 = vmatpush2.bf16.msra.mxu0 0
    %3297 = vmatprep.mubr.bf16.mxu0 0
    %3298 = vmatmul.mubr.bf16.gmra.mxu0 %v3263
    %v3299 = vpop.f32.mrf.mxu0
    %v3300 = vadd.f32 0.0, %v3299
    %v3301 = vpop.f32.mrf.mxu0
    %v3302 = vpop.f32.mrf.mxu0
    %v3303 = vadd.f32 0.0, %v3302
    %v3304 = vpop.f32.mrf.mxu0
    %3305 = vdwg.mxu0
    %v3307 = vsel %vm580, %v3259, 0
    %3309 = vmatprep.subr.bf16.mxu0 0
    %3310 = vmatpush1.bf16.msra.mxu0 0
    %3311 = vmatprep.subr.bf16.mxu0 0
    %3312 = vmatpush1.bf16.msra.mxu0 0
    %3313 = vmatprep.subr.bf16.mxu0 0
    %3314 = vmatpush1.bf16.msra.mxu0 0
    %3315 = vmatprep.subr.bf16.mxu0 0
    %3316 = vmatpush1.bf16.msra.mxu0 0
    %3317 = vmatprep.subr.bf16.mxu0 0
    %3318 = vmatpush1.bf16.msra.mxu0 0
    %3319 = vmatprep.subr.bf16.mxu0 0
    %3320 = vmatpush1.bf16.msra.mxu0 0
    %3321 = vmatprep.subr.bf16.mxu0 0
    %3322 = vmatpush1.bf16.msra.mxu0 0
    %3323 = vmatprep.subr.bf16.mxu0 0
    %3324 = vmatpush1.bf16.msra.mxu0 %v2979
    %3325 = vmatprep.subr.bf16.mxu0 0
    %3326 = vmatpush2.bf16.msra.mxu0 0
    %3327 = vmatprep.subr.bf16.mxu0 0
    %3328 = vmatpush2.bf16.msra.mxu0 0
    %3329 = vmatprep.subr.bf16.mxu0 0
    %3330 = vmatpush2.bf16.msra.mxu0 0
    %3331 = vmatprep.subr.bf16.mxu0 0
    %3332 = vmatpush2.bf16.msra.mxu0 0
    %3333 = vmatprep.subr.bf16.mxu0 0
    %3334 = vmatpush2.bf16.msra.mxu0 0
    %3335 = vmatprep.subr.bf16.mxu0 0
    %3336 = vmatpush2.bf16.msra.mxu0 0
    %3337 = vmatprep.subr.bf16.mxu0 0
    %3338 = vmatpush2.bf16.msra.mxu0 0
    %3339 = vmatprep.subr.bf16.mxu0 0
    %3340 = vmatpush2.bf16.msra.mxu0 0
    %3341 = vmatprep.mubr.bf16.mxu0 0
    %3342 = vmatmul.mubr.bf16.gmra.mxu0 %v3307
    %v3343 = vpop.f32.mrf.mxu0
    %v3344 = vadd.f32 0.0, %v3343
    %v3345 = vpop.f32.mrf.mxu0
    %v3346 = vpop.f32.mrf.mxu0
    %v3347 = vadd.f32 0.0, %v3346
    %v3348 = vpop.f32.mrf.mxu0
    %3349 = vdwg.mxu0
    %v3351 = vsel %vm580, %v3260, 0
    %3353 = vmatprep.subr.bf16.mxu0 0
    %3354 = vmatpush1.bf16.msra.mxu0 0
    %3355 = vmatprep.subr.bf16.mxu0 0
    %3356 = vmatpush1.bf16.msra.mxu0 0
    %3357 = vmatprep.subr.bf16.mxu0 0
    %3358 = vmatpush1.bf16.msra.mxu0 0
    %3359 = vmatprep.subr.bf16.mxu0 0
    %3360 = vmatpush1.bf16.msra.mxu0 0
    %3361 = vmatprep.subr.bf16.mxu0 0
    %3362 = vmatpush1.bf16.msra.mxu0 0
    %3363 = vmatprep.subr.bf16.mxu0 0
    %3364 = vmatpush1.bf16.msra.mxu0 0
    %3365 = vmatprep.subr.bf16.mxu0 0
    %3366 = vmatpush1.bf16.msra.mxu0 0
    %3367 = vmatprep.subr.bf16.mxu0 0
    %3368 = vmatpush1.bf16.msra.mxu0 %v2980
    %3369 = vmatprep.subr.bf16.mxu0 0
    %3370 = vmatpush2.bf16.msra.mxu0 0
    %3371 = vmatprep.subr.bf16.mxu0 0
    %3372 = vmatpush2.bf16.msra.mxu0 0
    %3373 = vmatprep.subr.bf16.mxu0 0
    %3374 = vmatpush2.bf16.msra.mxu0 0
    %3375 = vmatprep.subr.bf16.mxu0 0
    %3376 = vmatpush2.bf16.msra.mxu0 0
    %3377 = vmatprep.subr.bf16.mxu0 0
    %3378 = vmatpush2.bf16.msra.mxu0 0
    %3379 = vmatprep.subr.bf16.mxu0 0
    %3380 = vmatpush2.bf16.msra.mxu0 0
    %3381 = vmatprep.subr.bf16.mxu0 0
    %3382 = vmatpush2.bf16.msra.mxu0 0
    %3383 = vmatprep.subr.bf16.mxu0 0
    %3384 = vmatpush2.bf16.msra.mxu0 0
    %3385 = vmatprep.mubr.bf16.mxu0 0
    %3386 = vmatmul.mubr.bf16.gmra.mxu0 %v3351
    %v3387 = vpop.f32.mrf.mxu0
    %v3388 = vadd.f32 0.0, %v3387
    %v3389 = vpop.f32.mrf.mxu0
    %v3390 = vpop.f32.mrf.mxu0
    %v3391 = vadd.f32 0.0, %v3390
    %v3392 = vpop.f32.mrf.mxu0
    %3393 = vdwg.mxu0
    %v3395 = vsel %vm580, %v3261, 0
    %3397 = vmatprep.subr.bf16.mxu0 0
    %3398 = vmatpush1.bf16.msra.mxu0 0
    %3399 = vmatprep.subr.bf16.mxu0 0
    %3400 = vmatpush1.bf16.msra.mxu0 0
    %3401 = vmatprep.subr.bf16.mxu0 0
    %3402 = vmatpush1.bf16.msra.mxu0 0
    %3403 = vmatprep.subr.bf16.mxu0 0
    %3404 = vmatpush1.bf16.msra.mxu0 0
    %3405 = vmatprep.subr.bf16.mxu0 0
    %3406 = vmatpush1.bf16.msra.mxu0 0
    %3407 = vmatprep.subr.bf16.mxu0 0
    %3408 = vmatpush1.bf16.msra.mxu0 0
    %3409 = vmatprep.subr.bf16.mxu0 0
    %3410 = vmatpush1.bf16.msra.mxu0 0
    %3411 = vmatprep.subr.bf16.mxu0 0
    %3412 = vmatpush1.bf16.msra.mxu0 %v2981
    %3413 = vmatprep.subr.bf16.mxu0 0
    %3414 = vmatpush2.bf16.msra.mxu0 0
    %3415 = vmatprep.subr.bf16.mxu0 0
    %3416 = vmatpush2.bf16.msra.mxu0 0
    %3417 = vmatprep.subr.bf16.mxu0 0
    %3418 = vmatpush2.bf16.msra.mxu0 0
    %3419 = vmatprep.subr.bf16.mxu0 0
    %3420 = vmatpush2.bf16.msra.mxu0 0
    %3421 = vmatprep.subr.bf16.mxu0 0
    %3422 = vmatpush2.bf16.msra.mxu0 0
    %3423 = vmatprep.subr.bf16.mxu0 0
    %3424 = vmatpush2.bf16.msra.mxu0 0
    %3425 = vmatprep.subr.bf16.mxu0 0
    %3426 = vmatpush2.bf16.msra.mxu0 0
    %3427 = vmatprep.subr.bf16.mxu0 0
    %3428 = vmatpush2.bf16.msra.mxu0 0
    %3429 = vmatprep.mubr.bf16.mxu0 0
    %3430 = vmatmul.mubr.bf16.gmra.mxu0 %v3395
    %v3431 = vpop.f32.mrf.mxu0
    %v3432 = vadd.f32 0.0, %v3431
    %v3433 = vpop.f32.mrf.mxu0
    %v3434 = vpop.f32.mrf.mxu0
    %v3435 = vadd.f32 0.0, %v3434
    %v3436 = vpop.f32.mrf.mxu0
    %3437 = vdwg.mxu0
    %v3438 = vpack.c.bf16 %v3303, %v3300
    %v3439 = vpack.c.bf16 %v3347, %v3344
    %v3440 = vpack.c.bf16 %v3391, %v3388
    %v3441 = vpack.c.bf16 %v3435, %v3432
    %3443 = vrot.lane.b32.xlu0 %v2970, 96
    %v3444 = vpop.permute.xlu0 %3443
    %3446 = vrot.lane.b32.xlu0 %v2974, 96
    %v3447 = vpop.permute.xlu0 %3446
    %v3449 = vsel %vm391, %v3444, 0
    %v3452 = vsel %vm391, %v3447, 0
    %3454 = vmatprep.subr.bf16.mxu0 0
    %3455 = vmatpush1.bf16.xpose.msra.mxu0 0
    %3456 = vmatprep.subr.bf16.mxu0 0
    %3457 = vmatpush1.bf16.xpose.msra.mxu0 0
    %3458 = vmatprep.subr.bf16.mxu0 0
    %3459 = vmatpush1.bf16.xpose.msra.mxu0 0
    %3460 = vmatprep.subr.bf16.mxu0 0
    %3461 = vmatpush1.bf16.xpose.msra.mxu0 0
    %3462 = vmatprep.subr.bf16.mxu0 0
    %3463 = vmatpush1.bf16.xpose.msra.mxu0 0
    %3464 = vmatprep.subr.bf16.mxu0 0
    %3465 = vmatpush1.bf16.xpose.msra.mxu0 0
    %3466 = vmatprep.subr.bf16.mxu0 0
    %3467 = vmatpush1.bf16.xpose.msra.mxu0 0
    %3468 = vmatprep.subr.bf16.mxu0 0
    %3469 = vmatpush1.bf16.xpose.msra.mxu0 %v3452
    %3470 = vmatprep.subr.bf16.mxu0 0
    %3471 = vmatpush2.bf16.xpose.msra.mxu0 0
    %3472 = vmatprep.subr.bf16.mxu0 0
    %3473 = vmatpush2.bf16.xpose.msra.mxu0 0
    %3474 = vmatprep.subr.bf16.mxu0 0
    %3475 = vmatpush2.bf16.xpose.msra.mxu0 0
    %3476 = vmatprep.subr.bf16.mxu0 0
    %3477 = vmatpush2.bf16.xpose.msra.mxu0 0
    %3478 = vmatprep.subr.bf16.mxu0 0
    %3479 = vmatpush2.bf16.xpose.msra.mxu0 0
    %3480 = vmatprep.subr.bf16.mxu0 0
    %3481 = vmatpush2.bf16.xpose.msra.mxu0 0
    %3482 = vmatprep.subr.bf16.mxu0 0
    %3483 = vmatpush2.bf16.xpose.msra.mxu0 0
    %3484 = vmatprep.subr.bf16.mxu0 0
    %3485 = vmatpush2.bf16.xpose.msra.mxu0 0
    %3486 = vmatprep.mubr.bf16.mxu0 0
    %3487 = vmatmul.mubr.bf16.gmra.mxu0 %v3449
    %v3488 = vpop.f32.mrf.mxu0
    %v3489 = vadd.f32 0.0, %v3488
    %v3490 = vpop.f32.mrf.mxu0
    %v3491 = vpop.f32.mrf.mxu0
    %v3492 = vadd.f32 0.0, %v3491
    %v3493 = vpop.f32.mrf.mxu0
    %3494 = vdwg.mxu0
    %3496 = vrot.lane.b32.xlu0 %v2971, 96
    %v3497 = vpop.permute.xlu0 %3496
    %3499 = vrot.lane.b32.xlu0 %v2975, 96
    %v3500 = vpop.permute.xlu0 %3499
    %v3502 = vsel %vm391, %v3497, 0
    %v3505 = vsel %vm391, %v3500, 0
    %3507 = vmatprep.subr.bf16.mxu0 0
    %3508 = vmatpush1.bf16.xpose.msra.mxu0 0
    %3509 = vmatprep.subr.bf16.mxu0 0
    %3510 = vmatpush1.bf16.xpose.msra.mxu0 0
    %3511 = vmatprep.subr.bf16.mxu0 0
    %3512 = vmatpush1.bf16.xpose.msra.mxu0 0
    %3513 = vmatprep.subr.bf16.mxu0 0
    %3514 = vmatpush1.bf16.xpose.msra.mxu0 0
    %3515 = vmatprep.subr.bf16.mxu0 0
    %3516 = vmatpush1.bf16.xpose.msra.mxu0 0
    %3517 = vmatprep.subr.bf16.mxu0 0
    %3518 = vmatpush1.bf16.xpose.msra.mxu0 0
    %3519 = vmatprep.subr.bf16.mxu0 0
    %3520 = vmatpush1.bf16.xpose.msra.mxu0 0
    %3521 = vmatprep.subr.bf16.mxu0 0
    %3522 = vmatpush1.bf16.xpose.msra.mxu0 %v3505
    %3523 = vmatprep.subr.bf16.mxu0 0
    %3524 = vmatpush2.bf16.xpose.msra.mxu0 0
    %3525 = vmatprep.subr.bf16.mxu0 0
    %3526 = vmatpush2.bf16.xpose.msra.mxu0 0
    %3527 = vmatprep.subr.bf16.mxu0 0
    %3528 = vmatpush2.bf16.xpose.msra.mxu0 0
    %3529 = vmatprep.subr.bf16.mxu0 0
    %3530 = vmatpush2.bf16.xpose.msra.mxu0 0
    %3531 = vmatprep.subr.bf16.mxu0 0
    %3532 = vmatpush2.bf16.xpose.msra.mxu0 0
    %3533 = vmatprep.subr.bf16.mxu0 0
    %3534 = vmatpush2.bf16.xpose.msra.mxu0 0
    %3535 = vmatprep.subr.bf16.mxu0 0
    %3536 = vmatpush2.bf16.xpose.msra.mxu0 0
    %3537 = vmatprep.subr.bf16.mxu0 0
    %3538 = vmatpush2.bf16.xpose.msra.mxu0 0
    %3539 = vmatprep.mubr.bf16.mxu0 0
    %3540 = vmatmul.mubr.bf16.gmra.mxu0 %v3502
    %v3541 = vpop.f32.mrf.mxu0
    %v3542 = vadd.f32 0.0, %v3541
    %v3543 = vpop.f32.mrf.mxu0
    %v3544 = vpop.f32.mrf.mxu0
    %v3545 = vadd.f32 0.0, %v3544
    %v3546 = vpop.f32.mrf.mxu0
    %3547 = vdwg.mxu0
    %3549 = vrot.lane.b32.xlu0 %v2972, 96
    %v3550 = vpop.permute.xlu0 %3549
    %3552 = vrot.lane.b32.xlu0 %v2976, 96
    %v3553 = vpop.permute.xlu0 %3552
    %v3555 = vsel %vm391, %v3550, 0
    %v3558 = vsel %vm391, %v3553, 0
    %3560 = vmatprep.subr.bf16.mxu0 0
    %3561 = vmatpush1.bf16.xpose.msra.mxu0 0
    %3562 = vmatprep.subr.bf16.mxu0 0
    %3563 = vmatpush1.bf16.xpose.msra.mxu0 0
    %3564 = vmatprep.subr.bf16.mxu0 0
    %3565 = vmatpush1.bf16.xpose.msra.mxu0 0
    %3566 = vmatprep.subr.bf16.mxu0 0
    %3567 = vmatpush1.bf16.xpose.msra.mxu0 0
    %3568 = vmatprep.subr.bf16.mxu0 0
    %3569 = vmatpush1.bf16.xpose.msra.mxu0 0
    %3570 = vmatprep.subr.bf16.mxu0 0
    %3571 = vmatpush1.bf16.xpose.msra.mxu0 0
    %3572 = vmatprep.subr.bf16.mxu0 0
    %3573 = vmatpush1.bf16.xpose.msra.mxu0 0
    %3574 = vmatprep.subr.bf16.mxu0 0
    %3575 = vmatpush1.bf16.xpose.msra.mxu0 %v3558
    %3576 = vmatprep.subr.bf16.mxu0 0
    %3577 = vmatpush2.bf16.xpose.msra.mxu0 0
    %3578 = vmatprep.subr.bf16.mxu0 0
    %3579 = vmatpush2.bf16.xpose.msra.mxu0 0
    %3580 = vmatprep.subr.bf16.mxu0 0
    %3581 = vmatpush2.bf16.xpose.msra.mxu0 0
    %3582 = vmatprep.subr.bf16.mxu0 0
    %3583 = vmatpush2.bf16.xpose.msra.mxu0 0
    %3584 = vmatprep.subr.bf16.mxu0 0
    %3585 = vmatpush2.bf16.xpose.msra.mxu0 0
    %3586 = vmatprep.subr.bf16.mxu0 0
    %3587 = vmatpush2.bf16.xpose.msra.mxu0 0
    %3588 = vmatprep.subr.bf16.mxu0 0
    %3589 = vmatpush2.bf16.xpose.msra.mxu0 0
    %3590 = vmatprep.subr.bf16.mxu0 0
    %3591 = vmatpush2.bf16.xpose.msra.mxu0 0
    %3592 = vmatprep.mubr.bf16.mxu0 0
    %3593 = vmatmul.mubr.bf16.gmra.mxu0 %v3555
    %v3594 = vpop.f32.mrf.mxu0
    %v3595 = vadd.f32 0.0, %v3594
    %v3596 = vpop.f32.mrf.mxu0
    %v3597 = vpop.f32.mrf.mxu0
    %v3598 = vadd.f32 0.0, %v3597
    %v3599 = vpop.f32.mrf.mxu0
    %3600 = vdwg.mxu0
    %3602 = vrot.lane.b32.xlu0 %v2973, 96
    %v3603 = vpop.permute.xlu0 %3602
    %3605 = vrot.lane.b32.xlu0 %v2977, 96
    %v3606 = vpop.permute.xlu0 %3605
    %v3608 = vsel %vm391, %v3603, 0
    %v3611 = vsel %vm391, %v3606, 0
    %3613 = vmatprep.subr.bf16.mxu0 0
    %3614 = vmatpush1.bf16.xpose.msra.mxu0 0
    %3615 = vmatprep.subr.bf16.mxu0 0
    %3616 = vmatpush1.bf16.xpose.msra.mxu0 0
    %3617 = vmatprep.subr.bf16.mxu0 0
    %3618 = vmatpush1.bf16.xpose.msra.mxu0 0
    %3619 = vmatprep.subr.bf16.mxu0 0
    %3620 = vmatpush1.bf16.xpose.msra.mxu0 0
    %3621 = vmatprep.subr.bf16.mxu0 0
    %3622 = vmatpush1.bf16.xpose.msra.mxu0 0
    %3623 = vmatprep.subr.bf16.mxu0 0
    %3624 = vmatpush1.bf16.xpose.msra.mxu0 0
    %3625 = vmatprep.subr.bf16.mxu0 0
    %3626 = vmatpush1.bf16.xpose.msra.mxu0 0
    %3627 = vmatprep.subr.bf16.mxu0 0
    %3628 = vmatpush1.bf16.xpose.msra.mxu0 %v3611
    %3629 = vmatprep.subr.bf16.mxu0 0
    %3630 = vmatpush2.bf16.xpose.msra.mxu0 0
    %3631 = vmatprep.subr.bf16.mxu0 0
    %3632 = vmatpush2.bf16.xpose.msra.mxu0 0
    %3633 = vmatprep.subr.bf16.mxu0 0
    %3634 = vmatpush2.bf16.xpose.msra.mxu0 0
    %3635 = vmatprep.subr.bf16.mxu0 0
    %3636 = vmatpush2.bf16.xpose.msra.mxu0 0
    %3637 = vmatprep.subr.bf16.mxu0 0
    %3638 = vmatpush2.bf16.xpose.msra.mxu0 0
    %3639 = vmatprep.subr.bf16.mxu0 0
    %3640 = vmatpush2.bf16.xpose.msra.mxu0 0
    %3641 = vmatprep.subr.bf16.mxu0 0
    %3642 = vmatpush2.bf16.xpose.msra.mxu0 0
    %3643 = vmatprep.subr.bf16.mxu0 0
    %3644 = vmatpush2.bf16.xpose.msra.mxu0 0
    %3645 = vmatprep.mubr.bf16.mxu0 0
    %3646 = vmatmul.mubr.bf16.gmra.mxu0 %v3608
    %v3647 = vpop.f32.mrf.mxu0
    %v3648 = vadd.f32 0.0, %v3647
    %v3649 = vpop.f32.mrf.mxu0
    %v3650 = vpop.f32.mrf.mxu0
    %v3651 = vadd.f32 0.0, %v3650
    %v3652 = vpop.f32.mrf.mxu0
    %3653 = vdwg.mxu0
    %v3654 = vsel %vm580, %v3489, -inf
    %3655 = vmax.xlane.f32.xlu0 %v3654
    %v3656 = vpop.xlane.xlu0 %3655
    %v3657 = vsel %vm580, %v3492, -inf
    %3658 = vmax.xlane.f32.xlu0 %v3657
    %v3659 = vpop.xlane.xlu0 %3658
    %v3660 = vsel %vm580, %v3542, -inf
    %3661 = vmax.xlane.f32.xlu0 %v3660
    %v3662 = vpop.xlane.xlu0 %3661
    %v3663 = vsel %vm580, %v3545, -inf
    %3664 = vmax.xlane.f32.xlu0 %v3663
    %v3665 = vpop.xlane.xlu0 %3664
    %v3666 = vsel %vm580, %v3595, -inf
    %3667 = vmax.xlane.f32.xlu0 %v3666
    %v3668 = vpop.xlane.xlu0 %3667
    %v3669 = vsel %vm580, %v3598, -inf
    %3670 = vmax.xlane.f32.xlu0 %v3669
    %v3671 = vpop.xlane.xlu0 %3670
    %v3672 = vsel %vm580, %v3648, -inf
    %3673 = vmax.xlane.f32.xlu0 %v3672
    %v3674 = vpop.xlane.xlu0 %3673
    %v3675 = vsel %vm580, %v3651, -inf
    %3676 = vmax.xlane.f32.xlu0 %v3675
    %v3677 = vpop.xlane.xlu0 %3676
    %v3678 = vsub.f32 %v3489, %v3656
    %v3679 = vsub.f32 %v3492, %v3659
    %v3680 = vsub.f32 %v3542, %v3662
    %v3681 = vsub.f32 %v3545, %v3665
    %v3682 = vsub.f32 %v3595, %v3668
    %v3683 = vsub.f32 %v3598, %v3671
    %v3684 = vsub.f32 %v3648, %v3674
    %v3685 = vsub.f32 %v3651, %v3677
    %v3686 = vmul.f32 %v3678, 1.442695
    %v3687 = vpow.pop %v3686
    %v3688 = vmul.f32 %v3679, 1.442695
    %v3689 = vpow.pop %v3688
    %v3690 = vmul.f32 %v3680, 1.442695
    %v3691 = vpow.pop %v3690
    %v3692 = vmul.f32 %v3681, 1.442695
    %v3693 = vpow.pop %v3692
    %v3694 = vmul.f32 %v3682, 1.442695
    %v3695 = vpow.pop %v3694
    %v3696 = vmul.f32 %v3683, 1.442695
    %v3697 = vpow.pop %v3696
    %v3698 = vmul.f32 %v3684, 1.442695
    %v3699 = vpow.pop %v3698
    %v3700 = vmul.f32 %v3685, 1.442695
    %v3701 = vpow.pop %v3700
    %v3702 = vsel %vm580, %v3687, 0.0
    %3703 = vadd.xlane.f32.xlu0 %v3702
    %v3704 = vpop.xlane.xlu0 %3703
    %v3705 = vsel %vm580, %v3689, 0.0
    %3706 = vadd.xlane.f32.xlu0 %v3705
    %v3707 = vpop.xlane.xlu0 %3706
    %v3708 = vsel %vm580, %v3691, 0.0
    %3709 = vadd.xlane.f32.xlu0 %v3708
    %v3710 = vpop.xlane.xlu0 %3709
    %v3711 = vsel %vm580, %v3693, 0.0
    %3712 = vadd.xlane.f32.xlu0 %v3711
    %v3713 = vpop.xlane.xlu0 %3712
    %v3714 = vsel %vm580, %v3695, 0.0
    %3715 = vadd.xlane.f32.xlu0 %v3714
    %v3716 = vpop.xlane.xlu0 %3715
    %v3717 = vsel %vm580, %v3697, 0.0
    %3718 = vadd.xlane.f32.xlu0 %v3717
    %v3719 = vpop.xlane.xlu0 %3718
    %v3720 = vsel %vm580, %v3699, 0.0
    %3721 = vadd.xlane.f32.xlu0 %v3720
    %v3722 = vpop.xlane.xlu0 %3721
    %v3723 = vsel %vm580, %v3701, 0.0
    %3724 = vadd.xlane.f32.xlu0 %v3723
    %v3725 = vpop.xlane.xlu0 %3724
    %v3726 = vrcp.pop %v3704
    %v3727 = vrcp.pop %v3707
    %v3728 = vrcp.pop %v3710
    %v3729 = vrcp.pop %v3713
    %v3730 = vrcp.pop %v3716
    %v3731 = vrcp.pop %v3719
    %v3732 = vrcp.pop %v3722
    %v3733 = vrcp.pop %v3725
    %v3734 = vmul.f32 %v3687, %v3726
    %v3735 = vmul.f32 %v3689, %v3727
    %v3736 = vmul.f32 %v3691, %v3728
    %v3737 = vmul.f32 %v3693, %v3729
    %v3738 = vmul.f32 %v3695, %v3730
    %v3739 = vmul.f32 %v3697, %v3731
    %v3740 = vmul.f32 %v3699, %v3732
    %v3741 = vmul.f32 %v3701, %v3733
    %v3742 = vpack.c.bf16 %v3735, %v3734
    %v3743 = vpack.c.bf16 %v3737, %v3736
    %v3744 = vpack.c.bf16 %v3739, %v3738
    %v3745 = vpack.c.bf16 %v3741, %v3740
    %3747 = vrot.lane.b32.xlu0 %v2978, 96
    %v3748 = vpop.permute.xlu0 %3747
    %v3751 = vsel %vm580, %v3742, 0
    %3753 = vmatprep.subr.bf16.mxu0 0
    %3754 = vmatpush1.bf16.msra.mxu0 0
    %3755 = vmatprep.subr.bf16.mxu0 0
    %3756 = vmatpush1.bf16.msra.mxu0 0
    %3757 = vmatprep.subr.bf16.mxu0 0
    %3758 = vmatpush1.bf16.msra.mxu0 0
    %3759 = vmatprep.subr.bf16.mxu0 0
    %3760 = vmatpush1.bf16.msra.mxu0 0
    %3761 = vmatprep.subr.bf16.mxu0 0
    %3762 = vmatpush1.bf16.msra.mxu0 0
    %3763 = vmatprep.subr.bf16.mxu0 0
    %3764 = vmatpush1.bf16.msra.mxu0 0
    %3765 = vmatprep.subr.bf16.mxu0 0
    %3766 = vmatpush1.bf16.msra.mxu0 0
    %3767 = vmatprep.subr.bf16.mxu0 0
    %3768 = vmatpush1.bf16.msra.mxu0 %v3748
    %3769 = vmatprep.subr.bf16.mxu0 0
    %3770 = vmatpush2.bf16.msra.mxu0 0
    %3771 = vmatprep.subr.bf16.mxu0 0
    %3772 = vmatpush2.bf16.msra.mxu0 0
    %3773 = vmatprep.subr.bf16.mxu0 0
    %3774 = vmatpush2.bf16.msra.mxu0 0
    %3775 = vmatprep.subr.bf16.mxu0 0
    %3776 = vmatpush2.bf16.msra.mxu0 0
    %3777 = vmatprep.subr.bf16.mxu0 0
    %3778 = vmatpush2.bf16.msra.mxu0 0
    %3779 = vmatprep.subr.bf16.mxu0 0
    %3780 = vmatpush2.bf16.msra.mxu0 0
    %3781 = vmatprep.subr.bf16.mxu0 0
    %3782 = vmatpush2.bf16.msra.mxu0 0
    %3783 = vmatprep.subr.bf16.mxu0 0
    %3784 = vmatpush2.bf16.msra.mxu0 0
    %3785 = vmatprep.mubr.bf16.mxu0 0
    %3786 = vmatmul.mubr.bf16.gmra.mxu0 %v3751
    %v3787 = vpop.f32.mrf.mxu0
    %v3788 = vadd.f32 0.0, %v3787
    %v3789 = vpop.f32.mrf.mxu0
    %v3790 = vpop.f32.mrf.mxu0
    %v3791 = vadd.f32 0.0, %v3790
    %v3792 = vpop.f32.mrf.mxu0
    %3793 = vdwg.mxu0
    %3795 = vrot.lane.b32.xlu0 %v2979, 96
    %v3796 = vpop.permute.xlu0 %3795
    %v3799 = vsel %vm580, %v3743, 0
    %3801 = vmatprep.subr.bf16.mxu0 0
    %3802 = vmatpush1.bf16.msra.mxu0 0
    %3803 = vmatprep.subr.bf16.mxu0 0
    %3804 = vmatpush1.bf16.msra.mxu0 0
    %3805 = vmatprep.subr.bf16.mxu0 0
    %3806 = vmatpush1.bf16.msra.mxu0 0
    %3807 = vmatprep.subr.bf16.mxu0 0
    %3808 = vmatpush1.bf16.msra.mxu0 0
    %3809 = vmatprep.subr.bf16.mxu0 0
    %3810 = vmatpush1.bf16.msra.mxu0 0
    %3811 = vmatprep.subr.bf16.mxu0 0
    %3812 = vmatpush1.bf16.msra.mxu0 0
    %3813 = vmatprep.subr.bf16.mxu0 0
    %3814 = vmatpush1.bf16.msra.mxu0 0
    %3815 = vmatprep.subr.bf16.mxu0 0
    %3816 = vmatpush1.bf16.msra.mxu0 %v3796
    %3817 = vmatprep.subr.bf16.mxu0 0
    %3818 = vmatpush2.bf16.msra.mxu0 0
    %3819 = vmatprep.subr.bf16.mxu0 0
    %3820 = vmatpush2.bf16.msra.mxu0 0
    %3821 = vmatprep.subr.bf16.mxu0 0
    %3822 = vmatpush2.bf16.msra.mxu0 0
    %3823 = vmatprep.subr.bf16.mxu0 0
    %3824 = vmatpush2.bf16.msra.mxu0 0
    %3825 = vmatprep.subr.bf16.mxu0 0
    %3826 = vmatpush2.bf16.msra.mxu0 0
    %3827 = vmatprep.subr.bf16.mxu0 0
    %3828 = vmatpush2.bf16.msra.mxu0 0
    %3829 = vmatprep.subr.bf16.mxu0 0
    %3830 = vmatpush2.bf16.msra.mxu0 0
    %3831 = vmatprep.subr.bf16.mxu0 0
    %3832 = vmatpush2.bf16.msra.mxu0 0
    %3833 = vmatprep.mubr.bf16.mxu0 0
    %3834 = vmatmul.mubr.bf16.gmra.mxu0 %v3799
    %v3835 = vpop.f32.mrf.mxu0
    %v3836 = vadd.f32 0.0, %v3835
    %v3837 = vpop.f32.mrf.mxu0
    %v3838 = vpop.f32.mrf.mxu0
    %v3839 = vadd.f32 0.0, %v3838
    %v3840 = vpop.f32.mrf.mxu0
    %3841 = vdwg.mxu0
    %3843 = vrot.lane.b32.xlu0 %v2980, 96
    %v3844 = vpop.permute.xlu0 %3843
    %v3847 = vsel %vm580, %v3744, 0
    %3849 = vmatprep.subr.bf16.mxu0 0
    %3850 = vmatpush1.bf16.msra.mxu0 0
    %3851 = vmatprep.subr.bf16.mxu0 0
    %3852 = vmatpush1.bf16.msra.mxu0 0
    %3853 = vmatprep.subr.bf16.mxu0 0
    %3854 = vmatpush1.bf16.msra.mxu0 0
    %3855 = vmatprep.subr.bf16.mxu0 0
    %3856 = vmatpush1.bf16.msra.mxu0 0
    %3857 = vmatprep.subr.bf16.mxu0 0
    %3858 = vmatpush1.bf16.msra.mxu0 0
    %3859 = vmatprep.subr.bf16.mxu0 0
    %3860 = vmatpush1.bf16.msra.mxu0 0
    %3861 = vmatprep.subr.bf16.mxu0 0
    %3862 = vmatpush1.bf16.msra.mxu0 0
    %3863 = vmatprep.subr.bf16.mxu0 0
    %3864 = vmatpush1.bf16.msra.mxu0 %v3844
    %3865 = vmatprep.subr.bf16.mxu0 0
    %3866 = vmatpush2.bf16.msra.mxu0 0
    %3867 = vmatprep.subr.bf16.mxu0 0
    %3868 = vmatpush2.bf16.msra.mxu0 0
    %3869 = vmatprep.subr.bf16.mxu0 0
    %3870 = vmatpush2.bf16.msra.mxu0 0
    %3871 = vmatprep.subr.bf16.mxu0 0
    %3872 = vmatpush2.bf16.msra.mxu0 0
    %3873 = vmatprep.subr.bf16.mxu0 0
    %3874 = vmatpush2.bf16.msra.mxu0 0
    %3875 = vmatprep.subr.bf16.mxu0 0
    %3876 = vmatpush2.bf16.msra.mxu0 0
    %3877 = vmatprep.subr.bf16.mxu0 0
    %3878 = vmatpush2.bf16.msra.mxu0 0
    %3879 = vmatprep.subr.bf16.mxu0 0
    %3880 = vmatpush2.bf16.msra.mxu0 0
    %3881 = vmatprep.mubr.bf16.mxu0 0
    %3882 = vmatmul.mubr.bf16.gmra.mxu0 %v3847
    %v3883 = vpop.f32.mrf.mxu0
    %v3884 = vadd.f32 0.0, %v3883
    %v3885 = vpop.f32.mrf.mxu0
    %v3886 = vpop.f32.mrf.mxu0
    %v3887 = vadd.f32 0.0, %v3886
    %v3888 = vpop.f32.mrf.mxu0
    %3889 = vdwg.mxu0
    %3891 = vrot.lane.b32.xlu0 %v2981, 96
    %v3892 = vpop.permute.xlu0 %3891
    %v3895 = vsel %vm580, %v3745, 0
    %3897 = vmatprep.subr.bf16.mxu0 0
    %3898 = vmatpush1.bf16.msra.mxu0 0
    %3899 = vmatprep.subr.bf16.mxu0 0
    %3900 = vmatpush1.bf16.msra.mxu0 0
    %3901 = vmatprep.subr.bf16.mxu0 0
    %3902 = vmatpush1.bf16.msra.mxu0 0
    %3903 = vmatprep.subr.bf16.mxu0 0
    %3904 = vmatpush1.bf16.msra.mxu0 0
    %3905 = vmatprep.subr.bf16.mxu0 0
    %3906 = vmatpush1.bf16.msra.mxu0 0
    %3907 = vmatprep.subr.bf16.mxu0 0
    %3908 = vmatpush1.bf16.msra.mxu0 0
    %3909 = vmatprep.subr.bf16.mxu0 0
    %3910 = vmatpush1.bf16.msra.mxu0 0
    %3911 = vmatprep.subr.bf16.mxu0 0
    %3912 = vmatpush1.bf16.msra.mxu0 %v3892
    %3913 = vmatprep.subr.bf16.mxu0 0
    %3914 = vmatpush2.bf16.msra.mxu0 0
    %3915 = vmatprep.subr.bf16.mxu0 0
    %3916 = vmatpush2.bf16.msra.mxu0 0
    %3917 = vmatprep.subr.bf16.mxu0 0
    %3918 = vmatpush2.bf16.msra.mxu0 0
    %3919 = vmatprep.subr.bf16.mxu0 0
    %3920 = vmatpush2.bf16.msra.mxu0 0
    %3921 = vmatprep.subr.bf16.mxu0 0
    %3922 = vmatpush2.bf16.msra.mxu0 0
    %3923 = vmatprep.subr.bf16.mxu0 0
    %3924 = vmatpush2.bf16.msra.mxu0 0
    %3925 = vmatprep.subr.bf16.mxu0 0
    %3926 = vmatpush2.bf16.msra.mxu0 0
    %3927 = vmatprep.subr.bf16.mxu0 0
    %3928 = vmatpush2.bf16.msra.mxu0 0
    %3929 = vmatprep.mubr.bf16.mxu0 0
    %3930 = vmatmul.mubr.bf16.gmra.mxu0 %v3895
    %v3931 = vpop.f32.mrf.mxu0
    %v3932 = vadd.f32 0.0, %v3931
    %v3933 = vpop.f32.mrf.mxu0
    %v3934 = vpop.f32.mrf.mxu0
    %v3935 = vadd.f32 0.0, %v3934
    %v3936 = vpop.f32.mrf.mxu0
    %3937 = vdwg.mxu0
    %v3938 = vpack.c.bf16 %v3791, %v3788
    %v3939 = vpack.c.bf16 %v3839, %v3836
    %v3940 = vpack.c.bf16 %v3887, %v3884
    %v3941 = vpack.c.bf16 %v3935, %v3932
    %v3943 = vsel %vm391, %v3938, 0
    %v3946 = vsel %vm391, %v3939, 0
    %v3949 = vsel %vm391, %v3940, 0
    %v3952 = vsel %vm391, %v3941, 0
    %3954 = vmatprep.subr.bf16.mxu0 0
    %3955 = vmatpush1.bf16.msra.mxu0 0
    %3956 = vmatprep.subr.bf16.mxu0 0
    %3957 = vmatpush1.bf16.msra.mxu0 0
    %3958 = vmatprep.subr.bf16.mxu0 0
    %3959 = vmatpush1.bf16.msra.mxu0 0
    %3960 = vmatprep.subr.bf16.mxu0 0
    %3961 = vmatpush1.bf16.msra.mxu0 0
    %3962 = vmatprep.subr.bf16.mxu0 0
    %3963 = vmatpush1.bf16.msra.mxu0 0
    %3964 = vmatprep.subr.bf16.mxu0 0
    %3965 = vmatpush1.bf16.msra.mxu0 0
    %3966 = vmatprep.subr.bf16.mxu0 0
    %3967 = vmatpush1.bf16.msra.mxu0 %v1362
    %3968 = vmatprep.subr.bf16.mxu0 0
    %3969 = vmatpush1.bf16.msra.mxu0 %v1361
    %3970 = vmatprep.subr.bf16.mxu0 0
    %3971 = vmatpush2.bf16.msra.mxu0 0
    %3972 = vmatprep.subr.bf16.mxu0 0
    %3973 = vmatpush2.bf16.msra.mxu0 0
    %3974 = vmatprep.subr.bf16.mxu0 0
    %3975 = vmatpush2.bf16.msra.mxu0 0
    %3976 = vmatprep.subr.bf16.mxu0 0
    %3977 = vmatpush2.bf16.msra.mxu0 0
    %3978 = vmatprep.subr.bf16.mxu0 0
    %3979 = vmatpush2.bf16.msra.mxu0 0
    %3980 = vmatprep.subr.bf16.mxu0 0
    %3981 = vmatpush2.bf16.msra.mxu0 0
    %3982 = vmatprep.subr.bf16.mxu0 0
    %3983 = vmatpush2.bf16.msra.mxu0 0
    %3984 = vmatprep.subr.bf16.mxu0 0
    %3985 = vmatpush2.bf16.msra.mxu0 0
    %3986 = vmatprep.mubr.bf16.mxu0 0
    %3987 = vmatmul.mubr.bf16.gmra.mxu0 %v3943
    %v3988 = vpop.f32.mrf.mxu0
    %v3989 = vadd.f32 0.0, %v3988
    %v3990 = vpop.f32.mrf.mxu0
    %v3991 = vpop.f32.mrf.mxu0
    %v3992 = vadd.f32 0.0, %v3991
    %v3993 = vpop.f32.mrf.mxu0
    %3994 = vmatprep.mubr.bf16.mxu0 0
    %3995 = vmatmul.mubr.bf16.gmra.mxu0 %v3946
    %v3996 = vpop.f32.mrf.mxu0
    %v3997 = vadd.f32 0.0, %v3996
    %v3998 = vpop.f32.mrf.mxu0
    %v3999 = vpop.f32.mrf.mxu0
    %v4000 = vadd.f32 0.0, %v3999
    %v4001 = vpop.f32.mrf.mxu0
    %4002 = vmatprep.mubr.bf16.mxu0 0
    %4003 = vmatmul.mubr.bf16.gmra.mxu0 %v3949
    %v4004 = vpop.f32.mrf.mxu0
    %v4005 = vadd.f32 0.0, %v4004
    %v4006 = vpop.f32.mrf.mxu0
    %v4007 = vpop.f32.mrf.mxu0
    %v4008 = vadd.f32 0.0, %v4007
    %v4009 = vpop.f32.mrf.mxu0
    %4010 = vmatprep.mubr.bf16.mxu0 0
    %4011 = vmatmul.mubr.bf16.gmra.mxu0 %v3952
    %v4012 = vpop.f32.mrf.mxu0
    %v4013 = vadd.f32 0.0, %v4012
    %v4014 = vpop.f32.mrf.mxu0
    %v4015 = vpop.f32.mrf.mxu0
    %v4016 = vadd.f32 0.0, %v4015
    %v4017 = vpop.f32.mrf.mxu0
    %4018 = vdwg.mxu0
    %v4020 = vsel %vm391, %v3438, 0
    %v4023 = vsel %vm391, %v3439, 0
    %v4026 = vsel %vm391, %v3440, 0
    %v4029 = vsel %vm391, %v3441, 0
    %4031 = vmatprep.subr.bf16.mxu0 0
    %4032 = vmatpush1.bf16.msra.mxu0 0
    %4033 = vmatprep.subr.bf16.mxu0 0
    %4034 = vmatpush1.bf16.msra.mxu0 0
    %4035 = vmatprep.subr.bf16.mxu0 0
    %4036 = vmatpush1.bf16.msra.mxu0 0
    %4037 = vmatprep.subr.bf16.mxu0 0
    %4038 = vmatpush1.bf16.msra.mxu0 0
    %4039 = vmatprep.subr.bf16.mxu0 0
    %4040 = vmatpush1.bf16.msra.mxu0 0
    %4041 = vmatprep.subr.bf16.mxu0 0
    %4042 = vmatpush1.bf16.msra.mxu0 0
    %4043 = vmatprep.subr.bf16.mxu0 0
    %4044 = vmatpush1.bf16.msra.mxu0 %v1451
    %4045 = vmatprep.subr.bf16.mxu0 0
    %4046 = vmatpush1.bf16.msra.mxu0 %v1450
    %4047 = vmatprep.subr.bf16.mxu0 0
    %4048 = vmatpush2.bf16.msra.mxu0 0
    %4049 = vmatprep.subr.bf16.mxu0 0
    %4050 = vmatpush2.bf16.msra.mxu0 0
    %4051 = vmatprep.subr.bf16.mxu0 0
    %4052 = vmatpush2.bf16.msra.mxu0 0
    %4053 = vmatprep.subr.bf16.mxu0 0
    %4054 = vmatpush2.bf16.msra.mxu0 0
    %4055 = vmatprep.subr.bf16.mxu0 0
    %4056 = vmatpush2.bf16.msra.mxu0 0
    %4057 = vmatprep.subr.bf16.mxu0 0
    %4058 = vmatpush2.bf16.msra.mxu0 0
    %4059 = vmatprep.subr.bf16.mxu0 0
    %4060 = vmatpush2.bf16.msra.mxu0 0
    %4061 = vmatprep.subr.bf16.mxu0 0
    %4062 = vmatpush2.bf16.msra.mxu0 0
    %4063 = vmatprep.mubr.bf16.mxu0 0
    %4064 = vmatmul.mubr.bf16.gmra.mxu0 %v4020
    %v4065 = vpop.f32.mrf.mxu0
    %v4066 = vadd.f32 %v3989, %v4065
    %v4067 = vpop.f32.mrf.mxu0
    %v4068 = vpop.f32.mrf.mxu0
    %v4069 = vadd.f32 %v3992, %v4068
    %v4070 = vpop.f32.mrf.mxu0
    %4071 = vmatprep.mubr.bf16.mxu0 0
    %4072 = vmatmul.mubr.bf16.gmra.mxu0 %v4023
    %v4073 = vpop.f32.mrf.mxu0
    %v4074 = vadd.f32 %v3997, %v4073
    %v4075 = vpop.f32.mrf.mxu0
    %v4076 = vpop.f32.mrf.mxu0
    %v4077 = vadd.f32 %v4000, %v4076
    %v4078 = vpop.f32.mrf.mxu0
    %4079 = vmatprep.mubr.bf16.mxu0 0
    %4080 = vmatmul.mubr.bf16.gmra.mxu0 %v4026
    %v4081 = vpop.f32.mrf.mxu0
    %v4082 = vadd.f32 %v4005, %v4081
    %v4083 = vpop.f32.mrf.mxu0
    %v4084 = vpop.f32.mrf.mxu0
    %v4085 = vadd.f32 %v4008, %v4084
    %v4086 = vpop.f32.mrf.mxu0
    %4087 = vmatprep.mubr.bf16.mxu0 0
    %4088 = vmatmul.mubr.bf16.gmra.mxu0 %v4029
    %v4089 = vpop.f32.mrf.mxu0
    %v4090 = vadd.f32 %v4013, %v4089
    %v4091 = vpop.f32.mrf.mxu0
    %v4092 = vpop.f32.mrf.mxu0
    %v4093 = vadd.f32 %v4016, %v4092
    %v4094 = vpop.f32.mrf.mxu0
    %4095 = vdwg.mxu0
    %4096 = vrot.lane.b32.xlu0 %v2970, 64
    %v4097 = vpop.permute.xlu0 %4096
    %4098 = vrot.lane.b32.xlu0 %v2974, 64
    %v4099 = vpop.permute.xlu0 %4098
    %v4101 = vsel %vm391, %v4097, 0
    %v4104 = vsel %vm391, %v4099, 0
    %4106 = vmatprep.subr.bf16.mxu0 0
    %4107 = vmatpush1.bf16.xpose.msra.mxu0 0
    %4108 = vmatprep.subr.bf16.mxu0 0
    %4109 = vmatpush1.bf16.xpose.msra.mxu0 0
    %4110 = vmatprep.subr.bf16.mxu0 0
    %4111 = vmatpush1.bf16.xpose.msra.mxu0 0
    %4112 = vmatprep.subr.bf16.mxu0 0
    %4113 = vmatpush1.bf16.xpose.msra.mxu0 0
    %4114 = vmatprep.subr.bf16.mxu0 0
    %4115 = vmatpush1.bf16.xpose.msra.mxu0 0
    %4116 = vmatprep.subr.bf16.mxu0 0
    %4117 = vmatpush1.bf16.xpose.msra.mxu0 0
    %4118 = vmatprep.subr.bf16.mxu0 0
    %4119 = vmatpush1.bf16.xpose.msra.mxu0 0
    %4120 = vmatprep.subr.bf16.mxu0 0
    %4121 = vmatpush1.bf16.xpose.msra.mxu0 %v4104
    %4122 = vmatprep.subr.bf16.mxu0 0
    %4123 = vmatpush2.bf16.xpose.msra.mxu0 0
    %4124 = vmatprep.subr.bf16.mxu0 0
    %4125 = vmatpush2.bf16.xpose.msra.mxu0 0
    %4126 = vmatprep.subr.bf16.mxu0 0
    %4127 = vmatpush2.bf16.xpose.msra.mxu0 0
    %4128 = vmatprep.subr.bf16.mxu0 0
    %4129 = vmatpush2.bf16.xpose.msra.mxu0 0
    %4130 = vmatprep.subr.bf16.mxu0 0
    %4131 = vmatpush2.bf16.xpose.msra.mxu0 0
    %4132 = vmatprep.subr.bf16.mxu0 0
    %4133 = vmatpush2.bf16.xpose.msra.mxu0 0
    %4134 = vmatprep.subr.bf16.mxu0 0
    %4135 = vmatpush2.bf16.xpose.msra.mxu0 0
    %4136 = vmatprep.subr.bf16.mxu0 0
    %4137 = vmatpush2.bf16.xpose.msra.mxu0 0
    %4138 = vmatprep.mubr.bf16.mxu0 0
    %4139 = vmatmul.mubr.bf16.gmra.mxu0 %v4101
    %v4140 = vpop.f32.mrf.mxu0
    %v4141 = vadd.f32 0.0, %v4140
    %v4142 = vpop.f32.mrf.mxu0
    %v4143 = vpop.f32.mrf.mxu0
    %v4144 = vadd.f32 0.0, %v4143
    %v4145 = vpop.f32.mrf.mxu0
    %4146 = vdwg.mxu0
    %4147 = vrot.lane.b32.xlu0 %v2971, 64
    %v4148 = vpop.permute.xlu0 %4147
    %4149 = vrot.lane.b32.xlu0 %v2975, 64
    %v4150 = vpop.permute.xlu0 %4149
    %v4152 = vsel %vm391, %v4148, 0
    %v4155 = vsel %vm391, %v4150, 0
    %4157 = vmatprep.subr.bf16.mxu0 0
    %4158 = vmatpush1.bf16.xpose.msra.mxu0 0
    %4159 = vmatprep.subr.bf16.mxu0 0
    %4160 = vmatpush1.bf16.xpose.msra.mxu0 0
    %4161 = vmatprep.subr.bf16.mxu0 0
    %4162 = vmatpush1.bf16.xpose.msra.mxu0 0
    %4163 = vmatprep.subr.bf16.mxu0 0
    %4164 = vmatpush1.bf16.xpose.msra.mxu0 0
    %4165 = vmatprep.subr.bf16.mxu0 0
    %4166 = vmatpush1.bf16.xpose.msra.mxu0 0
    %4167 = vmatprep.subr.bf16.mxu0 0
    %4168 = vmatpush1.bf16.xpose.msra.mxu0 0
    %4169 = vmatprep.subr.bf16.mxu0 0
    %4170 = vmatpush1.bf16.xpose.msra.mxu0 0
    %4171 = vmatprep.subr.bf16.mxu0 0
    %4172 = vmatpush1.bf16.xpose.msra.mxu0 %v4155
    %4173 = vmatprep.subr.bf16.mxu0 0
    %4174 = vmatpush2.bf16.xpose.msra.mxu0 0
    %4175 = vmatprep.subr.bf16.mxu0 0
    %4176 = vmatpush2.bf16.xpose.msra.mxu0 0
    %4177 = vmatprep.subr.bf16.mxu0 0
    %4178 = vmatpush2.bf16.xpose.msra.mxu0 0
    %4179 = vmatprep.subr.bf16.mxu0 0
    %4180 = vmatpush2.bf16.xpose.msra.mxu0 0
    %4181 = vmatprep.subr.bf16.mxu0 0
    %4182 = vmatpush2.bf16.xpose.msra.mxu0 0
    %4183 = vmatprep.subr.bf16.mxu0 0
    %4184 = vmatpush2.bf16.xpose.msra.mxu0 0
    %4185 = vmatprep.subr.bf16.mxu0 0
    %4186 = vmatpush2.bf16.xpose.msra.mxu0 0
    %4187 = vmatprep.subr.bf16.mxu0 0
    %4188 = vmatpush2.bf16.xpose.msra.mxu0 0
    %4189 = vmatprep.mubr.bf16.mxu0 0
    %4190 = vmatmul.mubr.bf16.gmra.mxu0 %v4152
    %v4191 = vpop.f32.mrf.mxu0
    %v4192 = vadd.f32 0.0, %v4191
    %v4193 = vpop.f32.mrf.mxu0
    %v4194 = vpop.f32.mrf.mxu0
    %v4195 = vadd.f32 0.0, %v4194
    %v4196 = vpop.f32.mrf.mxu0
    %4197 = vdwg.mxu0
    %4198 = vrot.lane.b32.xlu0 %v2972, 64
    %v4199 = vpop.permute.xlu0 %4198
    %4200 = vrot.lane.b32.xlu0 %v2976, 64
    %v4201 = vpop.permute.xlu0 %4200
    %v4203 = vsel %vm391, %v4199, 0
    %v4206 = vsel %vm391, %v4201, 0
    %4208 = vmatprep.subr.bf16.mxu0 0
    %4209 = vmatpush1.bf16.xpose.msra.mxu0 0
    %4210 = vmatprep.subr.bf16.mxu0 0
    %4211 = vmatpush1.bf16.xpose.msra.mxu0 0
    %4212 = vmatprep.subr.bf16.mxu0 0
    %4213 = vmatpush1.bf16.xpose.msra.mxu0 0
    %4214 = vmatprep.subr.bf16.mxu0 0
    %4215 = vmatpush1.bf16.xpose.msra.mxu0 0
    %4216 = vmatprep.subr.bf16.mxu0 0
    %4217 = vmatpush1.bf16.xpose.msra.mxu0 0
    %4218 = vmatprep.subr.bf16.mxu0 0
    %4219 = vmatpush1.bf16.xpose.msra.mxu0 0
    %4220 = vmatprep.subr.bf16.mxu0 0
    %4221 = vmatpush1.bf16.xpose.msra.mxu0 0
    %4222 = vmatprep.subr.bf16.mxu0 0
    %4223 = vmatpush1.bf16.xpose.msra.mxu0 %v4206
    %4224 = vmatprep.subr.bf16.mxu0 0
    %4225 = vmatpush2.bf16.xpose.msra.mxu0 0
    %4226 = vmatprep.subr.bf16.mxu0 0
    %4227 = vmatpush2.bf16.xpose.msra.mxu0 0
    %4228 = vmatprep.subr.bf16.mxu0 0
    %4229 = vmatpush2.bf16.xpose.msra.mxu0 0
    %4230 = vmatprep.subr.bf16.mxu0 0
    %4231 = vmatpush2.bf16.xpose.msra.mxu0 0
    %4232 = vmatprep.subr.bf16.mxu0 0
    %4233 = vmatpush2.bf16.xpose.msra.mxu0 0
    %4234 = vmatprep.subr.bf16.mxu0 0
    %4235 = vmatpush2.bf16.xpose.msra.mxu0 0
    %4236 = vmatprep.subr.bf16.mxu0 0
    %4237 = vmatpush2.bf16.xpose.msra.mxu0 0
    %4238 = vmatprep.subr.bf16.mxu0 0
    %4239 = vmatpush2.bf16.xpose.msra.mxu0 0
    %4240 = vmatprep.mubr.bf16.mxu0 0
    %4241 = vmatmul.mubr.bf16.gmra.mxu0 %v4203
    %v4242 = vpop.f32.mrf.mxu0
    %v4243 = vadd.f32 0.0, %v4242
    %v4244 = vpop.f32.mrf.mxu0
    %v4245 = vpop.f32.mrf.mxu0
    %v4246 = vadd.f32 0.0, %v4245
    %v4247 = vpop.f32.mrf.mxu0
    %4248 = vdwg.mxu0
    %4249 = vrot.lane.b32.xlu0 %v2973, 64
    %v4250 = vpop.permute.xlu0 %4249
    %4251 = vrot.lane.b32.xlu0 %v2977, 64
    %v4252 = vpop.permute.xlu0 %4251
    %v4254 = vsel %vm391, %v4250, 0
    %v4257 = vsel %vm391, %v4252, 0
    %4259 = vmatprep.subr.bf16.mxu0 0
    %4260 = vmatpush1.bf16.xpose.msra.mxu0 0
    %4261 = vmatprep.subr.bf16.mxu0 0
    %4262 = vmatpush1.bf16.xpose.msra.mxu0 0
    %4263 = vmatprep.subr.bf16.mxu0 0
    %4264 = vmatpush1.bf16.xpose.msra.mxu0 0
    %4265 = vmatprep.subr.bf16.mxu0 0
    %4266 = vmatpush1.bf16.xpose.msra.mxu0 0
    %4267 = vmatprep.subr.bf16.mxu0 0
    %4268 = vmatpush1.bf16.xpose.msra.mxu0 0
    %4269 = vmatprep.subr.bf16.mxu0 0
    %4270 = vmatpush1.bf16.xpose.msra.mxu0 0
    %4271 = vmatprep.subr.bf16.mxu0 0
    %4272 = vmatpush1.bf16.xpose.msra.mxu0 0
    %4273 = vmatprep.subr.bf16.mxu0 0
    %4274 = vmatpush1.bf16.xpose.msra.mxu0 %v4257
    %4275 = vmatprep.subr.bf16.mxu0 0
    %4276 = vmatpush2.bf16.xpose.msra.mxu0 0
    %4277 = vmatprep.subr.bf16.mxu0 0
    %4278 = vmatpush2.bf16.xpose.msra.mxu0 0
    %4279 = vmatprep.subr.bf16.mxu0 0
    %4280 = vmatpush2.bf16.xpose.msra.mxu0 0
    %4281 = vmatprep.subr.bf16.mxu0 0
    %4282 = vmatpush2.bf16.xpose.msra.mxu0 0
    %4283 = vmatprep.subr.bf16.mxu0 0
    %4284 = vmatpush2.bf16.xpose.msra.mxu0 0
    %4285 = vmatprep.subr.bf16.mxu0 0
    %4286 = vmatpush2.bf16.xpose.msra.mxu0 0
    %4287 = vmatprep.subr.bf16.mxu0 0
    %4288 = vmatpush2.bf16.xpose.msra.mxu0 0
    %4289 = vmatprep.subr.bf16.mxu0 0
    %4290 = vmatpush2.bf16.xpose.msra.mxu0 0
    %4291 = vmatprep.mubr.bf16.mxu0 0
    %4292 = vmatmul.mubr.bf16.gmra.mxu0 %v4254
    %v4293 = vpop.f32.mrf.mxu0
    %v4294 = vadd.f32 0.0, %v4293
    %v4295 = vpop.f32.mrf.mxu0
    %v4296 = vpop.f32.mrf.mxu0
    %v4297 = vadd.f32 0.0, %v4296
    %v4298 = vpop.f32.mrf.mxu0
    %4299 = vdwg.mxu0
    %v4300 = vsel %vm580, %v4141, -inf
    %4301 = vmax.xlane.f32.xlu0 %v4300
    %v4302 = vpop.xlane.xlu0 %4301
    %v4303 = vsel %vm580, %v4144, -inf
    %4304 = vmax.xlane.f32.xlu0 %v4303
    %v4305 = vpop.xlane.xlu0 %4304
    %v4306 = vsel %vm580, %v4192, -inf
    %4307 = vmax.xlane.f32.xlu0 %v4306
    %v4308 = vpop.xlane.xlu0 %4307
    %v4309 = vsel %vm580, %v4195, -inf
    %4310 = vmax.xlane.f32.xlu0 %v4309
    %v4311 = vpop.xlane.xlu0 %4310
    %v4312 = vsel %vm580, %v4243, -inf
    %4313 = vmax.xlane.f32.xlu0 %v4312
    %v4314 = vpop.xlane.xlu0 %4313
    %v4315 = vsel %vm580, %v4246, -inf
    %4316 = vmax.xlane.f32.xlu0 %v4315
    %v4317 = vpop.xlane.xlu0 %4316
    %v4318 = vsel %vm580, %v4294, -inf
    %4319 = vmax.xlane.f32.xlu0 %v4318
    %v4320 = vpop.xlane.xlu0 %4319
    %v4321 = vsel %vm580, %v4297, -inf
    %4322 = vmax.xlane.f32.xlu0 %v4321
    %v4323 = vpop.xlane.xlu0 %4322
    %v4324 = vsub.f32 %v4141, %v4302
    %v4325 = vsub.f32 %v4144, %v4305
    %v4326 = vsub.f32 %v4192, %v4308
    %v4327 = vsub.f32 %v4195, %v4311
    %v4328 = vsub.f32 %v4243, %v4314
    %v4329 = vsub.f32 %v4246, %v4317
    %v4330 = vsub.f32 %v4294, %v4320
    %v4331 = vsub.f32 %v4297, %v4323
    %v4332 = vmul.f32 %v4324, 1.442695
    %v4333 = vpow.pop %v4332
    %v4334 = vmul.f32 %v4325, 1.442695
    %v4335 = vpow.pop %v4334
    %v4336 = vmul.f32 %v4326, 1.442695
    %v4337 = vpow.pop %v4336
    %v4338 = vmul.f32 %v4327, 1.442695
    %v4339 = vpow.pop %v4338
    %v4340 = vmul.f32 %v4328, 1.442695
    %v4341 = vpow.pop %v4340
    %v4342 = vmul.f32 %v4329, 1.442695
    %v4343 = vpow.pop %v4342
    %v4344 = vmul.f32 %v4330, 1.442695
    %v4345 = vpow.pop %v4344
    %v4346 = vmul.f32 %v4331, 1.442695
    %v4347 = vpow.pop %v4346
    %v4348 = vsel %vm580, %v4333, 0.0
    %4349 = vadd.xlane.f32.xlu0 %v4348
    %v4350 = vpop.xlane.xlu0 %4349
    %v4351 = vsel %vm580, %v4335, 0.0
    %4352 = vadd.xlane.f32.xlu0 %v4351
    %v4353 = vpop.xlane.xlu0 %4352
    %v4354 = vsel %vm580, %v4337, 0.0
    %4355 = vadd.xlane.f32.xlu0 %v4354
    %v4356 = vpop.xlane.xlu0 %4355
    %v4357 = vsel %vm580, %v4339, 0.0
    %4358 = vadd.xlane.f32.xlu0 %v4357
    %v4359 = vpop.xlane.xlu0 %4358
    %v4360 = vsel %vm580, %v4341, 0.0
    %4361 = vadd.xlane.f32.xlu0 %v4360
    %v4362 = vpop.xlane.xlu0 %4361
    %v4363 = vsel %vm580, %v4343, 0.0
    %4364 = vadd.xlane.f32.xlu0 %v4363
    %v4365 = vpop.xlane.xlu0 %4364
    %v4366 = vsel %vm580, %v4345, 0.0
    %4367 = vadd.xlane.f32.xlu0 %v4366
    %v4368 = vpop.xlane.xlu0 %4367
    %v4369 = vsel %vm580, %v4347, 0.0
    %4370 = vadd.xlane.f32.xlu0 %v4369
    %v4371 = vpop.xlane.xlu0 %4370
    %v4372 = vrcp.pop %v4350
    %v4373 = vrcp.pop %v4353
    %v4374 = vrcp.pop %v4356
    %v4375 = vrcp.pop %v4359
    %v4376 = vrcp.pop %v4362
    %v4377 = vrcp.pop %v4365
    %v4378 = vrcp.pop %v4368
    %v4379 = vrcp.pop %v4371
    %v4380 = vmul.f32 %v4333, %v4372
    %v4381 = vmul.f32 %v4335, %v4373
    %v4382 = vmul.f32 %v4337, %v4374
    %v4383 = vmul.f32 %v4339, %v4375
    %v4384 = vmul.f32 %v4341, %v4376
    %v4385 = vmul.f32 %v4343, %v4377
    %v4386 = vmul.f32 %v4345, %v4378
    %v4387 = vmul.f32 %v4347, %v4379
    %v4388 = vpack.c.bf16 %v4381, %v4380
    %v4389 = vpack.c.bf16 %v4383, %v4382
    %v4390 = vpack.c.bf16 %v4385, %v4384
    %v4391 = vpack.c.bf16 %v4387, %v4386
    %4392 = vrot.lane.b32.xlu0 %v2978, 64
    %v4393 = vpop.permute.xlu0 %4392
    %v4396 = vsel %vm580, %v4388, 0
    %4398 = vmatprep.subr.bf16.mxu0 0
    %4399 = vmatpush1.bf16.msra.mxu0 0
    %4400 = vmatprep.subr.bf16.mxu0 0
    %4401 = vmatpush1.bf16.msra.mxu0 0
    %4402 = vmatprep.subr.bf16.mxu0 0
    %4403 = vmatpush1.bf16.msra.mxu0 0
    %4404 = vmatprep.subr.bf16.mxu0 0
    %4405 = vmatpush1.bf16.msra.mxu0 0
    %4406 = vmatprep.subr.bf16.mxu0 0
    %4407 = vmatpush1.bf16.msra.mxu0 0
    %4408 = vmatprep.subr.bf16.mxu0 0
    %4409 = vmatpush1.bf16.msra.mxu0 0
    %4410 = vmatprep.subr.bf16.mxu0 0
    %4411 = vmatpush1.bf16.msra.mxu0 0
    %4412 = vmatprep.subr.bf16.mxu0 0
    %4413 = vmatpush1.bf16.msra.mxu0 %v4393
    %4414 = vmatprep.subr.bf16.mxu0 0
    %4415 = vmatpush2.bf16.msra.mxu0 0
    %4416 = vmatprep.subr.bf16.mxu0 0
    %4417 = vmatpush2.bf16.msra.mxu0 0
    %4418 = vmatprep.subr.bf16.mxu0 0
    %4419 = vmatpush2.bf16.msra.mxu0 0
    %4420 = vmatprep.subr.bf16.mxu0 0
    %4421 = vmatpush2.bf16.msra.mxu0 0
    %4422 = vmatprep.subr.bf16.mxu0 0
    %4423 = vmatpush2.bf16.msra.mxu0 0
    %4424 = vmatprep.subr.bf16.mxu0 0
    %4425 = vmatpush2.bf16.msra.mxu0 0
    %4426 = vmatprep.subr.bf16.mxu0 0
    %4427 = vmatpush2.bf16.msra.mxu0 0
    %4428 = vmatprep.subr.bf16.mxu0 0
    %4429 = vmatpush2.bf16.msra.mxu0 0
    %4430 = vmatprep.mubr.bf16.mxu0 0
    %4431 = vmatmul.mubr.bf16.gmra.mxu0 %v4396
    %v4432 = vpop.f32.mrf.mxu0
    %v4433 = vadd.f32 0.0, %v4432
    %v4434 = vpop.f32.mrf.mxu0
    %v4435 = vpop.f32.mrf.mxu0
    %v4436 = vadd.f32 0.0, %v4435
    %v4437 = vpop.f32.mrf.mxu0
    %4438 = vdwg.mxu0
    %4439 = vrot.lane.b32.xlu0 %v2979, 64
    %v4440 = vpop.permute.xlu0 %4439
    %v4443 = vsel %vm580, %v4389, 0
    %4445 = vmatprep.subr.bf16.mxu0 0
    %4446 = vmatpush1.bf16.msra.mxu0 0
    %4447 = vmatprep.subr.bf16.mxu0 0
    %4448 = vmatpush1.bf16.msra.mxu0 0
    %4449 = vmatprep.subr.bf16.mxu0 0
    %4450 = vmatpush1.bf16.msra.mxu0 0
    %4451 = vmatprep.subr.bf16.mxu0 0
    %4452 = vmatpush1.bf16.msra.mxu0 0
    %4453 = vmatprep.subr.bf16.mxu0 0
    %4454 = vmatpush1.bf16.msra.mxu0 0
    %4455 = vmatprep.subr.bf16.mxu0 0
    %4456 = vmatpush1.bf16.msra.mxu0 0
    %4457 = vmatprep.subr.bf16.mxu0 0
    %4458 = vmatpush1.bf16.msra.mxu0 0
    %4459 = vmatprep.subr.bf16.mxu0 0
    %4460 = vmatpush1.bf16.msra.mxu0 %v4440
    %4461 = vmatprep.subr.bf16.mxu0 0
    %4462 = vmatpush2.bf16.msra.mxu0 0
    %4463 = vmatprep.subr.bf16.mxu0 0
    %4464 = vmatpush2.bf16.msra.mxu0 0
    %4465 = vmatprep.subr.bf16.mxu0 0
    %4466 = vmatpush2.bf16.msra.mxu0 0
    %4467 = vmatprep.subr.bf16.mxu0 0
    %4468 = vmatpush2.bf16.msra.mxu0 0
    %4469 = vmatprep.subr.bf16.mxu0 0
    %4470 = vmatpush2.bf16.msra.mxu0 0
    %4471 = vmatprep.subr.bf16.mxu0 0
    %4472 = vmatpush2.bf16.msra.mxu0 0
    %4473 = vmatprep.subr.bf16.mxu0 0
    %4474 = vmatpush2.bf16.msra.mxu0 0
    %4475 = vmatprep.subr.bf16.mxu0 0
    %4476 = vmatpush2.bf16.msra.mxu0 0
    %4477 = vmatprep.mubr.bf16.mxu0 0
    %4478 = vmatmul.mubr.bf16.gmra.mxu0 %v4443
    %v4479 = vpop.f32.mrf.mxu0
    %v4480 = vadd.f32 0.0, %v4479
    %v4481 = vpop.f32.mrf.mxu0
    %v4482 = vpop.f32.mrf.mxu0
    %v4483 = vadd.f32 0.0, %v4482
    %v4484 = vpop.f32.mrf.mxu0
    %4485 = vdwg.mxu0
    %4486 = vrot.lane.b32.xlu0 %v2980, 64
    %v4487 = vpop.permute.xlu0 %4486
    %v4490 = vsel %vm580, %v4390, 0
    %4492 = vmatprep.subr.bf16.mxu0 0
    %4493 = vmatpush1.bf16.msra.mxu0 0
    %4494 = vmatprep.subr.bf16.mxu0 0
    %4495 = vmatpush1.bf16.msra.mxu0 0
    %4496 = vmatprep.subr.bf16.mxu0 0
    %4497 = vmatpush1.bf16.msra.mxu0 0
    %4498 = vmatprep.subr.bf16.mxu0 0
    %4499 = vmatpush1.bf16.msra.mxu0 0
    %4500 = vmatprep.subr.bf16.mxu0 0
    %4501 = vmatpush1.bf16.msra.mxu0 0
    %4502 = vmatprep.subr.bf16.mxu0 0
    %4503 = vmatpush1.bf16.msra.mxu0 0
    %4504 = vmatprep.subr.bf16.mxu0 0
    %4505 = vmatpush1.bf16.msra.mxu0 0
    %4506 = vmatprep.subr.bf16.mxu0 0
    %4507 = vmatpush1.bf16.msra.mxu0 %v4487
    %4508 = vmatprep.subr.bf16.mxu0 0
    %4509 = vmatpush2.bf16.msra.mxu0 0
    %4510 = vmatprep.subr.bf16.mxu0 0
    %4511 = vmatpush2.bf16.msra.mxu0 0
    %4512 = vmatprep.subr.bf16.mxu0 0
    %4513 = vmatpush2.bf16.msra.mxu0 0
    %4514 = vmatprep.subr.bf16.mxu0 0
    %4515 = vmatpush2.bf16.msra.mxu0 0
    %4516 = vmatprep.subr.bf16.mxu0 0
    %4517 = vmatpush2.bf16.msra.mxu0 0
    %4518 = vmatprep.subr.bf16.mxu0 0
    %4519 = vmatpush2.bf16.msra.mxu0 0
    %4520 = vmatprep.subr.bf16.mxu0 0
    %4521 = vmatpush2.bf16.msra.mxu0 0
    %4522 = vmatprep.subr.bf16.mxu0 0
    %4523 = vmatpush2.bf16.msra.mxu0 0
    %4524 = vmatprep.mubr.bf16.mxu0 0
    %4525 = vmatmul.mubr.bf16.gmra.mxu0 %v4490
    %v4526 = vpop.f32.mrf.mxu0
    %v4527 = vadd.f32 0.0, %v4526
    %v4528 = vpop.f32.mrf.mxu0
    %v4529 = vpop.f32.mrf.mxu0
    %v4530 = vadd.f32 0.0, %v4529
    %v4531 = vpop.f32.mrf.mxu0
    %4532 = vdwg.mxu0
    %4533 = vrot.lane.b32.xlu0 %v2981, 64
    %v4534 = vpop.permute.xlu0 %4533
    %v4537 = vsel %vm580, %v4391, 0
    %4539 = vmatprep.subr.bf16.mxu0 0
    %4540 = vmatpush1.bf16.msra.mxu0 0
    %4541 = vmatprep.subr.bf16.mxu0 0
    %4542 = vmatpush1.bf16.msra.mxu0 0
    %4543 = vmatprep.subr.bf16.mxu0 0
    %4544 = vmatpush1.bf16.msra.mxu0 0
    %4545 = vmatprep.subr.bf16.mxu0 0
    %4546 = vmatpush1.bf16.msra.mxu0 0
    %4547 = vmatprep.subr.bf16.mxu0 0
    %4548 = vmatpush1.bf16.msra.mxu0 0
    %4549 = vmatprep.subr.bf16.mxu0 0
    %4550 = vmatpush1.bf16.msra.mxu0 0
    %4551 = vmatprep.subr.bf16.mxu0 0
    %4552 = vmatpush1.bf16.msra.mxu0 0
    %4553 = vmatprep.subr.bf16.mxu0 0
    %4554 = vmatpush1.bf16.msra.mxu0 %v4534
    %4555 = vmatprep.subr.bf16.mxu0 0
    %4556 = vmatpush2.bf16.msra.mxu0 0
    %4557 = vmatprep.subr.bf16.mxu0 0
    %4558 = vmatpush2.bf16.msra.mxu0 0
    %4559 = vmatprep.subr.bf16.mxu0 0
    %4560 = vmatpush2.bf16.msra.mxu0 0
    %4561 = vmatprep.subr.bf16.mxu0 0
    %4562 = vmatpush2.bf16.msra.mxu0 0
    %4563 = vmatprep.subr.bf16.mxu0 0
    %4564 = vmatpush2.bf16.msra.mxu0 0
    %4565 = vmatprep.subr.bf16.mxu0 0
    %4566 = vmatpush2.bf16.msra.mxu0 0
    %4567 = vmatprep.subr.bf16.mxu0 0
    %4568 = vmatpush2.bf16.msra.mxu0 0
    %4569 = vmatprep.subr.bf16.mxu0 0
    %4570 = vmatpush2.bf16.msra.mxu0 0
    %4571 = vmatprep.mubr.bf16.mxu0 0
    %4572 = vmatmul.mubr.bf16.gmra.mxu0 %v4537
    %v4573 = vpop.f32.mrf.mxu0
    %v4574 = vadd.f32 0.0, %v4573
    %v4575 = vpop.f32.mrf.mxu0
    %v4576 = vpop.f32.mrf.mxu0
    %v4577 = vadd.f32 0.0, %v4576
    %v4578 = vpop.f32.mrf.mxu0
    %4579 = vdwg.mxu0
    %v4580 = vpack.c.bf16 %v4436, %v4433
    %v4581 = vpack.c.bf16 %v4483, %v4480
    %v4582 = vpack.c.bf16 %v4530, %v4527
    %v4583 = vpack.c.bf16 %v4577, %v4574
    %v4585 = vsel %vm391, %v4580, 0
    %v4588 = vsel %vm391, %v4581, 0
    %v4591 = vsel %vm391, %v4582, 0
    %v4594 = vsel %vm391, %v4583, 0
    %4596 = vmatprep.subr.bf16.mxu0 0
    %4597 = vmatpush1.bf16.msra.mxu0 0
    %4598 = vmatprep.subr.bf16.mxu0 0
    %4599 = vmatpush1.bf16.msra.mxu0 0
    %4600 = vmatprep.subr.bf16.mxu0 0
    %4601 = vmatpush1.bf16.msra.mxu0 0
    %4602 = vmatprep.subr.bf16.mxu0 0
    %4603 = vmatpush1.bf16.msra.mxu0 0
    %4604 = vmatprep.subr.bf16.mxu0 0
    %4605 = vmatpush1.bf16.msra.mxu0 0
    %4606 = vmatprep.subr.bf16.mxu0 0
    %4607 = vmatpush1.bf16.msra.mxu0 0
    %4608 = vmatprep.subr.bf16.mxu0 0
    %4609 = vmatpush1.bf16.msra.mxu0 %v2028
    %4610 = vmatprep.subr.bf16.mxu0 0
    %4611 = vmatpush1.bf16.msra.mxu0 %v2027
    %4612 = vmatprep.subr.bf16.mxu0 0
    %4613 = vmatpush2.bf16.msra.mxu0 0
    %4614 = vmatprep.subr.bf16.mxu0 0
    %4615 = vmatpush2.bf16.msra.mxu0 0
    %4616 = vmatprep.subr.bf16.mxu0 0
    %4617 = vmatpush2.bf16.msra.mxu0 0
    %4618 = vmatprep.subr.bf16.mxu0 0
    %4619 = vmatpush2.bf16.msra.mxu0 0
    %4620 = vmatprep.subr.bf16.mxu0 0
    %4621 = vmatpush2.bf16.msra.mxu0 0
    %4622 = vmatprep.subr.bf16.mxu0 0
    %4623 = vmatpush2.bf16.msra.mxu0 0
    %4624 = vmatprep.subr.bf16.mxu0 0
    %4625 = vmatpush2.bf16.msra.mxu0 0
    %4626 = vmatprep.subr.bf16.mxu0 0
    %4627 = vmatpush2.bf16.msra.mxu0 0
    %4628 = vmatprep.mubr.bf16.mxu0 0
    %4629 = vmatmul.mubr.bf16.gmra.mxu0 %v4585
    %v4630 = vpop.f32.mrf.mxu0
    %v4631 = vadd.f32 0.0, %v4630
    %v4632 = vpop.f32.mrf.mxu0
    %v4633 = vpop.f32.mrf.mxu0
    %v4634 = vadd.f32 0.0, %v4633
    %v4635 = vpop.f32.mrf.mxu0
    %4636 = vmatprep.mubr.bf16.mxu0 0
    %4637 = vmatmul.mubr.bf16.gmra.mxu0 %v4588
    %v4638 = vpop.f32.mrf.mxu0
    %v4639 = vadd.f32 0.0, %v4638
    %v4640 = vpop.f32.mrf.mxu0
    %v4641 = vpop.f32.mrf.mxu0
    %v4642 = vadd.f32 0.0, %v4641
    %v4643 = vpop.f32.mrf.mxu0
    %4644 = vmatprep.mubr.bf16.mxu0 0
    %4645 = vmatmul.mubr.bf16.gmra.mxu0 %v4591
    %v4646 = vpop.f32.mrf.mxu0
    %v4647 = vadd.f32 0.0, %v4646
    %v4648 = vpop.f32.mrf.mxu0
    %v4649 = vpop.f32.mrf.mxu0
    %v4650 = vadd.f32 0.0, %v4649
    %v4651 = vpop.f32.mrf.mxu0
    %4652 = vmatprep.mubr.bf16.mxu0 0
    %4653 = vmatmul.mubr.bf16.gmra.mxu0 %v4594
    %v4654 = vpop.f32.mrf.mxu0
    %v4655 = vadd.f32 0.0, %v4654
    %v4656 = vpop.f32.mrf.mxu0
    %v4657 = vpop.f32.mrf.mxu0
    %v4658 = vadd.f32 0.0, %v4657
    %v4659 = vpop.f32.mrf.mxu0
    %4660 = vdwg.mxu0
    %v4661 = vadd.f32 %v4066, %v4631
    %v4662 = vadd.f32 %v4069, %v4634
    %v4663 = vadd.f32 %v4074, %v4639
    %v4664 = vadd.f32 %v4077, %v4642
    %v4665 = vadd.f32 %v4082, %v4647
    %v4666 = vadd.f32 %v4085, %v4650
    %v4667 = vadd.f32 %v4090, %v4655
    %v4668 = vadd.f32 %v4093, %v4658
    %4669 = vrot.lane.b32.xlu0 %v2970, 32
    %v4670 = vpop.permute.xlu0 %4669
    %4671 = vrot.lane.b32.xlu0 %v2974, 32
    %v4672 = vpop.permute.xlu0 %4671
    %v4674 = vsel %vm391, %v4670, 0
    %v4677 = vsel %vm391, %v4672, 0
    %4679 = vmatprep.subr.bf16.mxu0 0
    %4680 = vmatpush1.bf16.xpose.msra.mxu0 0
    %4681 = vmatprep.subr.bf16.mxu0 0
    %4682 = vmatpush1.bf16.xpose.msra.mxu0 0
    %4683 = vmatprep.subr.bf16.mxu0 0
    %4684 = vmatpush1.bf16.xpose.msra.mxu0 0
    %4685 = vmatprep.subr.bf16.mxu0 0
    %4686 = vmatpush1.bf16.xpose.msra.mxu0 0
    %4687 = vmatprep.subr.bf16.mxu0 0
    %4688 = vmatpush1.bf16.xpose.msra.mxu0 0
    %4689 = vmatprep.subr.bf16.mxu0 0
    %4690 = vmatpush1.bf16.xpose.msra.mxu0 0
    %4691 = vmatprep.subr.bf16.mxu0 0
    %4692 = vmatpush1.bf16.xpose.msra.mxu0 0
    %4693 = vmatprep.subr.bf16.mxu0 0
    %4694 = vmatpush1.bf16.xpose.msra.mxu0 %v4677
    %4695 = vmatprep.subr.bf16.mxu0 0
    %4696 = vmatpush2.bf16.xpose.msra.mxu0 0
    %4697 = vmatprep.subr.bf16.mxu0 0
    %4698 = vmatpush2.bf16.xpose.msra.mxu0 0
    %4699 = vmatprep.subr.bf16.mxu0 0
    %4700 = vmatpush2.bf16.xpose.msra.mxu0 0
    %4701 = vmatprep.subr.bf16.mxu0 0
    %4702 = vmatpush2.bf16.xpose.msra.mxu0 0
    %4703 = vmatprep.subr.bf16.mxu0 0
    %4704 = vmatpush2.bf16.xpose.msra.mxu0 0
    %4705 = vmatprep.subr.bf16.mxu0 0
    %4706 = vmatpush2.bf16.xpose.msra.mxu0 0
    %4707 = vmatprep.subr.bf16.mxu0 0
    %4708 = vmatpush2.bf16.xpose.msra.mxu0 0
    %4709 = vmatprep.subr.bf16.mxu0 0
    %4710 = vmatpush2.bf16.xpose.msra.mxu0 0
    %4711 = vmatprep.mubr.bf16.mxu0 0
    %4712 = vmatmul.mubr.bf16.gmra.mxu0 %v4674
    %v4713 = vpop.f32.mrf.mxu0
    %v4714 = vadd.f32 0.0, %v4713
    %v4715 = vpop.f32.mrf.mxu0
    %v4716 = vpop.f32.mrf.mxu0
    %v4717 = vadd.f32 0.0, %v4716
    %v4718 = vpop.f32.mrf.mxu0
    %4719 = vdwg.mxu0
    %4720 = vrot.lane.b32.xlu0 %v2971, 32
    %v4721 = vpop.permute.xlu0 %4720
    %4722 = vrot.lane.b32.xlu0 %v2975, 32
    %v4723 = vpop.permute.xlu0 %4722
    %v4725 = vsel %vm391, %v4721, 0
    %v4728 = vsel %vm391, %v4723, 0
    %4730 = vmatprep.subr.bf16.mxu0 0
    %4731 = vmatpush1.bf16.xpose.msra.mxu0 0
    %4732 = vmatprep.subr.bf16.mxu0 0
    %4733 = vmatpush1.bf16.xpose.msra.mxu0 0
    %4734 = vmatprep.subr.bf16.mxu0 0
    %4735 = vmatpush1.bf16.xpose.msra.mxu0 0
    %4736 = vmatprep.subr.bf16.mxu0 0
    %4737 = vmatpush1.bf16.xpose.msra.mxu0 0
    %4738 = vmatprep.subr.bf16.mxu0 0
    %4739 = vmatpush1.bf16.xpose.msra.mxu0 0
    %4740 = vmatprep.subr.bf16.mxu0 0
    %4741 = vmatpush1.bf16.xpose.msra.mxu0 0
    %4742 = vmatprep.subr.bf16.mxu0 0
    %4743 = vmatpush1.bf16.xpose.msra.mxu0 0
    %4744 = vmatprep.subr.bf16.mxu0 0
    %4745 = vmatpush1.bf16.xpose.msra.mxu0 %v4728
    %4746 = vmatprep.subr.bf16.mxu0 0
    %4747 = vmatpush2.bf16.xpose.msra.mxu0 0
    %4748 = vmatprep.subr.bf16.mxu0 0
    %4749 = vmatpush2.bf16.xpose.msra.mxu0 0
    %4750 = vmatprep.subr.bf16.mxu0 0
    %4751 = vmatpush2.bf16.xpose.msra.mxu0 0
    %4752 = vmatprep.subr.bf16.mxu0 0
    %4753 = vmatpush2.bf16.xpose.msra.mxu0 0
    %4754 = vmatprep.subr.bf16.mxu0 0
    %4755 = vmatpush2.bf16.xpose.msra.mxu0 0
    %4756 = vmatprep.subr.bf16.mxu0 0
    %4757 = vmatpush2.bf16.xpose.msra.mxu0 0
    %4758 = vmatprep.subr.bf16.mxu0 0
    %4759 = vmatpush2.bf16.xpose.msra.mxu0 0
    %4760 = vmatprep.subr.bf16.mxu0 0
    %4761 = vmatpush2.bf16.xpose.msra.mxu0 0
    %4762 = vmatprep.mubr.bf16.mxu0 0
    %4763 = vmatmul.mubr.bf16.gmra.mxu0 %v4725
    %v4764 = vpop.f32.mrf.mxu0
    %v4765 = vadd.f32 0.0, %v4764
    %v4766 = vpop.f32.mrf.mxu0
    %v4767 = vpop.f32.mrf.mxu0
    %v4768 = vadd.f32 0.0, %v4767
    %v4769 = vpop.f32.mrf.mxu0
    %4770 = vdwg.mxu0
    %4771 = vrot.lane.b32.xlu0 %v2972, 32
    %v4772 = vpop.permute.xlu0 %4771
    %4773 = vrot.lane.b32.xlu0 %v2976, 32
    %v4774 = vpop.permute.xlu0 %4773
    %v4776 = vsel %vm391, %v4772, 0
    %v4779 = vsel %vm391, %v4774, 0
    %4781 = vmatprep.subr.bf16.mxu0 0
    %4782 = vmatpush1.bf16.xpose.msra.mxu0 0
    %4783 = vmatprep.subr.bf16.mxu0 0
    %4784 = vmatpush1.bf16.xpose.msra.mxu0 0
    %4785 = vmatprep.subr.bf16.mxu0 0
    %4786 = vmatpush1.bf16.xpose.msra.mxu0 0
    %4787 = vmatprep.subr.bf16.mxu0 0
    %4788 = vmatpush1.bf16.xpose.msra.mxu0 0
    %4789 = vmatprep.subr.bf16.mxu0 0
    %4790 = vmatpush1.bf16.xpose.msra.mxu0 0
    %4791 = vmatprep.subr.bf16.mxu0 0
    %4792 = vmatpush1.bf16.xpose.msra.mxu0 0
    %4793 = vmatprep.subr.bf16.mxu0 0
    %4794 = vmatpush1.bf16.xpose.msra.mxu0 0
    %4795 = vmatprep.subr.bf16.mxu0 0
    %4796 = vmatpush1.bf16.xpose.msra.mxu0 %v4779
    %4797 = vmatprep.subr.bf16.mxu0 0
    %4798 = vmatpush2.bf16.xpose.msra.mxu0 0
    %4799 = vmatprep.subr.bf16.mxu0 0
    %4800 = vmatpush2.bf16.xpose.msra.mxu0 0
    %4801 = vmatprep.subr.bf16.mxu0 0
    %4802 = vmatpush2.bf16.xpose.msra.mxu0 0
    %4803 = vmatprep.subr.bf16.mxu0 0
    %4804 = vmatpush2.bf16.xpose.msra.mxu0 0
    %4805 = vmatprep.subr.bf16.mxu0 0
    %4806 = vmatpush2.bf16.xpose.msra.mxu0 0
    %4807 = vmatprep.subr.bf16.mxu0 0
    %4808 = vmatpush2.bf16.xpose.msra.mxu0 0
    %4809 = vmatprep.subr.bf16.mxu0 0
    %4810 = vmatpush2.bf16.xpose.msra.mxu0 0
    %4811 = vmatprep.subr.bf16.mxu0 0
    %4812 = vmatpush2.bf16.xpose.msra.mxu0 0
    %4813 = vmatprep.mubr.bf16.mxu0 0
    %4814 = vmatmul.mubr.bf16.gmra.mxu0 %v4776
    %v4815 = vpop.f32.mrf.mxu0
    %v4816 = vadd.f32 0.0, %v4815
    %v4817 = vpop.f32.mrf.mxu0
    %v4818 = vpop.f32.mrf.mxu0
    %v4819 = vadd.f32 0.0, %v4818
    %v4820 = vpop.f32.mrf.mxu0
    %4821 = vdwg.mxu0
    %4822 = vrot.lane.b32.xlu0 %v2973, 32
    %v4823 = vpop.permute.xlu0 %4822
    %4824 = vrot.lane.b32.xlu0 %v2977, 32
    %v4825 = vpop.permute.xlu0 %4824
    %v4827 = vsel %vm391, %v4823, 0
    %v4830 = vsel %vm391, %v4825, 0
    %4832 = vmatprep.subr.bf16.mxu0 0
    %4833 = vmatpush1.bf16.xpose.msra.mxu0 0
    %4834 = vmatprep.subr.bf16.mxu0 0
    %4835 = vmatpush1.bf16.xpose.msra.mxu0 0
    %4836 = vmatprep.subr.bf16.mxu0 0
    %4837 = vmatpush1.bf16.xpose.msra.mxu0 0
    %4838 = vmatprep.subr.bf16.mxu0 0
    %4839 = vmatpush1.bf16.xpose.msra.mxu0 0
    %4840 = vmatprep.subr.bf16.mxu0 0
    %4841 = vmatpush1.bf16.xpose.msra.mxu0 0
    %4842 = vmatprep.subr.bf16.mxu0 0
    %4843 = vmatpush1.bf16.xpose.msra.mxu0 0
    %4844 = vmatprep.subr.bf16.mxu0 0
    %4845 = vmatpush1.bf16.xpose.msra.mxu0 0
    %4846 = vmatprep.subr.bf16.mxu0 0
    %4847 = vmatpush1.bf16.xpose.msra.mxu0 %v4830
    %4848 = vmatprep.subr.bf16.mxu0 0
    %4849 = vmatpush2.bf16.xpose.msra.mxu0 0
    %4850 = vmatprep.subr.bf16.mxu0 0
    %4851 = vmatpush2.bf16.xpose.msra.mxu0 0
    %4852 = vmatprep.subr.bf16.mxu0 0
    %4853 = vmatpush2.bf16.xpose.msra.mxu0 0
    %4854 = vmatprep.subr.bf16.mxu0 0
    %4855 = vmatpush2.bf16.xpose.msra.mxu0 0
    %4856 = vmatprep.subr.bf16.mxu0 0
    %4857 = vmatpush2.bf16.xpose.msra.mxu0 0
    %4858 = vmatprep.subr.bf16.mxu0 0
    %4859 = vmatpush2.bf16.xpose.msra.mxu0 0
    %4860 = vmatprep.subr.bf16.mxu0 0
    %4861 = vmatpush2.bf16.xpose.msra.mxu0 0
    %4862 = vmatprep.subr.bf16.mxu0 0
    %4863 = vmatpush2.bf16.xpose.msra.mxu0 0
    %4864 = vmatprep.mubr.bf16.mxu0 0
    %4865 = vmatmul.mubr.bf16.gmra.mxu0 %v4827
    %v4866 = vpop.f32.mrf.mxu0
    %v4867 = vadd.f32 0.0, %v4866
    %v4868 = vpop.f32.mrf.mxu0
    %v4869 = vpop.f32.mrf.mxu0
    %v4870 = vadd.f32 0.0, %v4869
    %v4871 = vpop.f32.mrf.mxu0
    %4872 = vdwg.mxu0
    %v4873 = vsel %vm580, %v4714, -inf
    %4874 = vmax.xlane.f32.xlu0 %v4873
    %v4875 = vpop.xlane.xlu0 %4874
    %v4876 = vsel %vm580, %v4717, -inf
    %4877 = vmax.xlane.f32.xlu0 %v4876
    %v4878 = vpop.xlane.xlu0 %4877
    %v4879 = vsel %vm580, %v4765, -inf
    %4880 = vmax.xlane.f32.xlu0 %v4879
    %v4881 = vpop.xlane.xlu0 %4880
    %v4882 = vsel %vm580, %v4768, -inf
    %4883 = vmax.xlane.f32.xlu0 %v4882
    %v4884 = vpop.xlane.xlu0 %4883
    %v4885 = vsel %vm580, %v4816, -inf
    %4886 = vmax.xlane.f32.xlu0 %v4885
    %v4887 = vpop.xlane.xlu0 %4886
    %v4888 = vsel %vm580, %v4819, -inf
    %4889 = vmax.xlane.f32.xlu0 %v4888
    %v4890 = vpop.xlane.xlu0 %4889
    %v4891 = vsel %vm580, %v4867, -inf
    %4892 = vmax.xlane.f32.xlu0 %v4891
    %v4893 = vpop.xlane.xlu0 %4892
    %v4894 = vsel %vm580, %v4870, -inf
    %4895 = vmax.xlane.f32.xlu0 %v4894
    %v4896 = vpop.xlane.xlu0 %4895
    %v4897 = vsub.f32 %v4714, %v4875
    %v4898 = vsub.f32 %v4717, %v4878
    %v4899 = vsub.f32 %v4765, %v4881
    %v4900 = vsub.f32 %v4768, %v4884
    %v4901 = vsub.f32 %v4816, %v4887
    %v4902 = vsub.f32 %v4819, %v4890
    %v4903 = vsub.f32 %v4867, %v4893
    %v4904 = vsub.f32 %v4870, %v4896
    %v4905 = vmul.f32 %v4897, 1.442695
    %v4906 = vpow.pop %v4905
    %v4907 = vmul.f32 %v4898, 1.442695
    %v4908 = vpow.pop %v4907
    %v4909 = vmul.f32 %v4899, 1.442695
    %v4910 = vpow.pop %v4909
    %v4911 = vmul.f32 %v4900, 1.442695
    %v4912 = vpow.pop %v4911
    %v4913 = vmul.f32 %v4901, 1.442695
    %v4914 = vpow.pop %v4913
    %v4915 = vmul.f32 %v4902, 1.442695
    %v4916 = vpow.pop %v4915
    %v4917 = vmul.f32 %v4903, 1.442695
    %v4918 = vpow.pop %v4917
    %v4919 = vmul.f32 %v4904, 1.442695
    %v4920 = vpow.pop %v4919
    %v4921 = vsel %vm580, %v4906, 0.0
    %4922 = vadd.xlane.f32.xlu0 %v4921
    %v4923 = vpop.xlane.xlu0 %4922
    %v4924 = vsel %vm580, %v4908, 0.0
    %4925 = vadd.xlane.f32.xlu0 %v4924
    %v4926 = vpop.xlane.xlu0 %4925
    %v4927 = vsel %vm580, %v4910, 0.0
    %4928 = vadd.xlane.f32.xlu0 %v4927
    %v4929 = vpop.xlane.xlu0 %4928
    %v4930 = vsel %vm580, %v4912, 0.0
    %4931 = vadd.xlane.f32.xlu0 %v4930
    %v4932 = vpop.xlane.xlu0 %4931
    %v4933 = vsel %vm580, %v4914, 0.0
    %4934 = vadd.xlane.f32.xlu0 %v4933
    %v4935 = vpop.xlane.xlu0 %4934
    %v4936 = vsel %vm580, %v4916, 0.0
    %4937 = vadd.xlane.f32.xlu0 %v4936
    %v4938 = vpop.xlane.xlu0 %4937
    %v4939 = vsel %vm580, %v4918, 0.0
    %4940 = vadd.xlane.f32.xlu0 %v4939
    %v4941 = vpop.xlane.xlu0 %4940
    %v4942 = vsel %vm580, %v4920, 0.0
    %4943 = vadd.xlane.f32.xlu0 %v4942
    %v4944 = vpop.xlane.xlu0 %4943
    %v4945 = vrcp.pop %v4923
    %v4946 = vrcp.pop %v4926
    %v4947 = vrcp.pop %v4929
    %v4948 = vrcp.pop %v4932
    %v4949 = vrcp.pop %v4935
    %v4950 = vrcp.pop %v4938
    %v4951 = vrcp.pop %v4941
    %v4952 = vrcp.pop %v4944
    %v4953 = vmul.f32 %v4906, %v4945
    %v4954 = vmul.f32 %v4908, %v4946
    %v4955 = vmul.f32 %v4910, %v4947
    %v4956 = vmul.f32 %v4912, %v4948
    %v4957 = vmul.f32 %v4914, %v4949
    %v4958 = vmul.f32 %v4916, %v4950
    %v4959 = vmul.f32 %v4918, %v4951
    %v4960 = vmul.f32 %v4920, %v4952
    %v4961 = vpack.c.bf16 %v4954, %v4953
    %v4962 = vpack.c.bf16 %v4956, %v4955
    %v4963 = vpack.c.bf16 %v4958, %v4957
    %v4964 = vpack.c.bf16 %v4960, %v4959
    %4965 = vrot.lane.b32.xlu0 %v2978, 32
    %v4966 = vpop.permute.xlu0 %4965
    %v4969 = vsel %vm580, %v4961, 0
    %4971 = vmatprep.subr.bf16.mxu0 0
    %4972 = vmatpush1.bf16.msra.mxu0 0
    %4973 = vmatprep.subr.bf16.mxu0 0
    %4974 = vmatpush1.bf16.msra.mxu0 0
    %4975 = vmatprep.subr.bf16.mxu0 0
    %4976 = vmatpush1.bf16.msra.mxu0 0
    %4977 = vmatprep.subr.bf16.mxu0 0
    %4978 = vmatpush1.bf16.msra.mxu0 0
    %4979 = vmatprep.subr.bf16.mxu0 0
    %4980 = vmatpush1.bf16.msra.mxu0 0
    %4981 = vmatprep.subr.bf16.mxu0 0
    %4982 = vmatpush1.bf16.msra.mxu0 0
    %4983 = vmatprep.subr.bf16.mxu0 0
    %4984 = vmatpush1.bf16.msra.mxu0 0
    %4985 = vmatprep.subr.bf16.mxu0 0
    %4986 = vmatpush1.bf16.msra.mxu0 %v4966
    %4987 = vmatprep.subr.bf16.mxu0 0
    %4988 = vmatpush2.bf16.msra.mxu0 0
    %4989 = vmatprep.subr.bf16.mxu0 0
    %4990 = vmatpush2.bf16.msra.mxu0 0
    %4991 = vmatprep.subr.bf16.mxu0 0
    %4992 = vmatpush2.bf16.msra.mxu0 0
    %4993 = vmatprep.subr.bf16.mxu0 0
    %4994 = vmatpush2.bf16.msra.mxu0 0
    %4995 = vmatprep.subr.bf16.mxu0 0
    %4996 = vmatpush2.bf16.msra.mxu0 0
    %4997 = vmatprep.subr.bf16.mxu0 0
    %4998 = vmatpush2.bf16.msra.mxu0 0
    %4999 = vmatprep.subr.bf16.mxu0 0
    %5000 = vmatpush2.bf16.msra.mxu0 0
    %5001 = vmatprep.subr.bf16.mxu0 0
    %5002 = vmatpush2.bf16.msra.mxu0 0
    %5003 = vmatprep.mubr.bf16.mxu0 0
    %5004 = vmatmul.mubr.bf16.gmra.mxu0 %v4969
    %v5005 = vpop.f32.mrf.mxu0
    %v5006 = vadd.f32 0.0, %v5005
    %v5007 = vpop.f32.mrf.mxu0
    %v5008 = vpop.f32.mrf.mxu0
    %v5009 = vadd.f32 0.0, %v5008
    %v5010 = vpop.f32.mrf.mxu0
    %5011 = vdwg.mxu0
    %5012 = vrot.lane.b32.xlu0 %v2979, 32
    %v5013 = vpop.permute.xlu0 %5012
    %v5016 = vsel %vm580, %v4962, 0
    %5018 = vmatprep.subr.bf16.mxu0 0
    %5019 = vmatpush1.bf16.msra.mxu0 0
    %5020 = vmatprep.subr.bf16.mxu0 0
    %5021 = vmatpush1.bf16.msra.mxu0 0
    %5022 = vmatprep.subr.bf16.mxu0 0
    %5023 = vmatpush1.bf16.msra.mxu0 0
    %5024 = vmatprep.subr.bf16.mxu0 0
    %5025 = vmatpush1.bf16.msra.mxu0 0
    %5026 = vmatprep.subr.bf16.mxu0 0
    %5027 = vmatpush1.bf16.msra.mxu0 0
    %5028 = vmatprep.subr.bf16.mxu0 0
    %5029 = vmatpush1.bf16.msra.mxu0 0
    %5030 = vmatprep.subr.bf16.mxu0 0
    %5031 = vmatpush1.bf16.msra.mxu0 0
    %5032 = vmatprep.subr.bf16.mxu0 0
    %5033 = vmatpush1.bf16.msra.mxu0 %v5013
    %5034 = vmatprep.subr.bf16.mxu0 0
    %5035 = vmatpush2.bf16.msra.mxu0 0
    %5036 = vmatprep.subr.bf16.mxu0 0
    %5037 = vmatpush2.bf16.msra.mxu0 0
    %5038 = vmatprep.subr.bf16.mxu0 0
    %5039 = vmatpush2.bf16.msra.mxu0 0
    %5040 = vmatprep.subr.bf16.mxu0 0
    %5041 = vmatpush2.bf16.msra.mxu0 0
    %5042 = vmatprep.subr.bf16.mxu0 0
    %5043 = vmatpush2.bf16.msra.mxu0 0
    %5044 = vmatprep.subr.bf16.mxu0 0
    %5045 = vmatpush2.bf16.msra.mxu0 0
    %5046 = vmatprep.subr.bf16.mxu0 0
    %5047 = vmatpush2.bf16.msra.mxu0 0
    %5048 = vmatprep.subr.bf16.mxu0 0
    %5049 = vmatpush2.bf16.msra.mxu0 0
    %5050 = vmatprep.mubr.bf16.mxu0 0
    %5051 = vmatmul.mubr.bf16.gmra.mxu0 %v5016
    %v5052 = vpop.f32.mrf.mxu0
    %v5053 = vadd.f32 0.0, %v5052
    %v5054 = vpop.f32.mrf.mxu0
    %v5055 = vpop.f32.mrf.mxu0
    %v5056 = vadd.f32 0.0, %v5055
    %v5057 = vpop.f32.mrf.mxu0
    %5058 = vdwg.mxu0
    %5059 = vrot.lane.b32.xlu0 %v2980, 32
    %v5060 = vpop.permute.xlu0 %5059
    %v5063 = vsel %vm580, %v4963, 0
    %5065 = vmatprep.subr.bf16.mxu0 0
    %5066 = vmatpush1.bf16.msra.mxu0 0
    %5067 = vmatprep.subr.bf16.mxu0 0
    %5068 = vmatpush1.bf16.msra.mxu0 0
    %5069 = vmatprep.subr.bf16.mxu0 0
    %5070 = vmatpush1.bf16.msra.mxu0 0
    %5071 = vmatprep.subr.bf16.mxu0 0
    %5072 = vmatpush1.bf16.msra.mxu0 0
    %5073 = vmatprep.subr.bf16.mxu0 0
    %5074 = vmatpush1.bf16.msra.mxu0 0
    %5075 = vmatprep.subr.bf16.mxu0 0
    %5076 = vmatpush1.bf16.msra.mxu0 0
    %5077 = vmatprep.subr.bf16.mxu0 0
    %5078 = vmatpush1.bf16.msra.mxu0 0
    %5079 = vmatprep.subr.bf16.mxu0 0
    %5080 = vmatpush1.bf16.msra.mxu0 %v5060
    %5081 = vmatprep.subr.bf16.mxu0 0
    %5082 = vmatpush2.bf16.msra.mxu0 0
    %5083 = vmatprep.subr.bf16.mxu0 0
    %5084 = vmatpush2.bf16.msra.mxu0 0
    %5085 = vmatprep.subr.bf16.mxu0 0
    %5086 = vmatpush2.bf16.msra.mxu0 0
    %5087 = vmatprep.subr.bf16.mxu0 0
    %5088 = vmatpush2.bf16.msra.mxu0 0
    %5089 = vmatprep.subr.bf16.mxu0 0
    %5090 = vmatpush2.bf16.msra.mxu0 0
    %5091 = vmatprep.subr.bf16.mxu0 0
    %5092 = vmatpush2.bf16.msra.mxu0 0
    %5093 = vmatprep.subr.bf16.mxu0 0
    %5094 = vmatpush2.bf16.msra.mxu0 0
    %5095 = vmatprep.subr.bf16.mxu0 0
    %5096 = vmatpush2.bf16.msra.mxu0 0
    %5097 = vmatprep.mubr.bf16.mxu0 0
    %5098 = vmatmul.mubr.bf16.gmra.mxu0 %v5063
    %v5099 = vpop.f32.mrf.mxu0
    %v5100 = vadd.f32 0.0, %v5099
    %v5101 = vpop.f32.mrf.mxu0
    %v5102 = vpop.f32.mrf.mxu0
    %v5103 = vadd.f32 0.0, %v5102
    %v5104 = vpop.f32.mrf.mxu0
    %5105 = vdwg.mxu0
    %5106 = vrot.lane.b32.xlu0 %v2981, 32
    %v5107 = vpop.permute.xlu0 %5106
    %v5110 = vsel %vm580, %v4964, 0
    %5112 = vmatprep.subr.bf16.mxu0 0
    %5113 = vmatpush1.bf16.msra.mxu0 0
    %5114 = vmatprep.subr.bf16.mxu0 0
    %5115 = vmatpush1.bf16.msra.mxu0 0
    %5116 = vmatprep.subr.bf16.mxu0 0
    %5117 = vmatpush1.bf16.msra.mxu0 0
    %5118 = vmatprep.subr.bf16.mxu0 0
    %5119 = vmatpush1.bf16.msra.mxu0 0
    %5120 = vmatprep.subr.bf16.mxu0 0
    %5121 = vmatpush1.bf16.msra.mxu0 0
    %5122 = vmatprep.subr.bf16.mxu0 0
    %5123 = vmatpush1.bf16.msra.mxu0 0
    %5124 = vmatprep.subr.bf16.mxu0 0
    %5125 = vmatpush1.bf16.msra.mxu0 0
    %5126 = vmatprep.subr.bf16.mxu0 0
    %5127 = vmatpush1.bf16.msra.mxu0 %v5107
    %5128 = vmatprep.subr.bf16.mxu0 0
    %5129 = vmatpush2.bf16.msra.mxu0 0
    %5130 = vmatprep.subr.bf16.mxu0 0
    %5131 = vmatpush2.bf16.msra.mxu0 0
    %5132 = vmatprep.subr.bf16.mxu0 0
    %5133 = vmatpush2.bf16.msra.mxu0 0
    %5134 = vmatprep.subr.bf16.mxu0 0
    %5135 = vmatpush2.bf16.msra.mxu0 0
    %5136 = vmatprep.subr.bf16.mxu0 0
    %5137 = vmatpush2.bf16.msra.mxu0 0
    %5138 = vmatprep.subr.bf16.mxu0 0
    %5139 = vmatpush2.bf16.msra.mxu0 0
    %5140 = vmatprep.subr.bf16.mxu0 0
    %5141 = vmatpush2.bf16.msra.mxu0 0
    %5142 = vmatprep.subr.bf16.mxu0 0
    %5143 = vmatpush2.bf16.msra.mxu0 0
    %5144 = vmatprep.mubr.bf16.mxu0 0
    %5145 = vmatmul.mubr.bf16.gmra.mxu0 %v5110
    %v5146 = vpop.f32.mrf.mxu0
    %v5147 = vadd.f32 0.0, %v5146
    %v5148 = vpop.f32.mrf.mxu0
    %v5149 = vpop.f32.mrf.mxu0
    %v5150 = vadd.f32 0.0, %v5149
    %v5151 = vpop.f32.mrf.mxu0
    %5152 = vdwg.mxu0
    %v5153 = vpack.c.bf16 %v5009, %v5006
    %v5154 = vpack.c.bf16 %v5056, %v5053
    %v5155 = vpack.c.bf16 %v5103, %v5100
    %v5156 = vpack.c.bf16 %v5150, %v5147
    %v5158 = vsel %vm391, %v5153, 0
    %v5161 = vsel %vm391, %v5154, 0
    %v5164 = vsel %vm391, %v5155, 0
    %v5167 = vsel %vm391, %v5156, 0
    %5169 = vmatprep.subr.bf16.mxu0 0
    %5170 = vmatpush1.bf16.msra.mxu0 0
    %5171 = vmatprep.subr.bf16.mxu0 0
    %5172 = vmatpush1.bf16.msra.mxu0 0
    %5173 = vmatprep.subr.bf16.mxu0 0
    %5174 = vmatpush1.bf16.msra.mxu0 0
    %5175 = vmatprep.subr.bf16.mxu0 0
    %5176 = vmatpush1.bf16.msra.mxu0 0
    %5177 = vmatprep.subr.bf16.mxu0 0
    %5178 = vmatpush1.bf16.msra.mxu0 0
    %5179 = vmatprep.subr.bf16.mxu0 0
    %5180 = vmatpush1.bf16.msra.mxu0 0
    %5181 = vmatprep.subr.bf16.mxu0 0
    %5182 = vmatpush1.bf16.msra.mxu0 %v2613
    %5183 = vmatprep.subr.bf16.mxu0 0
    %5184 = vmatpush1.bf16.msra.mxu0 %v2612
    %5185 = vmatprep.subr.bf16.mxu0 0
    %5186 = vmatpush2.bf16.msra.mxu0 0
    %5187 = vmatprep.subr.bf16.mxu0 0
    %5188 = vmatpush2.bf16.msra.mxu0 0
    %5189 = vmatprep.subr.bf16.mxu0 0
    %5190 = vmatpush2.bf16.msra.mxu0 0
    %5191 = vmatprep.subr.bf16.mxu0 0
    %5192 = vmatpush2.bf16.msra.mxu0 0
    %5193 = vmatprep.subr.bf16.mxu0 0
    %5194 = vmatpush2.bf16.msra.mxu0 0
    %5195 = vmatprep.subr.bf16.mxu0 0
    %5196 = vmatpush2.bf16.msra.mxu0 0
    %5197 = vmatprep.subr.bf16.mxu0 0
    %5198 = vmatpush2.bf16.msra.mxu0 0
    %5199 = vmatprep.subr.bf16.mxu0 0
    %5200 = vmatpush2.bf16.msra.mxu0 0
    %5201 = vmatprep.mubr.bf16.mxu0 0
    %5202 = vmatmul.mubr.bf16.gmra.mxu0 %v5158
    %v5203 = vpop.f32.mrf.mxu0
    %v5204 = vadd.f32 0.0, %v5203
    %v5205 = vpop.f32.mrf.mxu0
    %v5206 = vpop.f32.mrf.mxu0
    %v5207 = vadd.f32 0.0, %v5206
    %v5208 = vpop.f32.mrf.mxu0
    %5209 = vmatprep.mubr.bf16.mxu0 0
    %5210 = vmatmul.mubr.bf16.gmra.mxu0 %v5161
    %v5211 = vpop.f32.mrf.mxu0
    %v5212 = vadd.f32 0.0, %v5211
    %v5213 = vpop.f32.mrf.mxu0
    %v5214 = vpop.f32.mrf.mxu0
    %v5215 = vadd.f32 0.0, %v5214
    %v5216 = vpop.f32.mrf.mxu0
    %5217 = vmatprep.mubr.bf16.mxu0 0
    %5218 = vmatmul.mubr.bf16.gmra.mxu0 %v5164
    %v5219 = vpop.f32.mrf.mxu0
    %v5220 = vadd.f32 0.0, %v5219
    %v5221 = vpop.f32.mrf.mxu0
    %v5222 = vpop.f32.mrf.mxu0
    %v5223 = vadd.f32 0.0, %v5222
    %v5224 = vpop.f32.mrf.mxu0
    %5225 = vmatprep.mubr.bf16.mxu0 0
    %5226 = vmatmul.mubr.bf16.gmra.mxu0 %v5167
    %v5227 = vpop.f32.mrf.mxu0
    %v5228 = vadd.f32 0.0, %v5227
    %v5229 = vpop.f32.mrf.mxu0
    %v5230 = vpop.f32.mrf.mxu0
    %v5231 = vadd.f32 0.0, %v5230
    %v5232 = vpop.f32.mrf.mxu0
    %5233 = vdwg.mxu0
    %v5234 = vadd.f32 %v4661, %v5204
    %v5235 = vadd.f32 %v4662, %v5207
    %v5236 = vadd.f32 %v4663, %v5212
    %v5237 = vadd.f32 %v4664, %v5215
    %v5238 = vadd.f32 %v4665, %v5220
    %v5239 = vadd.f32 %v4666, %v5223
    %v5240 = vadd.f32 %v4667, %v5228
    %v5241 = vadd.f32 %v4668, %v5231
    %v5242 = vadd.f32 %v5234, %v2705
    %v5243 = vadd.f32 %v5235, %v2705
    %v5244 = vadd.f32 %v5236, %v2705
    %v5245 = vadd.f32 %v5237, %v2705
    %v5246 = vadd.f32 %v5238, %v2705
    %v5247 = vadd.f32 %v5239, %v2705
    %v5248 = vadd.f32 %v5240, %v2705
    %v5249 = vadd.f32 %v5241, %v2705
    %v5250 = vadd.f32 %v2820, %v5242
    %v5251 = vadd.f32 %v2821, %v5243
    %v5252 = vadd.f32 %v2822, %v5244
    %v5253 = vadd.f32 %v2823, %v5245
    %v5254 = vadd.f32 %v2824, %v5246
    %v5255 = vadd.f32 %v2825, %v5247
    %v5256 = vadd.f32 %v2826, %v5248
    %v5257 = vadd.f32 %v2827, %v5249
    %v5258 = vadd.f32 %v5250, %v5251
    %v5259 = vrot.slane %v5258, 4
    %v5260 = vadd.f32 %v5258, %v5259
    %v5261 = vrot.slane %v5260, 2
    %v5262 = vadd.f32 %v5260, %v5261
    %v5263 = vrot.slane %v5262, 1
    %v5264 = vadd.f32 %v5262, %v5263
    %v5265 = vadd.f32 %v5252, %v5253
    %v5266 = vrot.slane %v5265, 4
    %v5267 = vadd.f32 %v5265, %v5266
    %v5268 = vrot.slane %v5267, 2
    %v5269 = vadd.f32 %v5267, %v5268
    %v5270 = vrot.slane %v5269, 1
    %v5271 = vadd.f32 %v5269, %v5270
    %v5272 = vadd.f32 %v5254, %v5255
    %v5273 = vrot.slane %v5272, 4
    %v5274 = vadd.f32 %v5272, %v5273
    %v5275 = vrot.slane %v5274, 2
    %v5276 = vadd.f32 %v5274, %v5275
    %v5277 = vrot.slane %v5276, 1
    %v5278 = vadd.f32 %v5276, %v5277
    %v5279 = vadd.f32 %v5256, %v5257
    %v5280 = vrot.slane %v5279, 4
    %v5281 = vadd.f32 %v5279, %v5280
    %v5282 = vrot.slane %v5281, 2
    %v5283 = vadd.f32 %v5281, %v5282
    %v5284 = vrot.slane %v5283, 1
    %v5285 = vadd.f32 %v5283, %v5284
    %v5286 = vmul.f32 %v5264, %v2751
    %v5287 = vmul.f32 %v5271, %v2751
    %v5288 = vmul.f32 %v5278, %v2751
    %v5289 = vmul.f32 %v5285, %v2751
    %v5290 = vsub.f32 %v5250, %v5286
    %v5291 = vsub.f32 %v5251, %v5286
    %v5292 = vsub.f32 %v5252, %v5287
    %v5293 = vsub.f32 %v5253, %v5287
    %v5294 = vsub.f32 %v5254, %v5288
    %v5295 = vsub.f32 %v5255, %v5288
    %v5296 = vsub.f32 %v5256, %v5289
    %v5297 = vsub.f32 %v5257, %v5289
    %v5298 = vmul.f32 %v5290, %v5290
    %v5299 = vmul.f32 %v5291, %v5291
    %v5300 = vmul.f32 %v5292, %v5292
    %v5301 = vmul.f32 %v5293, %v5293
    %v5302 = vmul.f32 %v5294, %v5294
    %v5303 = vmul.f32 %v5295, %v5295
    %v5304 = vmul.f32 %v5296, %v5296
    %v5305 = vmul.f32 %v5297, %v5297
    %v5306 = vadd.f32 %v5298, %v5299
    %v5307 = vrot.slane %v5306, 4
    %v5308 = vadd.f32 %v5306, %v5307
    %v5309 = vrot.slane %v5308, 2
    %v5310 = vadd.f32 %v5308, %v5309
    %v5311 = vrot.slane %v5310, 1
    %v5312 = vadd.f32 %v5310, %v5311
    %v5313 = vadd.f32 %v5300, %v5301
    %v5314 = vrot.slane %v5313, 4
    %v5315 = vadd.f32 %v5313, %v5314
    %v5316 = vrot.slane %v5315, 2
    %v5317 = vadd.f32 %v5315, %v5316
    %v5318 = vrot.slane %v5317, 1
    %v5319 = vadd.f32 %v5317, %v5318
    %v5320 = vadd.f32 %v5302, %v5303
    %v5321 = vrot.slane %v5320, 4
    %v5322 = vadd.f32 %v5320, %v5321
    %v5323 = vrot.slane %v5322, 2
    %v5324 = vadd.f32 %v5322, %v5323
    %v5325 = vrot.slane %v5324, 1
    %v5326 = vadd.f32 %v5324, %v5325
    %v5327 = vadd.f32 %v5304, %v5305
    %v5328 = vrot.slane %v5327, 4
    %v5329 = vadd.f32 %v5327, %v5328
    %v5330 = vrot.slane %v5329, 2
    %v5331 = vadd.f32 %v5329, %v5330
    %v5332 = vrot.slane %v5331, 1
    %v5333 = vadd.f32 %v5331, %v5332
    %v5334 = vmul.f32 %v5312, %v2751
    %v5335 = vmul.f32 %v5319, %v2751
    %v5336 = vmul.f32 %v5326, %v2751
    %v5337 = vmul.f32 %v5333, %v2751
    %v5338 = vadd.f32 %v5334, 1e-05
    %v5339 = vadd.f32 %v5335, 1e-05
    %v5340 = vadd.f32 %v5336, 1e-05
    %v5341 = vadd.f32 %v5337, 1e-05
    %v5342 = vrsqrt.pop %v5338
    %v5343 = vrsqrt.pop %v5339
    %v5344 = vrsqrt.pop %v5340
    %v5345 = vrsqrt.pop %v5341
    %v5346 = vmul.f32 %v5290, %v5342
    %v5347 = vmul.f32 %v5291, %v5342
    %v5348 = vmul.f32 %v5292, %v5343
    %v5349 = vmul.f32 %v5293, %v5343
    %v5350 = vmul.f32 %v5294, %v5344
    %v5351 = vmul.f32 %v5295, %v5344
    %v5352 = vmul.f32 %v5296, %v5345
    %v5353 = vmul.f32 %v5297, %v5345
    %v5354 = vmax.f32 %v5346, 0.0
    %v5355 = vmax.f32 %v5347, 0.0
    %v5356 = vmax.f32 %v5348, 0.0
    %v5357 = vmax.f32 %v5349, 0.0
    %v5358 = vmax.f32 %v5350, 0.0
    %v5359 = vmax.f32 %v5351, 0.0
    %v5360 = vmax.f32 %v5352, 0.0
    %v5361 = vmax.f32 %v5353, 0.0
    %5362 = vst [vmem:[%s5] sm:$0xff] %v5354
    %5363 = vst [vmem:[%s5 + $0x8] sm:$0xff] %v5355
    %5364 = vst [vmem:[%s5 + $0x10] sm:$0xff] %v5356
    %5365 = vst [vmem:[%s5 + $0x18] sm:$0xff] %v5357
    %5366 = vst [vmem:[%s5 + $0x20] sm:$0xff] %v5358
    %5367 = vst [vmem:[%s5 + $0x28] sm:$0xff] %v5359
    %5368 = vst [vmem:[%s5 + $0x30] sm:$0xff] %v5360
    %5369 = vst [vmem:[%s5 + $0x38] sm:$0xff] %v5361
    // Predicated region
    $region26: #{transformer_encoder.1} parent=1 // pred_check
      _
    $region27: #{transformer_encoder.1} parent=1 // pred_check_branch
      %5371 = sbr.rel (0) target = $region29
    $region28: #{transformer_encoder.1} parent=1 // pred_region
      _
    $region29: #{transformer_encoder.1} parent=1 // pred_fallthru
      _
    // Predicated region
    $region30: #{transformer_encoder.1} parent=1 // pred_check
      _
    $region31: #{transformer_encoder.1} parent=1 // pred_check_branch
      %5373 = sbr.rel (0) target = $region33
    $region32: #{transformer_encoder.1} parent=1 // pred_region
      _
    $region33: #{transformer_encoder.1} parent=1 // pred_fallthru
      _
    %5374 = vsyncpa [#allocation3], 1

</llo_original>
